<compile_context>
chip_gen: v7x
topology: tpu7x:2x2x1
jax: 0.10.0
libtpu: 0.0.40
codegen_flags: <defaults>
</compile_context>

<pallas_src>
import math

import jax
import jax.numpy as jnp
from jax import lax
from jax.experimental import pallas as pl
from jax.experimental.pallas import tpu as pltpu

NUM_LAYERS = 2      # nn.TransformerEncoder(num_layers=2)
DIM_FF = 2048       # nn.TransformerEncoderLayer default dim_feedforward
LN_EPS = 1e-5       # nn.TransformerEncoderLayer default layer_norm_eps

# Lane layout of the packed per-layer weight array (all offsets are 128-aligned).
PAD = 128                       # lane block per q/k/v projection and padded attn dim
QKV_COLS = 3 * PAD              # 384
L1_OFF = QKV_COLS               # 384
L2_OFF = L1_OFF + DIM_FF        # 2432
OUT_OFF = L2_OFF + DIM_FF       # 4480
W_COLS = OUT_OFF + PAD          # 4608

# Lane layout of the packed per-layer (1, X) bias array.
B_L1_OFF = QKV_COLS             # qkv bias occupies [0:384], linear1 bias [384:2432]
B_COLS = QKV_COLS + DIM_FF      # 2432

# Row layout of the packed per-layer small (8, D) f32 parameter array.
ROW_OUT_B, ROW_L2_B, ROW_N1_W, ROW_N1_B, ROW_N2_W, ROW_N2_B = 0, 1, 2, 3, 4, 5


def _mm(a, w):
    """a @ w, bf16 MXU operands, f32 accumulation. w is (in, out), lane-dense."""
    return jnp.dot(a, w, preferred_element_type=jnp.float32)


def _mm_t(a, w):
    """a @ w^T via contraction over the shared last axis (rhs-transposed MXU)."""
    return lax.dot_general(a, w, (((1,), (1,)), ((), ())),
                           preferred_element_type=jnp.float32)


def _layer_norm(x, w, b):
    mu = jnp.mean(x, axis=-1, keepdims=True)
    var = jnp.mean((x - mu) ** 2, axis=-1, keepdims=True)
    return (x - mu) * lax.rsqrt(var + LN_EPS) * w + b


def transformer_kernel(x_ref, w_ref, bb_ref, sp_ref, fcw_ref, fcb_ref, o_ref):
    x = x_ref[...].astype(jnp.float32)                    # (S, D) f32 residual stream
    d_model = x.shape[1]
    scale = 1.0 / math.sqrt(d_model)

    for l in range(NUM_LAYERS):                           # statically unrolled
        # ---- single-head self-attention (post-norm layer, norm_first=False) ----
        xb = x.astype(jnp.bfloat16)                       # cast once for all three projections
        # Fused QKV: (S, D) @ (D, 3*128); each projection sits in its own
        # 128-lane block (padding lanes are zero weights + zero bias).
        qkv = (_mm(xb, w_ref[l, :, 0:QKV_COLS]) + bb_ref[l, :, 0:QKV_COLS]
               ).astype(jnp.bfloat16)                     # (S, 384)
        q = qkv[:, 0:PAD]                                 # (S, 128)  128-aligned slices
        k = qkv[:, PAD:2 * PAD]
        v = qkv[:, 2 * PAD:3 * PAD]

        # scores = q @ k^T (contraction over the padded lane axis; pads are 0)
        scores = _mm_t(q, k) * scale                      # (S, S) f32
        scores = scores - jnp.max(scores, axis=-1, keepdims=True)
        p = jnp.exp(scores)
        p = p * pl.reciprocal(jnp.sum(p, axis=-1, keepdims=True), approx=True)

        attn = _mm(p.astype(jnp.bfloat16), v)             # (S, 128) f32, pads stay 0
        attn = _mm_t(attn.astype(jnp.bfloat16),
                     w_ref[l, :, OUT_OFF:OUT_OFF + PAD]) + sp_ref[l, ROW_OUT_B:ROW_OUT_B + 1, :]
        # TODO(synk): dropout1/dropout2/dropout are identity (eval-mode semantics).
        x = x + attn                                      # (S, D)

        # ---- layer norm 1 ----
        x = _layer_norm(x, sp_ref[l, ROW_N1_W:ROW_N1_W + 1, :],
                        sp_ref[l, ROW_N1_B:ROW_N1_B + 1, :])

        # ---- feed forward: linear2(relu(linear1(x))) ----
        xb = x.astype(jnp.bfloat16)
        h = jnp.maximum(_mm(xb, w_ref[l, :, L1_OFF:L1_OFF + DIM_FF])
                        + bb_ref[l, :, B_L1_OFF:B_L1_OFF + DIM_FF], 0.0)   # (S, FF)
        # linear2 weight kept in its original lane-dense (D, FF) layout.
        ff = _mm_t(h.astype(jnp.bfloat16),
                   w_ref[l, :, L2_OFF:L2_OFF + DIM_FF]) + sp_ref[l, ROW_L2_B:ROW_L2_B + 1, :]
        x = x + ff

        # ---- layer norm 2 ----
        x = _layer_norm(x, sp_ref[l, ROW_N2_W:ROW_N2_W + 1, :],
                        sp_ref[l, ROW_N2_B:ROW_N2_B + 1, :])

    # ---- final classifier (lane-padded to 128 for an unmasked store) ----
    o_ref[...] = (_mm(x.astype(jnp.bfloat16), fcw_ref[...])
                  + fcb_ref[...]).astype(o_ref.dtype)


def transformer_forward(x, params, num_classes):
    S = x.shape[0]
    vmem = pl.BlockSpec(memory_space=pltpu.MemorySpace.VMEM)
    out_pad = pl.pallas_call(
        transformer_kernel,
        out_shape=jax.ShapeDtypeStruct((S, PAD), jnp.float32),
        in_specs=[vmem] * (1 + len(params)),
        out_specs=vmem,
    )(x, *params)
    return out_pad[:, :num_classes]


def init_params(key, d_model, num_classes, dim_ff=DIM_FF):
    """Deterministic synthetic init, same logical shapes as the PyTorch module.

    Weights are built in PyTorch (out_features, in_features) layout, then
    repacked into one lane-dense bf16 array per layer:
      lanes [0:384)      fused Wq/Wk/Wv^T, each 32-wide in its own 128-lane block
      lanes [384:2432)   linear1^T  (D, FF)
      lanes [2432:4480)  linear2 in original (D, FF) layout (contracted over FF)
      lanes [4480:4608)  out_proj (D_out, 128) padded in its in-dim
    Biases / LayerNorm params stay f32 and are packed into two small arrays.
    """
    assert d_model <= PAD and num_classes <= PAD
    keys = iter(jax.random.split(key, 32))

    def u(k, shape, fan_in):
        bound = 1.0 / math.sqrt(fan_in)
        return jax.random.uniform(k, shape, jnp.float32, -bound, bound)

    def stack(shape, fan_in):
        return jnp.stack([u(next(keys), shape, fan_in) for _ in range(NUM_LAYERS)])

    D, L = d_model, NUM_LAYERS
    in_w = stack((3 * D, D), D)            # MultiheadAttention.in_proj_weight
    in_b = stack((3 * D,), D)              # in_proj_bias
    out_w = stack((D, D), D)               # out_proj.weight
    out_b = stack((D,), D)                 # out_proj.bias
    l1_w = stack((dim_ff, D), D)           # linear1.weight
    l1_b = stack((dim_ff,), D)             # linear1.bias
    l2_w = stack((D, dim_ff), dim_ff)      # linear2.weight
    l2_b = stack((D,), dim_ff)             # linear2.bias
    fc_w = u(next(keys), (num_classes, D), D)      # fc.weight
    fc_b = u(next(keys), (num_classes,), D)        # fc.bias

    # Fused, lane-padded QKV weight (D, 3*128) and bias (1, 3*128).
    qkv_w = jnp.zeros((L, D, QKV_COLS), jnp.float32)
    qkv_b = jnp.zeros((L, 1, QKV_COLS), jnp.float32)
    for i in range(3):                                     # 0=q, 1=k, 2=v
        w_i = jnp.swapaxes(in_w[:, i * D:(i + 1) * D, :], 1, 2)   # (L, D_in, D_out)
        qkv_w = qkv_w.at[:, :, i * PAD:i * PAD + D].set(w_i)
        qkv_b = qkv_b.at[:, 0, i * PAD:i * PAD + D].set(in_b[:, i * D:(i + 1) * D])

    l1_wt = jnp.swapaxes(l1_w, 1, 2)                       # (L, D, FF) lane-dense
    # linear2 kept in original (L, D, FF) layout (lane-dense), contracted over FF.
    out_w_pad = jnp.zeros((L, D, PAD), jnp.float32).at[:, :, 0:D].set(out_w)

    big_w = jnp.concatenate([qkv_w, l1_wt, l2_w, out_w_pad],
                            axis=2).astype(jnp.bfloat16)   # (L, D, 4608)
    big_b = jnp.concatenate([qkv_b, l1_b[:, None, :]], axis=2)      # (L, 1, 2432) f32

    # Packed small per-layer params: rows = [out_b, l2_b, n1_w, n1_b, n2_w, n2_b, 0, 0]
    ones = jnp.ones((L, D), jnp.float32)
    zeros = jnp.zeros((L, D), jnp.float32)
    small = jnp.stack([out_b, l2_b, ones, zeros, ones, zeros, zeros, zeros],
                      axis=1)                              # (L, 8, D) f32

    fc_w_pad = (jnp.zeros((D, PAD), jnp.float32)
                .at[:, 0:num_classes].set(fc_w.T).astype(jnp.bfloat16))
    fc_b_pad = jnp.zeros((1, PAD), jnp.float32).at[0, 0:num_classes].set(fc_b)

    return (big_w, big_b, small, fc_w_pad, fc_b_pad)


if __name__ == "__main__":
    seq_len = 8
    input_size = 32      # d_model
    num_classes = 8

    key = jax.random.PRNGKey(0)
    kx, kp = jax.random.split(key)
    x = jax.random.normal(kx, (seq_len, input_size), jnp.float32)
    params = init_params(kp, input_size, num_classes)

    out = jax.block_until_ready(transformer_forward(x, params, num_classes))
    assert out.shape == (seq_len, num_classes)
    assert bool(jnp.all(jnp.isfinite(out)))
    print("KERNEL_OK")
</pallas_src>

<mosaic_0001>
module attributes {stable_mosaic.version = 11 : i64} {
  func.func @transformer_kernel(%arg0: memref<8x32xf32, #tpu.memory_space<vmem>>, %arg1: memref<2x32x4608xbf16, #tpu.memory_space<vmem>>, %arg2: memref<2x1x2432xf32, #tpu.memory_space<vmem>>, %arg3: memref<2x8x32xf32, #tpu.memory_space<vmem>>, %arg4: memref<32x128xbf16, #tpu.memory_space<vmem>>, %arg5: memref<1x128xf32, #tpu.memory_space<vmem>>, %arg6: memref<8x128xf32, #tpu.memory_space<vmem>>) attributes {dimension_semantics = [], scalar_prefetch = 0 : i64, scratch_operands = 0 : i64, tpu.core_type = #tpu.core_type<tc>} {
    %c0 = arith.constant 0 : index
    %c0_0 = arith.constant 0 : index
    %0 = vector.load %arg0[%c0, %c0_0] : memref<8x32xf32, #tpu.memory_space<vmem>>, vector<8x32xf32>
    %1 = arith.truncf %0 : vector<8x32xf32> to vector<8x32xbf16>
    %c0_1 = arith.constant 0 : index
    %c0_2 = arith.constant 0 : index
    %c0_3 = arith.constant 0 : index
    %2 = vector.load %arg1[%c0_1, %c0_2, %c0_3] : memref<2x32x4608xbf16, #tpu.memory_space<vmem>>, vector<1x32x384xbf16>
    %3 = vector.shape_cast %2 : vector<1x32x384xbf16> to vector<32x384xbf16>
    %cst = arith.constant dense<0.000000e+00> : vector<8x384xf32>
    %4 = tpu.matmul %1, %3, %cst {dimension_numbers = #tpu.dot_dimension_numbers<[1], [0], [0], [1], [0, 0, 1, 1], [], []>} : vector<8x32xbf16>, vector<32x384xbf16>, vector<8x384xf32> -> vector<8x384xf32>
    %c0_4 = arith.constant 0 : index
    %c0_5 = arith.constant 0 : index
    %c0_6 = arith.constant 0 : index
    %5 = vector.load %arg2[%c0_4, %c0_5, %c0_6] : memref<2x1x2432xf32, #tpu.memory_space<vmem>>, vector<1x1x384xf32>
    %6 = vector.shape_cast %5 : vector<1x1x384xf32> to vector<1x384xf32>
    %7 = vector.broadcast %6 : vector<1x384xf32> to vector<8x384xf32>
    %8 = arith.addf %4, %7 : vector<8x384xf32>
    %9 = arith.truncf %8 : vector<8x384xf32> to vector<8x384xbf16>
    %10 = vector.extract_strided_slice %9 {offsets = [0, 0], sizes = [8, 128], strides = [1, 1]} : vector<8x384xbf16> to vector<8x128xbf16>
    %11 = vector.extract_strided_slice %9 {offsets = [0, 128], sizes = [8, 128], strides = [1, 1]} : vector<8x384xbf16> to vector<8x128xbf16>
    %12 = vector.extract_strided_slice %9 {offsets = [0, 256], sizes = [8, 128], strides = [1, 1]} : vector<8x384xbf16> to vector<8x128xbf16>
    %cst_7 = arith.constant dense<0.000000e+00> : vector<8x8xf32>
    %13 = tpu.matmul %10, %11, %cst_7 {dimension_numbers = #tpu.dot_dimension_numbers<[1], [1], [0], [0], [0, 0, 1, 0], [], []>} : vector<8x128xbf16>, vector<8x128xbf16>, vector<8x8xf32> -> vector<8x8xf32>
    %cst_8 = arith.constant 0.176776692 : f32
    %14 = vector.broadcast %cst_8 : f32 to vector<8x8xf32>
    %15 = arith.mulf %13, %14 : vector<8x8xf32>
    %cst_9 = arith.constant dense<0xFF800000> : vector<8xf32>
    %16 = vector.multi_reduction <maximumf>, %15, %cst_9 [1] : vector<8x8xf32> to vector<8xf32>
    %17 = vector.shape_cast %16 : vector<8xf32> to vector<8x1xf32>
    %18 = vector.broadcast %17 : vector<8x1xf32> to vector<8x8xf32>
    %19 = arith.subf %15, %18 : vector<8x8xf32>
    %20 = math.exp %19 : vector<8x8xf32>
    %cst_10 = arith.constant dense<0.000000e+00> : vector<8xf32>
    %21 = vector.multi_reduction <add>, %20, %cst_10 [1] : vector<8x8xf32> to vector<8xf32>
    %22 = vector.shape_cast %21 : vector<8xf32> to vector<8x1xf32>
    %23 = tpu.reciprocal %22 {approx = true} : vector<8x1xf32> -> vector<8x1xf32>
    %24 = vector.broadcast %23 : vector<8x1xf32> to vector<8x8xf32>
    %25 = arith.mulf %20, %24 : vector<8x8xf32>
    %26 = arith.truncf %25 : vector<8x8xf32> to vector<8x8xbf16>
    %cst_11 = arith.constant dense<0.000000e+00> : vector<8x128xf32>
    %27 = tpu.matmul %26, %12, %cst_11 {dimension_numbers = #tpu.dot_dimension_numbers<[1], [0], [0], [1], [0, 0, 1, 1], [], []>} : vector<8x8xbf16>, vector<8x128xbf16>, vector<8x128xf32> -> vector<8x128xf32>
    %28 = arith.truncf %27 : vector<8x128xf32> to vector<8x128xbf16>
    %c0_12 = arith.constant 0 : index
    %c0_13 = arith.constant 0 : index
    %c4480 = arith.constant 4480 : index
    %29 = vector.load %arg1[%c0_12, %c0_13, %c4480] : memref<2x32x4608xbf16, #tpu.memory_space<vmem>>, vector<1x32x128xbf16>
    %30 = vector.shape_cast %29 : vector<1x32x128xbf16> to vector<32x128xbf16>
    %cst_14 = arith.constant dense<0.000000e+00> : vector<8x32xf32>
    %31 = tpu.matmul %28, %30, %cst_14 {dimension_numbers = #tpu.dot_dimension_numbers<[1], [1], [0], [0], [0, 0, 1, 0], [], []>} : vector<8x128xbf16>, vector<32x128xbf16>, vector<8x32xf32> -> vector<8x32xf32>
    %c0_15 = arith.constant 0 : index
    %c0_16 = arith.constant 0 : index
    %c0_17 = arith.constant 0 : index
    %32 = vector.load %arg3[%c0_15, %c0_16, %c0_17] : memref<2x8x32xf32, #tpu.memory_space<vmem>>, vector<1x1x32xf32>
    %33 = vector.shape_cast %32 : vector<1x1x32xf32> to vector<1x32xf32>
    %34 = vector.broadcast %33 : vector<1x32xf32> to vector<8x32xf32>
    %35 = arith.addf %31, %34 : vector<8x32xf32>
    %36 = arith.addf %0, %35 : vector<8x32xf32>
    %c0_18 = arith.constant 0 : index
    %c2 = arith.constant 2 : index
    %c0_19 = arith.constant 0 : index
    %37 = vector.load %arg3[%c0_18, %c2, %c0_19] : memref<2x8x32xf32, #tpu.memory_space<vmem>>, vector<1x1x32xf32>
    %38 = vector.shape_cast %37 : vector<1x1x32xf32> to vector<1x32xf32>
    %c0_20 = arith.constant 0 : index
    %c3 = arith.constant 3 : index
    %c0_21 = arith.constant 0 : index
    %39 = vector.load %arg3[%c0_20, %c3, %c0_21] : memref<2x8x32xf32, #tpu.memory_space<vmem>>, vector<1x1x32xf32>
    %40 = vector.shape_cast %39 : vector<1x1x32xf32> to vector<1x32xf32>
    %cst_22 = arith.constant dense<0.000000e+00> : vector<8xf32>
    %41 = vector.multi_reduction <add>, %36, %cst_22 [1] : vector<8x32xf32> to vector<8xf32>
    %42 = vector.shape_cast %41 : vector<8xf32> to vector<8x1xf32>
    %cst_23 = arith.constant 3.200000e+01 : f32
    %43 = vector.broadcast %cst_23 : f32 to vector<8x1xf32>
    %44 = arith.divf %42, %43 : vector<8x1xf32>
    %45 = vector.broadcast %44 : vector<8x1xf32> to vector<8x32xf32>
    %46 = arith.subf %36, %45 : vector<8x32xf32>
    %47 = arith.mulf %46, %46 : vector<8x32xf32>
    %cst_24 = arith.constant dense<0.000000e+00> : vector<8xf32>
    %48 = vector.multi_reduction <add>, %47, %cst_24 [1] : vector<8x32xf32> to vector<8xf32>
    %49 = vector.shape_cast %48 : vector<8xf32> to vector<8x1xf32>
    %cst_25 = arith.constant 3.200000e+01 : f32
    %50 = vector.broadcast %cst_25 : f32 to vector<8x1xf32>
    %51 = arith.divf %49, %50 : vector<8x1xf32>
    %52 = vector.broadcast %44 : vector<8x1xf32> to vector<8x32xf32>
    %53 = arith.subf %36, %52 : vector<8x32xf32>
    %cst_26 = arith.constant 9.99999974E-6 : f32
    %54 = vector.broadcast %cst_26 : f32 to vector<8x1xf32>
    %55 = arith.addf %51, %54 : vector<8x1xf32>
    %56 = math.rsqrt %55 : vector<8x1xf32>
    %57 = vector.broadcast %56 : vector<8x1xf32> to vector<8x32xf32>
    %58 = arith.mulf %53, %57 : vector<8x32xf32>
    %59 = vector.broadcast %38 : vector<1x32xf32> to vector<8x32xf32>
    %60 = arith.mulf %58, %59 : vector<8x32xf32>
    %61 = vector.broadcast %40 : vector<1x32xf32> to vector<8x32xf32>
    %62 = arith.addf %60, %61 : vector<8x32xf32>
    %63 = arith.truncf %62 : vector<8x32xf32> to vector<8x32xbf16>
    %c0_27 = arith.constant 0 : index
    %c0_28 = arith.constant 0 : index
    %c384 = arith.constant 384 : index
    %64 = vector.load %arg1[%c0_27, %c0_28, %c384] : memref<2x32x4608xbf16, #tpu.memory_space<vmem>>, vector<1x32x2048xbf16>
    %65 = vector.shape_cast %64 : vector<1x32x2048xbf16> to vector<32x2048xbf16>
    %cst_29 = arith.constant dense<0.000000e+00> : vector<8x2048xf32>
    %66 = tpu.matmul %63, %65, %cst_29 {dimension_numbers = #tpu.dot_dimension_numbers<[1], [0], [0], [1], [0, 0, 1, 1], [], []>} : vector<8x32xbf16>, vector<32x2048xbf16>, vector<8x2048xf32> -> vector<8x2048xf32>
    %c0_30 = arith.constant 0 : index
    %c0_31 = arith.constant 0 : index
    %c384_32 = arith.constant 384 : index
    %67 = vector.load %arg2[%c0_30, %c0_31, %c384_32] : memref<2x1x2432xf32, #tpu.memory_space<vmem>>, vector<1x1x2048xf32>
    %68 = vector.shape_cast %67 : vector<1x1x2048xf32> to vector<1x2048xf32>
    %69 = vector.broadcast %68 : vector<1x2048xf32> to vector<8x2048xf32>
    %70 = arith.addf %66, %69 : vector<8x2048xf32>
    %cst_33 = arith.constant 0.000000e+00 : f32
    %71 = vector.broadcast %cst_33 : f32 to vector<8x2048xf32>
    %72 = arith.maximumf %70, %71 : vector<8x2048xf32>
    %73 = arith.truncf %72 : vector<8x2048xf32> to vector<8x2048xbf16>
    %c0_34 = arith.constant 0 : index
    %c0_35 = arith.constant 0 : index
    %c2432 = arith.constant 2432 : index
    %74 = vector.load %arg1[%c0_34, %c0_35, %c2432] : memref<2x32x4608xbf16, #tpu.memory_space<vmem>>, vector<1x32x2048xbf16>
    %75 = vector.shape_cast %74 : vector<1x32x2048xbf16> to vector<32x2048xbf16>
    %cst_36 = arith.constant dense<0.000000e+00> : vector<8x32xf32>
    %76 = tpu.matmul %73, %75, %cst_36 {dimension_numbers = #tpu.dot_dimension_numbers<[1], [1], [0], [0], [0, 0, 1, 0], [], []>} : vector<8x2048xbf16>, vector<32x2048xbf16>, vector<8x32xf32> -> vector<8x32xf32>
    %c0_37 = arith.constant 0 : index
    %c1 = arith.constant 1 : index
    %c0_38 = arith.constant 0 : index
    %77 = vector.load %arg3[%c0_37, %c1, %c0_38] : memref<2x8x32xf32, #tpu.memory_space<vmem>>, vector<1x1x32xf32>
    %78 = vector.shape_cast %77 : vector<1x1x32xf32> to vector<1x32xf32>
    %79 = vector.broadcast %78 : vector<1x32xf32> to vector<8x32xf32>
    %80 = arith.addf %76, %79 : vector<8x32xf32>
    %81 = arith.addf %62, %80 : vector<8x32xf32>
    %c0_39 = arith.constant 0 : index
    %c4 = arith.constant 4 : index
    %c0_40 = arith.constant 0 : index
    %82 = vector.load %arg3[%c0_39, %c4, %c0_40] : memref<2x8x32xf32, #tpu.memory_space<vmem>>, vector<1x1x32xf32>
    %83 = vector.shape_cast %82 : vector<1x1x32xf32> to vector<1x32xf32>
    %c0_41 = arith.constant 0 : index
    %c5 = arith.constant 5 : index
    %c0_42 = arith.constant 0 : index
    %84 = vector.load %arg3[%c0_41, %c5, %c0_42] : memref<2x8x32xf32, #tpu.memory_space<vmem>>, vector<1x1x32xf32>
    %85 = vector.shape_cast %84 : vector<1x1x32xf32> to vector<1x32xf32>
    %cst_43 = arith.constant dense<0.000000e+00> : vector<8xf32>
    %86 = vector.multi_reduction <add>, %81, %cst_43 [1] : vector<8x32xf32> to vector<8xf32>
    %87 = vector.shape_cast %86 : vector<8xf32> to vector<8x1xf32>
    %cst_44 = arith.constant 3.200000e+01 : f32
    %88 = vector.broadcast %cst_44 : f32 to vector<8x1xf32>
    %89 = arith.divf %87, %88 : vector<8x1xf32>
    %90 = vector.broadcast %89 : vector<8x1xf32> to vector<8x32xf32>
    %91 = arith.subf %81, %90 : vector<8x32xf32>
    %92 = arith.mulf %91, %91 : vector<8x32xf32>
    %cst_45 = arith.constant dense<0.000000e+00> : vector<8xf32>
    %93 = vector.multi_reduction <add>, %92, %cst_45 [1] : vector<8x32xf32> to vector<8xf32>
    %94 = vector.shape_cast %93 : vector<8xf32> to vector<8x1xf32>
    %cst_46 = arith.constant 3.200000e+01 : f32
    %95 = vector.broadcast %cst_46 : f32 to vector<8x1xf32>
    %96 = arith.divf %94, %95 : vector<8x1xf32>
    %97 = vector.broadcast %89 : vector<8x1xf32> to vector<8x32xf32>
    %98 = arith.subf %81, %97 : vector<8x32xf32>
    %cst_47 = arith.constant 9.99999974E-6 : f32
    %99 = vector.broadcast %cst_47 : f32 to vector<8x1xf32>
    %100 = arith.addf %96, %99 : vector<8x1xf32>
    %101 = math.rsqrt %100 : vector<8x1xf32>
    %102 = vector.broadcast %101 : vector<8x1xf32> to vector<8x32xf32>
    %103 = arith.mulf %98, %102 : vector<8x32xf32>
    %104 = vector.broadcast %83 : vector<1x32xf32> to vector<8x32xf32>
    %105 = arith.mulf %103, %104 : vector<8x32xf32>
    %106 = vector.broadcast %85 : vector<1x32xf32> to vector<8x32xf32>
    %107 = arith.addf %105, %106 : vector<8x32xf32>
    %108 = arith.truncf %107 : vector<8x32xf32> to vector<8x32xbf16>
    %c1_48 = arith.constant 1 : index
    %c0_49 = arith.constant 0 : index
    %c0_50 = arith.constant 0 : index
    %109 = vector.load %arg1[%c1_48, %c0_49, %c0_50] : memref<2x32x4608xbf16, #tpu.memory_space<vmem>>, vector<1x32x384xbf16>
    %110 = vector.shape_cast %109 : vector<1x32x384xbf16> to vector<32x384xbf16>
    %cst_51 = arith.constant dense<0.000000e+00> : vector<8x384xf32>
    %111 = tpu.matmul %108, %110, %cst_51 {dimension_numbers = #tpu.dot_dimension_numbers<[1], [0], [0], [1], [0, 0, 1, 1], [], []>} : vector<8x32xbf16>, vector<32x384xbf16>, vector<8x384xf32> -> vector<8x384xf32>
    %c1_52 = arith.constant 1 : index
    %c0_53 = arith.constant 0 : index
    %c0_54 = arith.constant 0 : index
    %112 = vector.load %arg2[%c1_52, %c0_53, %c0_54] : memref<2x1x2432xf32, #tpu.memory_space<vmem>>, vector<1x1x384xf32>
    %113 = vector.shape_cast %112 : vector<1x1x384xf32> to vector<1x384xf32>
    %114 = vector.broadcast %113 : vector<1x384xf32> to vector<8x384xf32>
    %115 = arith.addf %111, %114 : vector<8x384xf32>
    %116 = arith.truncf %115 : vector<8x384xf32> to vector<8x384xbf16>
    %117 = vector.extract_strided_slice %116 {offsets = [0, 0], sizes = [8, 128], strides = [1, 1]} : vector<8x384xbf16> to vector<8x128xbf16>
    %118 = vector.extract_strided_slice %116 {offsets = [0, 128], sizes = [8, 128], strides = [1, 1]} : vector<8x384xbf16> to vector<8x128xbf16>
    %119 = vector.extract_strided_slice %116 {offsets = [0, 256], sizes = [8, 128], strides = [1, 1]} : vector<8x384xbf16> to vector<8x128xbf16>
    %cst_55 = arith.constant dense<0.000000e+00> : vector<8x8xf32>
    %120 = tpu.matmul %117, %118, %cst_55 {dimension_numbers = #tpu.dot_dimension_numbers<[1], [1], [0], [0], [0, 0, 1, 0], [], []>} : vector<8x128xbf16>, vector<8x128xbf16>, vector<8x8xf32> -> vector<8x8xf32>
    %cst_56 = arith.constant 0.176776692 : f32
    %121 = vector.broadcast %cst_56 : f32 to vector<8x8xf32>
    %122 = arith.mulf %120, %121 : vector<8x8xf32>
    %cst_57 = arith.constant dense<0xFF800000> : vector<8xf32>
    %123 = vector.multi_reduction <maximumf>, %122, %cst_57 [1] : vector<8x8xf32> to vector<8xf32>
    %124 = vector.shape_cast %123 : vector<8xf32> to vector<8x1xf32>
    %125 = vector.broadcast %124 : vector<8x1xf32> to vector<8x8xf32>
    %126 = arith.subf %122, %125 : vector<8x8xf32>
    %127 = math.exp %126 : vector<8x8xf32>
    %cst_58 = arith.constant dense<0.000000e+00> : vector<8xf32>
    %128 = vector.multi_reduction <add>, %127, %cst_58 [1] : vector<8x8xf32> to vector<8xf32>
    %129 = vector.shape_cast %128 : vector<8xf32> to vector<8x1xf32>
    %130 = tpu.reciprocal %129 {approx = true} : vector<8x1xf32> -> vector<8x1xf32>
    %131 = vector.broadcast %130 : vector<8x1xf32> to vector<8x8xf32>
    %132 = arith.mulf %127, %131 : vector<8x8xf32>
    %133 = arith.truncf %132 : vector<8x8xf32> to vector<8x8xbf16>
    %cst_59 = arith.constant dense<0.000000e+00> : vector<8x128xf32>
    %134 = tpu.matmul %133, %119, %cst_59 {dimension_numbers = #tpu.dot_dimension_numbers<[1], [0], [0], [1], [0, 0, 1, 1], [], []>} : vector<8x8xbf16>, vector<8x128xbf16>, vector<8x128xf32> -> vector<8x128xf32>
    %135 = arith.truncf %134 : vector<8x128xf32> to vector<8x128xbf16>
    %c1_60 = arith.constant 1 : index
    %c0_61 = arith.constant 0 : index
    %c4480_62 = arith.constant 4480 : index
    %136 = vector.load %arg1[%c1_60, %c0_61, %c4480_62] : memref<2x32x4608xbf16, #tpu.memory_space<vmem>>, vector<1x32x128xbf16>
    %137 = vector.shape_cast %136 : vector<1x32x128xbf16> to vector<32x128xbf16>
    %cst_63 = arith.constant dense<0.000000e+00> : vector<8x32xf32>
    %138 = tpu.matmul %135, %137, %cst_63 {dimension_numbers = #tpu.dot_dimension_numbers<[1], [1], [0], [0], [0, 0, 1, 0], [], []>} : vector<8x128xbf16>, vector<32x128xbf16>, vector<8x32xf32> -> vector<8x32xf32>
    %c1_64 = arith.constant 1 : index
    %c0_65 = arith.constant 0 : index
    %c0_66 = arith.constant 0 : index
    %139 = vector.load %arg3[%c1_64, %c0_65, %c0_66] : memref<2x8x32xf32, #tpu.memory_space<vmem>>, vector<1x1x32xf32>
    %140 = vector.shape_cast %139 : vector<1x1x32xf32> to vector<1x32xf32>
    %141 = vector.broadcast %140 : vector<1x32xf32> to vector<8x32xf32>
    %142 = arith.addf %138, %141 : vector<8x32xf32>
    %143 = arith.addf %107, %142 : vector<8x32xf32>
    %c1_67 = arith.constant 1 : index
    %c2_68 = arith.constant 2 : index
    %c0_69 = arith.constant 0 : index
    %144 = vector.load %arg3[%c1_67, %c2_68, %c0_69] : memref<2x8x32xf32, #tpu.memory_space<vmem>>, vector<1x1x32xf32>
    %145 = vector.shape_cast %144 : vector<1x1x32xf32> to vector<1x32xf32>
    %c1_70 = arith.constant 1 : index
    %c3_71 = arith.constant 3 : index
    %c0_72 = arith.constant 0 : index
    %146 = vector.load %arg3[%c1_70, %c3_71, %c0_72] : memref<2x8x32xf32, #tpu.memory_space<vmem>>, vector<1x1x32xf32>
    %147 = vector.shape_cast %146 : vector<1x1x32xf32> to vector<1x32xf32>
    %cst_73 = arith.constant dense<0.000000e+00> : vector<8xf32>
    %148 = vector.multi_reduction <add>, %143, %cst_73 [1] : vector<8x32xf32> to vector<8xf32>
    %149 = vector.shape_cast %148 : vector<8xf32> to vector<8x1xf32>
    %cst_74 = arith.constant 3.200000e+01 : f32
    %150 = vector.broadcast %cst_74 : f32 to vector<8x1xf32>
    %151 = arith.divf %149, %150 : vector<8x1xf32>
    %152 = vector.broadcast %151 : vector<8x1xf32> to vector<8x32xf32>
    %153 = arith.subf %143, %152 : vector<8x32xf32>
    %154 = arith.mulf %153, %153 : vector<8x32xf32>
    %cst_75 = arith.constant dense<0.000000e+00> : vector<8xf32>
    %155 = vector.multi_reduction <add>, %154, %cst_75 [1] : vector<8x32xf32> to vector<8xf32>
    %156 = vector.shape_cast %155 : vector<8xf32> to vector<8x1xf32>
    %cst_76 = arith.constant 3.200000e+01 : f32
    %157 = vector.broadcast %cst_76 : f32 to vector<8x1xf32>
    %158 = arith.divf %156, %157 : vector<8x1xf32>
    %159 = vector.broadcast %151 : vector<8x1xf32> to vector<8x32xf32>
    %160 = arith.subf %143, %159 : vector<8x32xf32>
    %cst_77 = arith.constant 9.99999974E-6 : f32
    %161 = vector.broadcast %cst_77 : f32 to vector<8x1xf32>
    %162 = arith.addf %158, %161 : vector<8x1xf32>
    %163 = math.rsqrt %162 : vector<8x1xf32>
    %164 = vector.broadcast %163 : vector<8x1xf32> to vector<8x32xf32>
    %165 = arith.mulf %160, %164 : vector<8x32xf32>
    %166 = vector.broadcast %145 : vector<1x32xf32> to vector<8x32xf32>
    %167 = arith.mulf %165, %166 : vector<8x32xf32>
    %168 = vector.broadcast %147 : vector<1x32xf32> to vector<8x32xf32>
    %169 = arith.addf %167, %168 : vector<8x32xf32>
    %170 = arith.truncf %169 : vector<8x32xf32> to vector<8x32xbf16>
    %c1_78 = arith.constant 1 : index
    %c0_79 = arith.constant 0 : index
    %c384_80 = arith.constant 384 : index
    %171 = vector.load %arg1[%c1_78, %c0_79, %c384_80] : memref<2x32x4608xbf16, #tpu.memory_space<vmem>>, vector<1x32x2048xbf16>
    %172 = vector.shape_cast %171 : vector<1x32x2048xbf16> to vector<32x2048xbf16>
    %cst_81 = arith.constant dense<0.000000e+00> : vector<8x2048xf32>
    %173 = tpu.matmul %170, %172, %cst_81 {dimension_numbers = #tpu.dot_dimension_numbers<[1], [0], [0], [1], [0, 0, 1, 1], [], []>} : vector<8x32xbf16>, vector<32x2048xbf16>, vector<8x2048xf32> -> vector<8x2048xf32>
    %c1_82 = arith.constant 1 : index
    %c0_83 = arith.constant 0 : index
    %c384_84 = arith.constant 384 : index
    %174 = vector.load %arg2[%c1_82, %c0_83, %c384_84] : memref<2x1x2432xf32, #tpu.memory_space<vmem>>, vector<1x1x2048xf32>
    %175 = vector.shape_cast %174 : vector<1x1x2048xf32> to vector<1x2048xf32>
    %176 = vector.broadcast %175 : vector<1x2048xf32> to vector<8x2048xf32>
    %177 = arith.addf %173, %176 : vector<8x2048xf32>
    %cst_85 = arith.constant 0.000000e+00 : f32
    %178 = vector.broadcast %cst_85 : f32 to vector<8x2048xf32>
    %179 = arith.maximumf %177, %178 : vector<8x2048xf32>
    %180 = arith.truncf %179 : vector<8x2048xf32> to vector<8x2048xbf16>
    %c1_86 = arith.constant 1 : index
    %c0_87 = arith.constant 0 : index
    %c2432_88 = arith.constant 2432 : index
    %181 = vector.load %arg1[%c1_86, %c0_87, %c2432_88] : memref<2x32x4608xbf16, #tpu.memory_space<vmem>>, vector<1x32x2048xbf16>
    %182 = vector.shape_cast %181 : vector<1x32x2048xbf16> to vector<32x2048xbf16>
    %cst_89 = arith.constant dense<0.000000e+00> : vector<8x32xf32>
    %183 = tpu.matmul %180, %182, %cst_89 {dimension_numbers = #tpu.dot_dimension_numbers<[1], [1], [0], [0], [0, 0, 1, 0], [], []>} : vector<8x2048xbf16>, vector<32x2048xbf16>, vector<8x32xf32> -> vector<8x32xf32>
    %c1_90 = arith.constant 1 : index
    %c1_91 = arith.constant 1 : index
    %c0_92 = arith.constant 0 : index
    %184 = vector.load %arg3[%c1_90, %c1_91, %c0_92] : memref<2x8x32xf32, #tpu.memory_space<vmem>>, vector<1x1x32xf32>
    %185 = vector.shape_cast %184 : vector<1x1x32xf32> to vector<1x32xf32>
    %186 = vector.broadcast %185 : vector<1x32xf32> to vector<8x32xf32>
    %187 = arith.addf %183, %186 : vector<8x32xf32>
    %188 = arith.addf %169, %187 : vector<8x32xf32>
    %c1_93 = arith.constant 1 : index
    %c4_94 = arith.constant 4 : index
    %c0_95 = arith.constant 0 : index
    %189 = vector.load %arg3[%c1_93, %c4_94, %c0_95] : memref<2x8x32xf32, #tpu.memory_space<vmem>>, vector<1x1x32xf32>
    %190 = vector.shape_cast %189 : vector<1x1x32xf32> to vector<1x32xf32>
    %c1_96 = arith.constant 1 : index
    %c5_97 = arith.constant 5 : index
    %c0_98 = arith.constant 0 : index
    %191 = vector.load %arg3[%c1_96, %c5_97, %c0_98] : memref<2x8x32xf32, #tpu.memory_space<vmem>>, vector<1x1x32xf32>
    %192 = vector.shape_cast %191 : vector<1x1x32xf32> to vector<1x32xf32>
    %cst_99 = arith.constant dense<0.000000e+00> : vector<8xf32>
    %193 = vector.multi_reduction <add>, %188, %cst_99 [1] : vector<8x32xf32> to vector<8xf32>
    %194 = vector.shape_cast %193 : vector<8xf32> to vector<8x1xf32>
    %cst_100 = arith.constant 3.200000e+01 : f32
    %195 = vector.broadcast %cst_100 : f32 to vector<8x1xf32>
    %196 = arith.divf %194, %195 : vector<8x1xf32>
    %197 = vector.broadcast %196 : vector<8x1xf32> to vector<8x32xf32>
    %198 = arith.subf %188, %197 : vector<8x32xf32>
    %199 = arith.mulf %198, %198 : vector<8x32xf32>
    %cst_101 = arith.constant dense<0.000000e+00> : vector<8xf32>
    %200 = vector.multi_reduction <add>, %199, %cst_101 [1] : vector<8x32xf32> to vector<8xf32>
    %201 = vector.shape_cast %200 : vector<8xf32> to vector<8x1xf32>
    %cst_102 = arith.constant 3.200000e+01 : f32
    %202 = vector.broadcast %cst_102 : f32 to vector<8x1xf32>
    %203 = arith.divf %201, %202 : vector<8x1xf32>
    %204 = vector.broadcast %196 : vector<8x1xf32> to vector<8x32xf32>
    %205 = arith.subf %188, %204 : vector<8x32xf32>
    %cst_103 = arith.constant 9.99999974E-6 : f32
    %206 = vector.broadcast %cst_103 : f32 to vector<8x1xf32>
    %207 = arith.addf %203, %206 : vector<8x1xf32>
    %208 = math.rsqrt %207 : vector<8x1xf32>
    %209 = vector.broadcast %208 : vector<8x1xf32> to vector<8x32xf32>
    %210 = arith.mulf %205, %209 : vector<8x32xf32>
    %211 = vector.broadcast %190 : vector<1x32xf32> to vector<8x32xf32>
    %212 = arith.mulf %210, %211 : vector<8x32xf32>
    %213 = vector.broadcast %192 : vector<1x32xf32> to vector<8x32xf32>
    %214 = arith.addf %212, %213 : vector<8x32xf32>
    %215 = arith.truncf %214 : vector<8x32xf32> to vector<8x32xbf16>
    %c0_104 = arith.constant 0 : index
    %c0_105 = arith.constant 0 : index
    %216 = vector.load %arg4[%c0_104, %c0_105] : memref<32x128xbf16, #tpu.memory_space<vmem>>, vector<32x128xbf16>
    %cst_106 = arith.constant dense<0.000000e+00> : vector<8x128xf32>
    %217 = tpu.matmul %215, %216, %cst_106 {dimension_numbers = #tpu.dot_dimension_numbers<[1], [0], [0], [1], [0, 0, 1, 1], [], []>} : vector<8x32xbf16>, vector<32x128xbf16>, vector<8x128xf32> -> vector<8x128xf32>
    %c0_107 = arith.constant 0 : index
    %c0_108 = arith.constant 0 : index
    %218 = vector.load %arg5[%c0_107, %c0_108] : memref<1x128xf32, #tpu.memory_space<vmem>>, vector<1x128xf32>
    %219 = vector.broadcast %218 : vector<1x128xf32> to vector<8x128xf32>
    %220 = arith.addf %217, %219 : vector<8x128xf32>
    %c0_109 = arith.constant 0 : index
    %c0_110 = arith.constant 0 : index
    %221 = vector.load %arg6[%c0_109, %c0_110] : memref<8x128xf32, #tpu.memory_space<vmem>>, vector<8x128xf32>
    tpu.vector_store %arg6[%c0_109, %c0_110], %220 {strides = array<i32>} : memref<8x128xf32, #tpu.memory_space<vmem>>, vector<8x128xf32>,
    return
  }
}

</mosaic_0001>

<llo_original>
// kernel: tpu_custom_call.1
$region0: #{tpu_custom_call.1}
  #allocation0 [shape = 'u32[]', space=smem, size = 0x4, offset = 0x4, fixed_abs, tag = 'smem constant byte address 0x4 - core index']
  #allocation1 [shape = 'u32[144,128]{1,0:T(1,128)}', space=vmem, size = 0x12000, scoped, tag = 'internal scratch']
  %s0 = inlined_call_operand.hbm [shape: f32[8,32], index: 0, kind: input, shape index: {}]
  %s1 = inlined_call_operand.hbm [shape: bf16[2,32,4608], index: 1, kind: input, shape index: {}]
  %s2 = inlined_call_operand.hbm [shape: f32[2,1,2432], index: 2, kind: input, shape index: {}]
  %s3 = inlined_call_operand.hbm [shape: f32[2,8,32], index: 3, kind: input, shape index: {}]
  %s4 = inlined_call_operand.hbm [shape: bf16[32,128], index: 4, kind: input, shape index: {}]
  %s5 = inlined_call_operand.vmem [shape: f32[1,128], index: 5, kind: input, shape index: {}]
  %s6 = inlined_call_operand.hbm [shape: f32[8,128], index: 6, kind: output, shape index: {}]
  %s7 = sld [smem:[#allocation0]]
  $region54: #{tpu_custom_call.1} parent=0
    _
  %s9 = ssub.s32 1, %s7
  %s10 = scalar_select 0, %s9, %s7
  $region1: #{tpu_custom_call.1} parent=0
    #allocation2 [shape = 'u8[4096]{0}', space=vmem, size = 0x1000, scoped, tag = 'input window, operand 0, single buffered']
    #allocation3 [shape = 's32[1]{0}', space=sflag, size = 0x4, scoped, tag = 'scoped memory for tpu_custom_call.1']
    #allocation4 [shape = 's32[1]{0}', space=sflag, size = 0x4, scoped, tag = 'scoped memory for tpu_custom_call.1']
    #allocation5 [shape = 'u8[589824]{0}', space=vmem, size = 0x90000, scoped, tag = 'input window, operand 1, single buffered']
    #allocation6 [shape = 's32[1]{0}', space=sflag, size = 0x4, scoped, tag = 'scoped memory for tpu_custom_call.1']
    #allocation7 [shape = 'u8[19456]{0}', space=vmem, size = 0x4c00, scoped, tag = 'input window, operand 2, single buffered']
    #allocation8 [shape = 'u8[8192]{0}', space=vmem, size = 0x2000, scoped, tag = 'input window, operand 3, single buffered']
    #allocation9 [shape = 's32[1]{0}', space=sflag, size = 0x4, scoped, tag = 'scoped memory for tpu_custom_call.1']
    #allocation10 [shape = 'u8[8192]{0}', space=vmem, size = 0x2000, scoped, tag = 'input window, operand 4, single buffered']
    #allocation11 [shape = 'u8[4096]{0}', space=vmem, size = 0x1000, scoped, tag = 'output window, operand 0, single buffered']
    %11 = vsyncpa [#allocation3], 0
    %12 = vsyncpa [#allocation6], 0
    %13 = vsyncpa [#allocation9], 0
    %14 = vsyncpa [#allocation4], 0
    // Predicated region
    $region2: #{tpu_custom_call.1} parent=1 // pred_check
      _
    $region3: #{tpu_custom_call.1} parent=1 // pred_check_branch
      %16 = sbr.rel (0) target = $region5
    $region4: #{tpu_custom_call.1} parent=1 // pred_region
      %s18 = ssub.s32 128, 128
      %19 = vsyncadd [#allocation3], %s18
      %s21 = sshll.u32 [#allocation2], 4
      %s22 = int_to_ptr.vmem [resolvable:$true] %s21
      %24 = dma.hbm_to_vmem [thread:$0]  %s0, 128, %s22, [#allocation3]
    $region5: #{tpu_custom_call.1} parent=1 // pred_fallthru
      _
    // Predicated region
    $region6: #{tpu_custom_call.1} parent=1 // pred_check
      _
    $region7: #{tpu_custom_call.1} parent=1 // pred_check_branch
      %26 = sbr.rel (0) target = $region9
    $region8: #{tpu_custom_call.1} parent=1 // pred_region
      %s28 = ssub.s32 18432, 18432
      %29 = vsyncadd [#allocation6], %s28
      %s30 = sshll.u32 [#allocation5], 4
      %s31 = int_to_ptr.vmem [resolvable:$true] %s30
      %36 = dma.hbm_to_vmem [thread:$0]  %s1, 18432, %s31, [#allocation6], 2304, 2304, 144
    $region9: #{tpu_custom_call.1} parent=1 // pred_fallthru
      _
    // Predicated region
    $region10: #{tpu_custom_call.1} parent=1 // pred_check
      _
    $region11: #{tpu_custom_call.1} parent=1 // pred_check_branch
      %38 = sbr.rel (0) target = $region13
    $region12: #{tpu_custom_call.1} parent=1 // pred_region
      %s40 = ssub.s32 608, 608
      %41 = vsyncadd [#allocation6], %s40
      %s42 = sshll.u32 [#allocation7], 4
      %s43 = int_to_ptr.vmem [resolvable:$true] %s42
      %48 = dma.hbm_to_vmem [thread:$0]  %s2, 608, %s43, [#allocation6], 304, 304, 19
    $region13: #{tpu_custom_call.1} parent=1 // pred_fallthru
      _
    // Predicated region
    $region14: #{tpu_custom_call.1} parent=1 // pred_check
      _
    $region15: #{tpu_custom_call.1} parent=1 // pred_check_branch
      %50 = sbr.rel (0) target = $region17
    $region16: #{tpu_custom_call.1} parent=1 // pred_region
      %s52 = ssub.s32 256, 256
      %53 = vsyncadd [#allocation9], %s52
      %s54 = sshll.u32 [#allocation8], 4
      %s55 = int_to_ptr.vmem [resolvable:$true] %s54
      %60 = dma.hbm_to_vmem [thread:$0]  %s3, 256, %s55, [#allocation9], 128, 128, 8
    $region17: #{tpu_custom_call.1} parent=1 // pred_fallthru
      _
    // Predicated region
    $region18: #{tpu_custom_call.1} parent=1 // pred_check
      _
    $region19: #{tpu_custom_call.1} parent=1 // pred_check_branch
      %62 = sbr.rel (0) target = $region21
    $region20: #{tpu_custom_call.1} parent=1 // pred_region
      %s64 = ssub.s32 256, 256
      %65 = vsyncadd [#allocation9], %s64
      %s66 = sshll.u32 [#allocation10], 4
      %s67 = int_to_ptr.vmem [resolvable:$true] %s66
      %72 = dma.hbm_to_vmem [thread:$0]  %s4, 256, %s67, [#allocation9], 64, 64, 4
    $region21: #{tpu_custom_call.1} parent=1 // pred_fallthru
      _
    // Predicated region
    $region22: #{tpu_custom_call.1} parent=1 // pred_check
      _
    $region23: #{tpu_custom_call.1} parent=1 // pred_check_branch
      %74 = sbr.rel (0) target = $region25
    $region24: #{tpu_custom_call.1} parent=1 // pred_region
      _
    $region25: #{tpu_custom_call.1} parent=1 // pred_fallthru
      _
    // Predicated region
    $region26: #{tpu_custom_call.1} parent=1 // pred_check
      _
    $region27: #{tpu_custom_call.1} parent=1 // pred_check_branch
      %76 = sbr.rel (0) target = $region29
    $region28: #{tpu_custom_call.1} parent=1 // pred_region
      %77 = dma.done [#allocation3], 128
    $region29: #{tpu_custom_call.1} parent=1 // pred_fallthru
      _
    // Predicated region
    $region30: #{tpu_custom_call.1} parent=1 // pred_check
      _
    $region31: #{tpu_custom_call.1} parent=1 // pred_check_branch
      %79 = sbr.rel (0) target = $region33
    $region32: #{tpu_custom_call.1} parent=1 // pred_region
      %80 = dma.done [#allocation6], 18432
    $region33: #{tpu_custom_call.1} parent=1 // pred_fallthru
      _
    // Predicated region
    $region34: #{tpu_custom_call.1} parent=1 // pred_check
      _
    $region35: #{tpu_custom_call.1} parent=1 // pred_check_branch
      %82 = sbr.rel (0) target = $region37
    $region36: #{tpu_custom_call.1} parent=1 // pred_region
      %83 = dma.done [#allocation6], 608
    $region37: #{tpu_custom_call.1} parent=1 // pred_fallthru
      _
    // Predicated region
    $region38: #{tpu_custom_call.1} parent=1 // pred_check
      _
    $region39: #{tpu_custom_call.1} parent=1 // pred_check_branch
      %85 = sbr.rel (0) target = $region41
    $region40: #{tpu_custom_call.1} parent=1 // pred_region
      %86 = dma.done [#allocation9], 256
    $region41: #{tpu_custom_call.1} parent=1 // pred_fallthru
      _
    // Predicated region
    $region42: #{tpu_custom_call.1} parent=1 // pred_check
      _
    $region43: #{tpu_custom_call.1} parent=1 // pred_check_branch
      %88 = sbr.rel (0) target = $region45
    $region44: #{tpu_custom_call.1} parent=1 // pred_region
      %89 = dma.done [#allocation9], 256
    $region45: #{tpu_custom_call.1} parent=1 // pred_fallthru
      _
    %v91 = vld [vmem:[#allocation2] sm:$0xff]
    %v92 = vpack.c.bf16 %v91, %v91
    %v93 = vld [vmem:[#allocation5] sm:$0xff]
    %v94 = vld [vmem:[#allocation5 + $0x8] sm:$0xf]
    %v95 = vld [vmem:[#allocation5 + $0x90] sm:$0xff]
    %v96 = vld [vmem:[#allocation5 + $0x98] sm:$0xf]
    %v97 = vld [vmem:[#allocation5 + $0x120] sm:$0xff]
    %v98 = vld [vmem:[#allocation5 + $0x128] sm:$0xf]
    %v99 = vld [vmem:[#allocation5 + $0x1b0] sm:$0xff]
    %v100 = vld [vmem:[#allocation5 + $0x1b8] sm:$0xf]
    %v101 = vld [vmem:[#allocation7] sm:$0x7]
    %v103 = vlaneseq
    %v104 = vshrl.u32 %v103, 7
    %v105 = vsub.s32 0, %v104
    %v106 = vrot.slane %v101, %v105
    %v107 = vlaneseq
    %v108 = vshrl.u32 %v107, 7
    %v109 = vsub.s32 1, %v108
    %v110 = vrot.slane %v101, %v109
    %v111 = vlaneseq
    %v112 = vshrl.u32 %v111, 7
    %v113 = vsub.s32 2, %v112
    %v114 = vrot.slane %v101, %v113
    %v126 = vunpack.c.l.b16 %v93
    %v127 = vunpack.c.h.b16 %v93
    %v128 = vunpack.c.l.b16 %v94
    %v129 = vunpack.c.l.b16 %v95
    %v130 = vunpack.c.h.b16 %v95
    %v131 = vunpack.c.l.b16 %v96
    %v132 = vunpack.c.l.b16 %v97
    %v133 = vunpack.c.h.b16 %v97
    %v134 = vunpack.c.l.b16 %v98
    %v135 = vunpack.c.l.b16 %v99
    %v136 = vunpack.c.h.b16 %v99
    %v137 = vunpack.c.l.b16 %v100
    %v138 = vpack.c.b16 %v129, %v126
    %v139 = vpack.c.b16 %v130, %v127
    %v140 = vpack.c.b16 %v131, %v128
    %v141 = vpack.c.b16 %v135, %v132
    %v142 = vpack.c.b16 %v136, %v133
    %v143 = vpack.c.b16 %v137, %v134
    %vm150 = vcmask 261120
    %v152 = vsel %vm150, %v92, 0
    %154 = vmatprep.subr.bf16.mxu0 %v139
    %155 = vmatpush1.bf16.msra.mxu0 %v138
    %156 = vmatprep.subr.bf16.mxu0 %v142
    %157 = vmatpush1.bf16.msra.mxu0 %v141
    %158 = vmatprep.subr.bf16.mxu0 0
    %159 = vmatpush1.bf16.msra.mxu0 0
    %160 = vmatprep.subr.bf16.mxu0 0
    %161 = vmatpush1.bf16.msra.mxu0 0
    %162 = vmatprep.subr.bf16.mxu0 0
    %163 = vmatpush1.bf16.msra.mxu0 0
    %164 = vmatprep.subr.bf16.mxu0 0
    %165 = vmatpush1.bf16.msra.mxu0 0
    %166 = vmatprep.subr.bf16.mxu0 0
    %167 = vmatpush1.bf16.msra.mxu0 0
    %168 = vmatprep.subr.bf16.mxu0 0
    %169 = vmatpush1.bf16.msra.mxu0 0
    %170 = vmatprep.subr.bf16.mxu0 0
    %171 = vmatpush1.bf16.msra.mxu0 0
    %172 = vmatprep.subr.bf16.mxu0 0
    %173 = vmatpush1.bf16.msra.mxu0 0
    %174 = vmatprep.subr.bf16.mxu0 0
    %175 = vmatpush1.bf16.msra.mxu0 0
    %176 = vmatprep.subr.bf16.mxu0 0
    %177 = vmatpush1.bf16.msra.mxu0 0
    %178 = vmatprep.subr.bf16.mxu0 0
    %179 = vmatpush1.bf16.msra.mxu0 0
    %180 = vmatprep.subr.bf16.mxu0 0
    %181 = vmatpush1.bf16.msra.mxu0 0
    %182 = vmatprep.subr.bf16.mxu0 0
    %183 = vmatpush1.bf16.msra.mxu0 0
    %184 = vmatprep.subr.bf16.mxu0 0
    %185 = vmatpush1.bf16.msra.mxu0 0
    %186 = vmatprep.mubr.bf16.mxu0 0
    %187 = vmatmul.mubr.bf16.gmra.mrb[0].mxu0 %v152
    %v188 = vpop.f32.mrb[0].mxu0
    %v189 = vadd.f32 %v106, %v188
    %v190 = vpop.f32.mrb[0].mxu0
    %v191 = vadd.f32 %v110, %v190
    %v192 = vpop.f32.mrb[0].mxu0
    %v193 = vpop.f32.mrb[0].mxu0
    %194 = vdwg.mxu0
    %195 = vmatprep.subr.bf16.mxu0 0
    %196 = vmatpush1.bf16.msra.mxu0 %v140
    %197 = vmatprep.subr.bf16.mxu0 0
    %198 = vmatpush1.bf16.msra.mxu0 %v143
    %199 = vmatprep.subr.bf16.mxu0 0
    %200 = vmatpush1.bf16.msra.mxu0 0
    %201 = vmatprep.subr.bf16.mxu0 0
    %202 = vmatpush1.bf16.msra.mxu0 0
    %203 = vmatprep.subr.bf16.mxu0 0
    %204 = vmatpush1.bf16.msra.mxu0 0
    %205 = vmatprep.subr.bf16.mxu0 0
    %206 = vmatpush1.bf16.msra.mxu0 0
    %207 = vmatprep.subr.bf16.mxu0 0
    %208 = vmatpush1.bf16.msra.mxu0 0
    %209 = vmatprep.subr.bf16.mxu0 0
    %210 = vmatpush1.bf16.msra.mxu0 0
    %211 = vmatprep.subr.bf16.mxu0 0
    %212 = vmatpush1.bf16.msra.mxu0 0
    %213 = vmatprep.subr.bf16.mxu0 0
    %214 = vmatpush1.bf16.msra.mxu0 0
    %215 = vmatprep.subr.bf16.mxu0 0
    %216 = vmatpush1.bf16.msra.mxu0 0
    %217 = vmatprep.subr.bf16.mxu0 0
    %218 = vmatpush1.bf16.msra.mxu0 0
    %219 = vmatprep.subr.bf16.mxu0 0
    %220 = vmatpush1.bf16.msra.mxu0 0
    %221 = vmatprep.subr.bf16.mxu0 0
    %222 = vmatpush1.bf16.msra.mxu0 0
    %223 = vmatprep.subr.bf16.mxu0 0
    %224 = vmatpush1.bf16.msra.mxu0 0
    %225 = vmatprep.subr.bf16.mxu0 0
    %226 = vmatpush1.bf16.msra.mxu0 0
    %227 = vmatprep.mubr.bf16.mxu0 0
    %228 = vmatmul.mubr.bf16.gmra.mrb[0].mxu0 %v152
    %v229 = vpop.f32.mrb[0].mxu0
    %v230 = vadd.f32 %v114, %v229
    %v231 = vpop.f32.mrb[0].mxu0
    %v232 = vpop.f32.mrb[0].mxu0
    %v233 = vpop.f32.mrb[0].mxu0
    %234 = vdwg.mxu0
    %v235 = vpack.c.bf16 %v189, %v189
    %v236 = vpack.c.bf16 %v191, %v191
    %v237 = vpack.c.bf16 %v230, %v230
    %238 = vmatprep.subr.bf16.mxu0 0
    %239 = vmatpush1.bf16.xpose.msra.mxu0 %v236
    %240 = vmatprep.subr.bf16.mxu0 0
    %241 = vmatpush1.bf16.xpose.msra.mxu0 0
    %242 = vmatprep.subr.bf16.mxu0 0
    %243 = vmatpush1.bf16.xpose.msra.mxu0 0
    %244 = vmatprep.subr.bf16.mxu0 0
    %245 = vmatpush1.bf16.xpose.msra.mxu0 0
    %246 = vmatprep.subr.bf16.mxu0 0
    %247 = vmatpush1.bf16.xpose.msra.mxu0 0
    %248 = vmatprep.subr.bf16.mxu0 0
    %249 = vmatpush1.bf16.xpose.msra.mxu0 0
    %250 = vmatprep.subr.bf16.mxu0 0
    %251 = vmatpush1.bf16.xpose.msra.mxu0 0
    %252 = vmatprep.subr.bf16.mxu0 0
    %253 = vmatpush1.bf16.xpose.msra.mxu0 0
    %254 = vmatprep.subr.bf16.mxu0 0
    %255 = vmatpush1.bf16.xpose.msra.mxu0 0
    %256 = vmatprep.subr.bf16.mxu0 0
    %257 = vmatpush1.bf16.xpose.msra.mxu0 0
    %258 = vmatprep.subr.bf16.mxu0 0
    %259 = vmatpush1.bf16.xpose.msra.mxu0 0
    %260 = vmatprep.subr.bf16.mxu0 0
    %261 = vmatpush1.bf16.xpose.msra.mxu0 0
    %262 = vmatprep.subr.bf16.mxu0 0
    %263 = vmatpush1.bf16.xpose.msra.mxu0 0
    %264 = vmatprep.subr.bf16.mxu0 0
    %265 = vmatpush1.bf16.xpose.msra.mxu0 0
    %266 = vmatprep.subr.bf16.mxu0 0
    %267 = vmatpush1.bf16.xpose.msra.mxu0 0
    %268 = vmatprep.subr.bf16.mxu0 0
    %269 = vmatpush1.bf16.xpose.msra.mxu0 0
    %270 = vmatprep.mubr.bf16.mxu0 0
    %271 = vmatmul.mubr.bf16.gmra.mrb[0].mxu0 %v235
    %v272 = vpop.f32.mrb[0].mxu0
    %v273 = vadd.f32 0.0, %v272
    %v274 = vpop.f32.mrb[0].mxu0
    %v275 = vpop.f32.mrb[0].mxu0
    %v276 = vpop.f32.mrb[0].mxu0
    %277 = vdwg.mxu0
    %v278 = vmul.f32 %v273, 0.17677669
    %vm279 = vcmask 64512
    %v280 = vsel %vm279, %v278, -inf
    %281 = vmax.xlane.f32.xlu0 %v280
    %v282 = vpop.xlane.xlu0 %281
    %v283 = vsub.f32 %v278, %v282
    %v284 = vmul.f32 %v283, 1.442695
    %v285 = vpow.pop %v284
    %v286 = vsel %vm279, %v285, 0.0
    %287 = vadd.xlane.f32.xlu0 %v286
    %v288 = vpop.xlane.xlu0 %287
    %v289 = vrcp.pop %v288
    %v290 = vmul.f32 %v285, %v289
    %v291 = vpack.c.bf16 %v290, %v290
    %v293 = vsel %vm279, %v291, 0
    %vm295 = vcmask 1043456
    %v297 = vsel %vm295, %v237, 0
    %299 = vmatprep.subr.bf16.mxu0 0
    %300 = vmatpush1.bf16.msra.mxu0 %v297
    %301 = vmatprep.subr.bf16.mxu0 0
    %302 = vmatpush1.bf16.msra.mxu0 0
    %303 = vmatprep.subr.bf16.mxu0 0
    %304 = vmatpush1.bf16.msra.mxu0 0
    %305 = vmatprep.subr.bf16.mxu0 0
    %306 = vmatpush1.bf16.msra.mxu0 0
    %307 = vmatprep.subr.bf16.mxu0 0
    %308 = vmatpush1.bf16.msra.mxu0 0
    %309 = vmatprep.subr.bf16.mxu0 0
    %310 = vmatpush1.bf16.msra.mxu0 0
    %311 = vmatprep.subr.bf16.mxu0 0
    %312 = vmatpush1.bf16.msra.mxu0 0
    %313 = vmatprep.subr.bf16.mxu0 0
    %314 = vmatpush1.bf16.msra.mxu0 0
    %315 = vmatprep.subr.bf16.mxu0 0
    %316 = vmatpush1.bf16.msra.mxu0 0
    %317 = vmatprep.subr.bf16.mxu0 0
    %318 = vmatpush1.bf16.msra.mxu0 0
    %319 = vmatprep.subr.bf16.mxu0 0
    %320 = vmatpush1.bf16.msra.mxu0 0
    %321 = vmatprep.subr.bf16.mxu0 0
    %322 = vmatpush1.bf16.msra.mxu0 0
    %323 = vmatprep.subr.bf16.mxu0 0
    %324 = vmatpush1.bf16.msra.mxu0 0
    %325 = vmatprep.subr.bf16.mxu0 0
    %326 = vmatpush1.bf16.msra.mxu0 0
    %327 = vmatprep.subr.bf16.mxu0 0
    %328 = vmatpush1.bf16.msra.mxu0 0
    %329 = vmatprep.subr.bf16.mxu0 0
    %330 = vmatpush1.bf16.msra.mxu0 0
    %331 = vmatprep.mubr.bf16.mxu0 0
    %332 = vmatmul.mubr.bf16.gmra.mrb[0].mxu0 %v293
    %v333 = vpop.f32.mrb[0].mxu0
    %v334 = vadd.f32 0.0, %v333
    %v335 = vpop.f32.mrb[0].mxu0
    %v336 = vpop.f32.mrb[0].mxu0
    %v337 = vpop.f32.mrb[0].mxu0
    %338 = vdwg.mxu0
    %v339 = vpack.c.bf16 %v334, %v334
    %v340 = vld [vmem:[#allocation5 + $0x8c] sm:$0xf]
    %v341 = vld [vmem:[#allocation5 + $0x11c] sm:$0xf]
    %v342 = vld [vmem:[#allocation5 + $0x1ac] sm:$0xf]
    %v343 = vld [vmem:[#allocation5 + $0x23c] sm:$0xf]
    %v344 = vld [vmem:[#allocation8] sm:$0x1]
    %v345 = vlaneseq
    %v346 = vshrl.u32 %v345, 7
    %v347 = vsub.s32 0, %v346
    %v348 = vrot.slane %v344, %v347
    %v353 = vunpack.c.l.b16 %v340
    %v354 = vunpack.c.l.b16 %v341
    %v355 = vunpack.c.l.b16 %v342
    %v356 = vunpack.c.l.b16 %v343
    %v357 = vpack.c.b16 %v354, %v353
    %v358 = vpack.c.b16 %v356, %v355
    %361 = vmatprep.subr.bf16.mxu0 0
    %362 = vmatpush1.bf16.xpose.msra.mxu0 %v357
    %363 = vmatprep.subr.bf16.mxu0 0
    %364 = vmatpush1.bf16.xpose.msra.mxu0 %v358
    %365 = vmatprep.subr.bf16.mxu0 0
    %366 = vmatpush1.bf16.xpose.msra.mxu0 0
    %367 = vmatprep.subr.bf16.mxu0 0
    %368 = vmatpush1.bf16.xpose.msra.mxu0 0
    %369 = vmatprep.subr.bf16.mxu0 0
    %370 = vmatpush1.bf16.xpose.msra.mxu0 0
    %371 = vmatprep.subr.bf16.mxu0 0
    %372 = vmatpush1.bf16.xpose.msra.mxu0 0
    %373 = vmatprep.subr.bf16.mxu0 0
    %374 = vmatpush1.bf16.xpose.msra.mxu0 0
    %375 = vmatprep.subr.bf16.mxu0 0
    %376 = vmatpush1.bf16.xpose.msra.mxu0 0
    %377 = vmatprep.subr.bf16.mxu0 0
    %378 = vmatpush1.bf16.xpose.msra.mxu0 0
    %379 = vmatprep.subr.bf16.mxu0 0
    %380 = vmatpush1.bf16.xpose.msra.mxu0 0
    %381 = vmatprep.subr.bf16.mxu0 0
    %382 = vmatpush1.bf16.xpose.msra.mxu0 0
    %383 = vmatprep.subr.bf16.mxu0 0
    %384 = vmatpush1.bf16.xpose.msra.mxu0 0
    %385 = vmatprep.subr.bf16.mxu0 0
    %386 = vmatpush1.bf16.xpose.msra.mxu0 0
    %387 = vmatprep.subr.bf16.mxu0 0
    %388 = vmatpush1.bf16.xpose.msra.mxu0 0
    %389 = vmatprep.subr.bf16.mxu0 0
    %390 = vmatpush1.bf16.xpose.msra.mxu0 0
    %391 = vmatprep.subr.bf16.mxu0 0
    %392 = vmatpush1.bf16.xpose.msra.mxu0 0
    %393 = vmatprep.mubr.bf16.mxu0 0
    %394 = vmatmul.mubr.bf16.gmra.mrb[0].mxu0 %v339
    %v395 = vpop.f32.mrb[0].mxu0
    %v396 = vadd.f32 %v348, %v395
    %v397 = vpop.f32.mrb[0].mxu0
    %v398 = vpop.f32.mrb[0].mxu0
    %v399 = vpop.f32.mrb[0].mxu0
    %400 = vdwg.mxu0
    %v401 = vadd.f32 %v91, %v396
    %v402 = vld [vmem:[#allocation8 + $0x2] sm:$0x1]
    %v403 = vld [vmem:[#allocation8 + $0x3] sm:$0x1]
    %v404 = vsel %vm150, %v401, 0.0
    %405 = vadd.xlane.f32.xlu0 %v404
    %v406 = vpop.xlane.xlu0 %405
    %v407 = vrcp.pop 32.0
    %v408 = vmul.f32 %v406, %v407
    %v409 = vsub.f32 %v401, %v408
    %v410 = vmul.f32 %v409, %v409
    %v411 = vsel %vm150, %v410, 0.0
    %412 = vadd.xlane.f32.xlu0 %v411
    %v413 = vpop.xlane.xlu0 %412
    %v414 = vmul.f32 %v413, %v407
    %v415 = vadd.f32 %v414, 1e-05
    %v416 = vrsqrt.pop %v415
    %v417 = vmul.f32 %v409, %v416
    %v418 = vlaneseq
    %v419 = vshrl.u32 %v418, 7
    %v420 = vsub.s32 0, %v419
    %v421 = vrot.slane %v402, %v420
    %v422 = vmul.f32 %v417, %v421
    %v423 = vlaneseq
    %v424 = vshrl.u32 %v423, 7
    %v425 = vsub.s32 0, %v424
    %v426 = vrot.slane %v403, %v425
    %v427 = vadd.f32 %v422, %v426
    %v428 = vpack.c.bf16 %v427, %v427
    %v429 = vld [vmem:[#allocation5 + $0xc] sm:$0xff]
    %v430 = vld [vmem:[#allocation5 + $0x14] sm:$0xff]
    %v431 = vld [vmem:[#allocation5 + $0x1c] sm:$0xff]
    %v432 = vld [vmem:[#allocation5 + $0x24] sm:$0xff]
    %v433 = vld [vmem:[#allocation5 + $0x2c] sm:$0xff]
    %v434 = vld [vmem:[#allocation5 + $0x34] sm:$0xff]
    %v435 = vld [vmem:[#allocation5 + $0x3c] sm:$0xff]
    %v436 = vld [vmem:[#allocation5 + $0x44] sm:$0xff]
    %v437 = vld [vmem:[#allocation5 + $0x9c] sm:$0xff]
    %v438 = vld [vmem:[#allocation5 + $0xa4] sm:$0xff]
    %v439 = vld [vmem:[#allocation5 + $0xac] sm:$0xff]
    %v440 = vld [vmem:[#allocation5 + $0xb4] sm:$0xff]
    %v441 = vld [vmem:[#allocation5 + $0xbc] sm:$0xff]
    %v442 = vld [vmem:[#allocation5 + $0xc4] sm:$0xff]
    %v443 = vld [vmem:[#allocation5 + $0xcc] sm:$0xff]
    %v444 = vld [vmem:[#allocation5 + $0xd4] sm:$0xff]
    %v445 = vld [vmem:[#allocation5 + $0x12c] sm:$0xff]
    %v446 = vld [vmem:[#allocation5 + $0x134] sm:$0xff]
    %v447 = vld [vmem:[#allocation5 + $0x13c] sm:$0xff]
    %v448 = vld [vmem:[#allocation5 + $0x144] sm:$0xff]
    %v449 = vld [vmem:[#allocation5 + $0x14c] sm:$0xff]
    %v450 = vld [vmem:[#allocation5 + $0x154] sm:$0xff]
    %v451 = vld [vmem:[#allocation5 + $0x15c] sm:$0xff]
    %v452 = vld [vmem:[#allocation5 + $0x164] sm:$0xff]
    %v453 = vld [vmem:[#allocation5 + $0x1bc] sm:$0xff]
    %v454 = vld [vmem:[#allocation5 + $0x1c4] sm:$0xff]
    %v455 = vld [vmem:[#allocation5 + $0x1cc] sm:$0xff]
    %v456 = vld [vmem:[#allocation5 + $0x1d4] sm:$0xff]
    %v457 = vld [vmem:[#allocation5 + $0x1dc] sm:$0xff]
    %v458 = vld [vmem:[#allocation5 + $0x1e4] sm:$0xff]
    %v459 = vld [vmem:[#allocation5 + $0x1ec] sm:$0xff]
    %v460 = vld [vmem:[#allocation5 + $0x1f4] sm:$0xff]
    %v461 = vld [vmem:[#allocation7 + $0x3] sm:$0xff]
    %v462 = vld [vmem:[#allocation7 + $0xb] sm:$0xff]
    %v465 = vlaneseq
    %v466 = vshrl.u32 %v465, 7
    %v467 = vsub.s32 0, %v466
    %v468 = vrot.slane %v461, %v467
    %v469 = vlaneseq
    %v470 = vshrl.u32 %v469, 7
    %v471 = vsub.s32 1, %v470
    %v472 = vrot.slane %v461, %v471
    %v473 = vlaneseq
    %v474 = vshrl.u32 %v473, 7
    %v475 = vsub.s32 2, %v474
    %v476 = vrot.slane %v461, %v475
    %v477 = vlaneseq
    %v478 = vshrl.u32 %v477, 7
    %v479 = vsub.s32 3, %v478
    %v480 = vrot.slane %v461, %v479
    %v481 = vlaneseq
    %v482 = vshrl.u32 %v481, 7
    %v483 = vsub.s32 4, %v482
    %v484 = vrot.slane %v461, %v483
    %v485 = vlaneseq
    %v486 = vshrl.u32 %v485, 7
    %v487 = vsub.s32 5, %v486
    %v488 = vrot.slane %v461, %v487
    %v489 = vlaneseq
    %v490 = vshrl.u32 %v489, 7
    %v491 = vsub.s32 6, %v490
    %v492 = vrot.slane %v461, %v491
    %v493 = vlaneseq
    %v494 = vshrl.u32 %v493, 7
    %v495 = vsub.s32 7, %v494
    %v496 = vrot.slane %v461, %v495
    %v497 = vlaneseq
    %v498 = vshrl.u32 %v497, 7
    %v499 = vsub.s32 0, %v498
    %v500 = vrot.slane %v462, %v499
    %v501 = vlaneseq
    %v502 = vshrl.u32 %v501, 7
    %v503 = vsub.s32 1, %v502
    %v504 = vrot.slane %v462, %v503
    %v505 = vlaneseq
    %v506 = vshrl.u32 %v505, 7
    %v507 = vsub.s32 2, %v506
    %v508 = vrot.slane %v462, %v507
    %v509 = vlaneseq
    %v510 = vshrl.u32 %v509, 7
    %v511 = vsub.s32 3, %v510
    %v512 = vrot.slane %v462, %v511
    %v513 = vlaneseq
    %v514 = vshrl.u32 %v513, 7
    %v515 = vsub.s32 4, %v514
    %v516 = vrot.slane %v462, %v515
    %v517 = vlaneseq
    %v518 = vshrl.u32 %v517, 7
    %v519 = vsub.s32 5, %v518
    %v520 = vrot.slane %v462, %v519
    %v521 = vlaneseq
    %v522 = vshrl.u32 %v521, 7
    %v523 = vsub.s32 6, %v522
    %v524 = vrot.slane %v462, %v523
    %v525 = vlaneseq
    %v526 = vshrl.u32 %v525, 7
    %v527 = vsub.s32 7, %v526
    %v528 = vrot.slane %v462, %v527
    %v577 = vunpack.c.l.b16 %v429
    %v578 = vunpack.c.h.b16 %v429
    %v579 = vunpack.c.l.b16 %v430
    %v580 = vunpack.c.h.b16 %v430
    %v581 = vunpack.c.l.b16 %v431
    %v582 = vunpack.c.h.b16 %v431
    %v583 = vunpack.c.l.b16 %v432
    %v584 = vunpack.c.h.b16 %v432
    %v585 = vunpack.c.l.b16 %v433
    %v586 = vunpack.c.h.b16 %v433
    %v587 = vunpack.c.l.b16 %v434
    %v588 = vunpack.c.h.b16 %v434
    %v589 = vunpack.c.l.b16 %v435
    %v590 = vunpack.c.h.b16 %v435
    %v591 = vunpack.c.l.b16 %v436
    %v592 = vunpack.c.h.b16 %v436
    %v593 = vunpack.c.l.b16 %v437
    %v594 = vunpack.c.h.b16 %v437
    %v595 = vunpack.c.l.b16 %v438
    %v596 = vunpack.c.h.b16 %v438
    %v597 = vunpack.c.l.b16 %v439
    %v598 = vunpack.c.h.b16 %v439
    %v599 = vunpack.c.l.b16 %v440
    %v600 = vunpack.c.h.b16 %v440
    %v601 = vunpack.c.l.b16 %v441
    %v602 = vunpack.c.h.b16 %v441
    %v603 = vunpack.c.l.b16 %v442
    %v604 = vunpack.c.h.b16 %v442
    %v605 = vunpack.c.l.b16 %v443
    %v606 = vunpack.c.h.b16 %v443
    %v607 = vunpack.c.l.b16 %v444
    %v608 = vunpack.c.h.b16 %v444
    %v609 = vunpack.c.l.b16 %v445
    %v610 = vunpack.c.h.b16 %v445
    %v611 = vunpack.c.l.b16 %v446
    %v612 = vunpack.c.h.b16 %v446
    %v613 = vunpack.c.l.b16 %v447
    %v614 = vunpack.c.h.b16 %v447
    %v615 = vunpack.c.l.b16 %v448
    %v616 = vunpack.c.h.b16 %v448
    %v617 = vunpack.c.l.b16 %v449
    %v618 = vunpack.c.h.b16 %v449
    %v619 = vunpack.c.l.b16 %v450
    %v620 = vunpack.c.h.b16 %v450
    %v621 = vunpack.c.l.b16 %v451
    %v622 = vunpack.c.h.b16 %v451
    %v623 = vunpack.c.l.b16 %v452
    %v624 = vunpack.c.h.b16 %v452
    %v625 = vunpack.c.l.b16 %v453
    %v626 = vunpack.c.h.b16 %v453
    %v627 = vunpack.c.l.b16 %v454
    %v628 = vunpack.c.h.b16 %v454
    %v629 = vunpack.c.l.b16 %v455
    %v630 = vunpack.c.h.b16 %v455
    %v631 = vunpack.c.l.b16 %v456
    %v632 = vunpack.c.h.b16 %v456
    %v633 = vunpack.c.l.b16 %v457
    %v634 = vunpack.c.h.b16 %v457
    %v635 = vunpack.c.l.b16 %v458
    %v636 = vunpack.c.h.b16 %v458
    %v637 = vunpack.c.l.b16 %v459
    %v638 = vunpack.c.h.b16 %v459
    %v639 = vunpack.c.l.b16 %v460
    %v640 = vunpack.c.h.b16 %v460
    %v641 = vpack.c.b16 %v593, %v577
    %v642 = vpack.c.b16 %v594, %v578
    %v643 = vpack.c.b16 %v595, %v579
    %v644 = vpack.c.b16 %v596, %v580
    %v645 = vpack.c.b16 %v597, %v581
    %v646 = vpack.c.b16 %v598, %v582
    %v647 = vpack.c.b16 %v599, %v583
    %v648 = vpack.c.b16 %v600, %v584
    %v649 = vpack.c.b16 %v601, %v585
    %v650 = vpack.c.b16 %v602, %v586
    %v651 = vpack.c.b16 %v603, %v587
    %v652 = vpack.c.b16 %v604, %v588
    %v653 = vpack.c.b16 %v605, %v589
    %v654 = vpack.c.b16 %v606, %v590
    %v655 = vpack.c.b16 %v607, %v591
    %v656 = vpack.c.b16 %v608, %v592
    %v657 = vpack.c.b16 %v625, %v609
    %v658 = vpack.c.b16 %v626, %v610
    %v659 = vpack.c.b16 %v627, %v611
    %v660 = vpack.c.b16 %v628, %v612
    %v661 = vpack.c.b16 %v629, %v613
    %v662 = vpack.c.b16 %v630, %v614
    %v663 = vpack.c.b16 %v631, %v615
    %v664 = vpack.c.b16 %v632, %v616
    %v665 = vpack.c.b16 %v633, %v617
    %v666 = vpack.c.b16 %v634, %v618
    %v667 = vpack.c.b16 %v635, %v619
    %v668 = vpack.c.b16 %v636, %v620
    %v669 = vpack.c.b16 %v637, %v621
    %v670 = vpack.c.b16 %v638, %v622
    %v671 = vpack.c.b16 %v639, %v623
    %v672 = vpack.c.b16 %v640, %v624
    %v706 = vsel %vm150, %v428, 0
    %708 = vmatprep.subr.bf16.mxu0 %v642
    %709 = vmatpush1.bf16.msra.mxu0 %v641
    %710 = vmatprep.subr.bf16.mxu0 %v658
    %711 = vmatpush1.bf16.msra.mxu0 %v657
    %712 = vmatprep.subr.bf16.mxu0 0
    %713 = vmatpush1.bf16.msra.mxu0 0
    %714 = vmatprep.subr.bf16.mxu0 0
    %715 = vmatpush1.bf16.msra.mxu0 0
    %716 = vmatprep.subr.bf16.mxu0 0
    %717 = vmatpush1.bf16.msra.mxu0 0
    %718 = vmatprep.subr.bf16.mxu0 0
    %719 = vmatpush1.bf16.msra.mxu0 0
    %720 = vmatprep.subr.bf16.mxu0 0
    %721 = vmatpush1.bf16.msra.mxu0 0
    %722 = vmatprep.subr.bf16.mxu0 0
    %723 = vmatpush1.bf16.msra.mxu0 0
    %724 = vmatprep.subr.bf16.mxu0 0
    %725 = vmatpush1.bf16.msra.mxu0 0
    %726 = vmatprep.subr.bf16.mxu0 0
    %727 = vmatpush1.bf16.msra.mxu0 0
    %728 = vmatprep.subr.bf16.mxu0 0
    %729 = vmatpush1.bf16.msra.mxu0 0
    %730 = vmatprep.subr.bf16.mxu0 0
    %731 = vmatpush1.bf16.msra.mxu0 0
    %732 = vmatprep.subr.bf16.mxu0 0
    %733 = vmatpush1.bf16.msra.mxu0 0
    %734 = vmatprep.subr.bf16.mxu0 0
    %735 = vmatpush1.bf16.msra.mxu0 0
    %736 = vmatprep.subr.bf16.mxu0 0
    %737 = vmatpush1.bf16.msra.mxu0 0
    %738 = vmatprep.subr.bf16.mxu0 0
    %739 = vmatpush1.bf16.msra.mxu0 0
    %740 = vmatprep.mubr.bf16.mxu0 0
    %741 = vmatmul.mubr.bf16.gmra.mrb[0].mxu0 %v706
    %v742 = vpop.f32.mrb[0].mxu0
    %v743 = vadd.f32 %v468, %v742
    %v744 = vpop.f32.mrb[0].mxu0
    %v745 = vadd.f32 %v472, %v744
    %v746 = vpop.f32.mrb[0].mxu0
    %v747 = vpop.f32.mrb[0].mxu0
    %748 = vdwg.mxu0
    %749 = vmatprep.subr.bf16.mxu0 %v644
    %750 = vmatpush1.bf16.msra.mxu0 %v643
    %751 = vmatprep.subr.bf16.mxu0 %v660
    %752 = vmatpush1.bf16.msra.mxu0 %v659
    %753 = vmatprep.subr.bf16.mxu0 0
    %754 = vmatpush1.bf16.msra.mxu0 0
    %755 = vmatprep.subr.bf16.mxu0 0
    %756 = vmatpush1.bf16.msra.mxu0 0
    %757 = vmatprep.subr.bf16.mxu0 0
    %758 = vmatpush1.bf16.msra.mxu0 0
    %759 = vmatprep.subr.bf16.mxu0 0
    %760 = vmatpush1.bf16.msra.mxu0 0
    %761 = vmatprep.subr.bf16.mxu0 0
    %762 = vmatpush1.bf16.msra.mxu0 0
    %763 = vmatprep.subr.bf16.mxu0 0
    %764 = vmatpush1.bf16.msra.mxu0 0
    %765 = vmatprep.subr.bf16.mxu0 0
    %766 = vmatpush1.bf16.msra.mxu0 0
    %767 = vmatprep.subr.bf16.mxu0 0
    %768 = vmatpush1.bf16.msra.mxu0 0
    %769 = vmatprep.subr.bf16.mxu0 0
    %770 = vmatpush1.bf16.msra.mxu0 0
    %771 = vmatprep.subr.bf16.mxu0 0
    %772 = vmatpush1.bf16.msra.mxu0 0
    %773 = vmatprep.subr.bf16.mxu0 0
    %774 = vmatpush1.bf16.msra.mxu0 0
    %775 = vmatprep.subr.bf16.mxu0 0
    %776 = vmatpush1.bf16.msra.mxu0 0
    %777 = vmatprep.subr.bf16.mxu0 0
    %778 = vmatpush1.bf16.msra.mxu0 0
    %779 = vmatprep.subr.bf16.mxu0 0
    %780 = vmatpush1.bf16.msra.mxu0 0
    %781 = vmatprep.mubr.bf16.mxu0 0
    %782 = vmatmul.mubr.bf16.gmra.mrb[0].mxu0 %v706
    %v783 = vpop.f32.mrb[0].mxu0
    %v784 = vadd.f32 %v476, %v783
    %v785 = vpop.f32.mrb[0].mxu0
    %v786 = vadd.f32 %v480, %v785
    %v787 = vpop.f32.mrb[0].mxu0
    %v788 = vpop.f32.mrb[0].mxu0
    %789 = vdwg.mxu0
    %790 = vmatprep.subr.bf16.mxu0 %v646
    %791 = vmatpush1.bf16.msra.mxu0 %v645
    %792 = vmatprep.subr.bf16.mxu0 %v662
    %793 = vmatpush1.bf16.msra.mxu0 %v661
    %794 = vmatprep.subr.bf16.mxu0 0
    %795 = vmatpush1.bf16.msra.mxu0 0
    %796 = vmatprep.subr.bf16.mxu0 0
    %797 = vmatpush1.bf16.msra.mxu0 0
    %798 = vmatprep.subr.bf16.mxu0 0
    %799 = vmatpush1.bf16.msra.mxu0 0
    %800 = vmatprep.subr.bf16.mxu0 0
    %801 = vmatpush1.bf16.msra.mxu0 0
    %802 = vmatprep.subr.bf16.mxu0 0
    %803 = vmatpush1.bf16.msra.mxu0 0
    %804 = vmatprep.subr.bf16.mxu0 0
    %805 = vmatpush1.bf16.msra.mxu0 0
    %806 = vmatprep.subr.bf16.mxu0 0
    %807 = vmatpush1.bf16.msra.mxu0 0
    %808 = vmatprep.subr.bf16.mxu0 0
    %809 = vmatpush1.bf16.msra.mxu0 0
    %810 = vmatprep.subr.bf16.mxu0 0
    %811 = vmatpush1.bf16.msra.mxu0 0
    %812 = vmatprep.subr.bf16.mxu0 0
    %813 = vmatpush1.bf16.msra.mxu0 0
    %814 = vmatprep.subr.bf16.mxu0 0
    %815 = vmatpush1.bf16.msra.mxu0 0
    %816 = vmatprep.subr.bf16.mxu0 0
    %817 = vmatpush1.bf16.msra.mxu0 0
    %818 = vmatprep.subr.bf16.mxu0 0
    %819 = vmatpush1.bf16.msra.mxu0 0
    %820 = vmatprep.subr.bf16.mxu0 0
    %821 = vmatpush1.bf16.msra.mxu0 0
    %822 = vmatprep.mubr.bf16.mxu0 0
    %823 = vmatmul.mubr.bf16.gmra.mrb[0].mxu0 %v706
    %v824 = vpop.f32.mrb[0].mxu0
    %v825 = vadd.f32 %v484, %v824
    %v826 = vpop.f32.mrb[0].mxu0
    %v827 = vadd.f32 %v488, %v826
    %v828 = vpop.f32.mrb[0].mxu0
    %v829 = vpop.f32.mrb[0].mxu0
    %830 = vdwg.mxu0
    %831 = vmatprep.subr.bf16.mxu0 %v648
    %832 = vmatpush1.bf16.msra.mxu0 %v647
    %833 = vmatprep.subr.bf16.mxu0 %v664
    %834 = vmatpush1.bf16.msra.mxu0 %v663
    %835 = vmatprep.subr.bf16.mxu0 0
    %836 = vmatpush1.bf16.msra.mxu0 0
    %837 = vmatprep.subr.bf16.mxu0 0
    %838 = vmatpush1.bf16.msra.mxu0 0
    %839 = vmatprep.subr.bf16.mxu0 0
    %840 = vmatpush1.bf16.msra.mxu0 0
    %841 = vmatprep.subr.bf16.mxu0 0
    %842 = vmatpush1.bf16.msra.mxu0 0
    %843 = vmatprep.subr.bf16.mxu0 0
    %844 = vmatpush1.bf16.msra.mxu0 0
    %845 = vmatprep.subr.bf16.mxu0 0
    %846 = vmatpush1.bf16.msra.mxu0 0
    %847 = vmatprep.subr.bf16.mxu0 0
    %848 = vmatpush1.bf16.msra.mxu0 0
    %849 = vmatprep.subr.bf16.mxu0 0
    %850 = vmatpush1.bf16.msra.mxu0 0
    %851 = vmatprep.subr.bf16.mxu0 0
    %852 = vmatpush1.bf16.msra.mxu0 0
    %853 = vmatprep.subr.bf16.mxu0 0
    %854 = vmatpush1.bf16.msra.mxu0 0
    %855 = vmatprep.subr.bf16.mxu0 0
    %856 = vmatpush1.bf16.msra.mxu0 0
    %857 = vmatprep.subr.bf16.mxu0 0
    %858 = vmatpush1.bf16.msra.mxu0 0
    %859 = vmatprep.subr.bf16.mxu0 0
    %860 = vmatpush1.bf16.msra.mxu0 0
    %861 = vmatprep.subr.bf16.mxu0 0
    %862 = vmatpush1.bf16.msra.mxu0 0
    %863 = vmatprep.mubr.bf16.mxu0 0
    %864 = vmatmul.mubr.bf16.gmra.mrb[0].mxu0 %v706
    %v865 = vpop.f32.mrb[0].mxu0
    %v866 = vadd.f32 %v492, %v865
    %v867 = vpop.f32.mrb[0].mxu0
    %v868 = vadd.f32 %v496, %v867
    %v869 = vpop.f32.mrb[0].mxu0
    %v870 = vpop.f32.mrb[0].mxu0
    %871 = vdwg.mxu0
    %872 = vmatprep.subr.bf16.mxu0 %v650
    %873 = vmatpush1.bf16.msra.mxu0 %v649
    %874 = vmatprep.subr.bf16.mxu0 %v666
    %875 = vmatpush1.bf16.msra.mxu0 %v665
    %876 = vmatprep.subr.bf16.mxu0 0
    %877 = vmatpush1.bf16.msra.mxu0 0
    %878 = vmatprep.subr.bf16.mxu0 0
    %879 = vmatpush1.bf16.msra.mxu0 0
    %880 = vmatprep.subr.bf16.mxu0 0
    %881 = vmatpush1.bf16.msra.mxu0 0
    %882 = vmatprep.subr.bf16.mxu0 0
    %883 = vmatpush1.bf16.msra.mxu0 0
    %884 = vmatprep.subr.bf16.mxu0 0
    %885 = vmatpush1.bf16.msra.mxu0 0
    %886 = vmatprep.subr.bf16.mxu0 0
    %887 = vmatpush1.bf16.msra.mxu0 0
    %888 = vmatprep.subr.bf16.mxu0 0
    %889 = vmatpush1.bf16.msra.mxu0 0
    %890 = vmatprep.subr.bf16.mxu0 0
    %891 = vmatpush1.bf16.msra.mxu0 0
    %892 = vmatprep.subr.bf16.mxu0 0
    %893 = vmatpush1.bf16.msra.mxu0 0
    %894 = vmatprep.subr.bf16.mxu0 0
    %895 = vmatpush1.bf16.msra.mxu0 0
    %896 = vmatprep.subr.bf16.mxu0 0
    %897 = vmatpush1.bf16.msra.mxu0 0
    %898 = vmatprep.subr.bf16.mxu0 0
    %899 = vmatpush1.bf16.msra.mxu0 0
    %900 = vmatprep.subr.bf16.mxu0 0
    %901 = vmatpush1.bf16.msra.mxu0 0
    %902 = vmatprep.subr.bf16.mxu0 0
    %903 = vmatpush1.bf16.msra.mxu0 0
    %904 = vmatprep.mubr.bf16.mxu0 0
    %905 = vmatmul.mubr.bf16.gmra.mrb[0].mxu0 %v706
    %v906 = vpop.f32.mrb[0].mxu0
    %v907 = vadd.f32 %v500, %v906
    %v908 = vpop.f32.mrb[0].mxu0
    %v909 = vadd.f32 %v504, %v908
    %v910 = vpop.f32.mrb[0].mxu0
    %v911 = vpop.f32.mrb[0].mxu0
    %912 = vdwg.mxu0
    %913 = vmatprep.subr.bf16.mxu0 %v652
    %914 = vmatpush1.bf16.msra.mxu0 %v651
    %915 = vmatprep.subr.bf16.mxu0 %v668
    %916 = vmatpush1.bf16.msra.mxu0 %v667
    %917 = vmatprep.subr.bf16.mxu0 0
    %918 = vmatpush1.bf16.msra.mxu0 0
    %919 = vmatprep.subr.bf16.mxu0 0
    %920 = vmatpush1.bf16.msra.mxu0 0
    %921 = vmatprep.subr.bf16.mxu0 0
    %922 = vmatpush1.bf16.msra.mxu0 0
    %923 = vmatprep.subr.bf16.mxu0 0
    %924 = vmatpush1.bf16.msra.mxu0 0
    %925 = vmatprep.subr.bf16.mxu0 0
    %926 = vmatpush1.bf16.msra.mxu0 0
    %927 = vmatprep.subr.bf16.mxu0 0
    %928 = vmatpush1.bf16.msra.mxu0 0
    %929 = vmatprep.subr.bf16.mxu0 0
    %930 = vmatpush1.bf16.msra.mxu0 0
    %931 = vmatprep.subr.bf16.mxu0 0
    %932 = vmatpush1.bf16.msra.mxu0 0
    %933 = vmatprep.subr.bf16.mxu0 0
    %934 = vmatpush1.bf16.msra.mxu0 0
    %935 = vmatprep.subr.bf16.mxu0 0
    %936 = vmatpush1.bf16.msra.mxu0 0
    %937 = vmatprep.subr.bf16.mxu0 0
    %938 = vmatpush1.bf16.msra.mxu0 0
    %939 = vmatprep.subr.bf16.mxu0 0
    %940 = vmatpush1.bf16.msra.mxu0 0
    %941 = vmatprep.subr.bf16.mxu0 0
    %942 = vmatpush1.bf16.msra.mxu0 0
    %943 = vmatprep.subr.bf16.mxu0 0
    %944 = vmatpush1.bf16.msra.mxu0 0
    %945 = vmatprep.mubr.bf16.mxu0 0
    %946 = vmatmul.mubr.bf16.gmra.mrb[0].mxu0 %v706
    %v947 = vpop.f32.mrb[0].mxu0
    %v948 = vadd.f32 %v508, %v947
    %v949 = vpop.f32.mrb[0].mxu0
    %v950 = vadd.f32 %v512, %v949
    %v951 = vpop.f32.mrb[0].mxu0
    %v952 = vpop.f32.mrb[0].mxu0
    %953 = vdwg.mxu0
    %954 = vmatprep.subr.bf16.mxu0 %v654
    %955 = vmatpush1.bf16.msra.mxu0 %v653
    %956 = vmatprep.subr.bf16.mxu0 %v670
    %957 = vmatpush1.bf16.msra.mxu0 %v669
    %958 = vmatprep.subr.bf16.mxu0 0
    %959 = vmatpush1.bf16.msra.mxu0 0
    %960 = vmatprep.subr.bf16.mxu0 0
    %961 = vmatpush1.bf16.msra.mxu0 0
    %962 = vmatprep.subr.bf16.mxu0 0
    %963 = vmatpush1.bf16.msra.mxu0 0
    %964 = vmatprep.subr.bf16.mxu0 0
    %965 = vmatpush1.bf16.msra.mxu0 0
    %966 = vmatprep.subr.bf16.mxu0 0
    %967 = vmatpush1.bf16.msra.mxu0 0
    %968 = vmatprep.subr.bf16.mxu0 0
    %969 = vmatpush1.bf16.msra.mxu0 0
    %970 = vmatprep.subr.bf16.mxu0 0
    %971 = vmatpush1.bf16.msra.mxu0 0
    %972 = vmatprep.subr.bf16.mxu0 0
    %973 = vmatpush1.bf16.msra.mxu0 0
    %974 = vmatprep.subr.bf16.mxu0 0
    %975 = vmatpush1.bf16.msra.mxu0 0
    %976 = vmatprep.subr.bf16.mxu0 0
    %977 = vmatpush1.bf16.msra.mxu0 0
    %978 = vmatprep.subr.bf16.mxu0 0
    %979 = vmatpush1.bf16.msra.mxu0 0
    %980 = vmatprep.subr.bf16.mxu0 0
    %981 = vmatpush1.bf16.msra.mxu0 0
    %982 = vmatprep.subr.bf16.mxu0 0
    %983 = vmatpush1.bf16.msra.mxu0 0
    %984 = vmatprep.subr.bf16.mxu0 0
    %985 = vmatpush1.bf16.msra.mxu0 0
    %986 = vmatprep.mubr.bf16.mxu0 0
    %987 = vmatmul.mubr.bf16.gmra.mrb[0].mxu0 %v706
    %v988 = vpop.f32.mrb[0].mxu0
    %v989 = vadd.f32 %v516, %v988
    %v990 = vpop.f32.mrb[0].mxu0
    %v991 = vadd.f32 %v520, %v990
    %v992 = vpop.f32.mrb[0].mxu0
    %v993 = vpop.f32.mrb[0].mxu0
    %994 = vdwg.mxu0
    %995 = vmatprep.subr.bf16.mxu0 %v656
    %996 = vmatpush1.bf16.msra.mxu0 %v655
    %997 = vmatprep.subr.bf16.mxu0 %v672
    %998 = vmatpush1.bf16.msra.mxu0 %v671
    %999 = vmatprep.subr.bf16.mxu0 0
    %1000 = vmatpush1.bf16.msra.mxu0 0
    %1001 = vmatprep.subr.bf16.mxu0 0
    %1002 = vmatpush1.bf16.msra.mxu0 0
    %1003 = vmatprep.subr.bf16.mxu0 0
    %1004 = vmatpush1.bf16.msra.mxu0 0
    %1005 = vmatprep.subr.bf16.mxu0 0
    %1006 = vmatpush1.bf16.msra.mxu0 0
    %1007 = vmatprep.subr.bf16.mxu0 0
    %1008 = vmatpush1.bf16.msra.mxu0 0
    %1009 = vmatprep.subr.bf16.mxu0 0
    %1010 = vmatpush1.bf16.msra.mxu0 0
    %1011 = vmatprep.subr.bf16.mxu0 0
    %1012 = vmatpush1.bf16.msra.mxu0 0
    %1013 = vmatprep.subr.bf16.mxu0 0
    %1014 = vmatpush1.bf16.msra.mxu0 0
    %1015 = vmatprep.subr.bf16.mxu0 0
    %1016 = vmatpush1.bf16.msra.mxu0 0
    %1017 = vmatprep.subr.bf16.mxu0 0
    %1018 = vmatpush1.bf16.msra.mxu0 0
    %1019 = vmatprep.subr.bf16.mxu0 0
    %1020 = vmatpush1.bf16.msra.mxu0 0
    %1021 = vmatprep.subr.bf16.mxu0 0
    %1022 = vmatpush1.bf16.msra.mxu0 0
    %1023 = vmatprep.subr.bf16.mxu0 0
    %1024 = vmatpush1.bf16.msra.mxu0 0
    %1025 = vmatprep.subr.bf16.mxu0 0
    %1026 = vmatpush1.bf16.msra.mxu0 0
    %1027 = vmatprep.mubr.bf16.mxu0 0
    %1028 = vmatmul.mubr.bf16.gmra.mrb[0].mxu0 %v706
    %v1029 = vpop.f32.mrb[0].mxu0
    %v1030 = vadd.f32 %v524, %v1029
    %v1031 = vpop.f32.mrb[0].mxu0
    %v1032 = vadd.f32 %v528, %v1031
    %v1033 = vpop.f32.mrb[0].mxu0
    %v1034 = vpop.f32.mrb[0].mxu0
    %1035 = vdwg.mxu0
    %v1036 = vmax.f32 %v743, 0.0
    %v1037 = vmax.f32 %v745, 0.0
    %v1038 = vmax.f32 %v784, 0.0
    %v1039 = vmax.f32 %v786, 0.0
    %v1040 = vmax.f32 %v825, 0.0
    %v1041 = vmax.f32 %v827, 0.0
    %v1042 = vmax.f32 %v866, 0.0
    %v1043 = vmax.f32 %v868, 0.0
    %v1044 = vmax.f32 %v907, 0.0
    %v1045 = vmax.f32 %v909, 0.0
    %v1046 = vmax.f32 %v948, 0.0
    %v1047 = vmax.f32 %v950, 0.0
    %v1048 = vmax.f32 %v989, 0.0
    %v1049 = vmax.f32 %v991, 0.0
    %v1050 = vmax.f32 %v1030, 0.0
    %v1051 = vmax.f32 %v1032, 0.0
    %v1052 = vpack.c.bf16 %v1036, %v1036
    %v1053 = vpack.c.bf16 %v1037, %v1037
    %v1054 = vpack.c.bf16 %v1038, %v1038
    %v1055 = vpack.c.bf16 %v1039, %v1039
    %v1056 = vpack.c.bf16 %v1040, %v1040
    %v1057 = vpack.c.bf16 %v1041, %v1041
    %v1058 = vpack.c.bf16 %v1042, %v1042
    %v1059 = vpack.c.bf16 %v1043, %v1043
    %v1060 = vpack.c.bf16 %v1044, %v1044
    %v1061 = vpack.c.bf16 %v1045, %v1045
    %v1062 = vpack.c.bf16 %v1046, %v1046
    %v1063 = vpack.c.bf16 %v1047, %v1047
    %v1064 = vpack.c.bf16 %v1048, %v1048
    %v1065 = vpack.c.bf16 %v1049, %v1049
    %v1066 = vpack.c.bf16 %v1050, %v1050
    %v1067 = vpack.c.bf16 %v1051, %v1051
    %v1068 = vld [vmem:[#allocation5 + $0x4c] sm:$0xff]
    %v1069 = vld [vmem:[#allocation5 + $0x54] sm:$0xff]
    %v1070 = vld [vmem:[#allocation5 + $0x5c] sm:$0xff]
    %v1071 = vld [vmem:[#allocation5 + $0x64] sm:$0xff]
    %v1072 = vld [vmem:[#allocation5 + $0x6c] sm:$0xff]
    %v1073 = vld [vmem:[#allocation5 + $0x74] sm:$0xff]
    %v1074 = vld [vmem:[#allocation5 + $0x7c] sm:$0xff]
    %v1075 = vld [vmem:[#allocation5 + $0x84] sm:$0xff]
    %v1076 = vld [vmem:[#allocation5 + $0xdc] sm:$0xff]
    %v1077 = vld [vmem:[#allocation5 + $0xe4] sm:$0xff]
    %v1078 = vld [vmem:[#allocation5 + $0xec] sm:$0xff]
    %v1079 = vld [vmem:[#allocation5 + $0xf4] sm:$0xff]
    %v1080 = vld [vmem:[#allocation5 + $0xfc] sm:$0xff]
    %v1081 = vld [vmem:[#allocation5 + $0x104] sm:$0xff]
    %v1082 = vld [vmem:[#allocation5 + $0x10c] sm:$0xff]
    %v1083 = vld [vmem:[#allocation5 + $0x114] sm:$0xff]
    %v1084 = vld [vmem:[#allocation5 + $0x16c] sm:$0xff]
    %v1085 = vld [vmem:[#allocation5 + $0x174] sm:$0xff]
    %v1086 = vld [vmem:[#allocation5 + $0x17c] sm:$0xff]
    %v1087 = vld [vmem:[#allocation5 + $0x184] sm:$0xff]
    %v1088 = vld [vmem:[#allocation5 + $0x18c] sm:$0xff]
    %v1089 = vld [vmem:[#allocation5 + $0x194] sm:$0xff]
    %v1090 = vld [vmem:[#allocation5 + $0x19c] sm:$0xff]
    %v1091 = vld [vmem:[#allocation5 + $0x1a4] sm:$0xff]
    %v1092 = vld [vmem:[#allocation5 + $0x1fc] sm:$0xff]
    %v1093 = vld [vmem:[#allocation5 + $0x204] sm:$0xff]
    %v1094 = vld [vmem:[#allocation5 + $0x20c] sm:$0xff]
    %v1095 = vld [vmem:[#allocation5 + $0x214] sm:$0xff]
    %v1096 = vld [vmem:[#allocation5 + $0x21c] sm:$0xff]
    %v1097 = vld [vmem:[#allocation5 + $0x224] sm:$0xff]
    %v1098 = vld [vmem:[#allocation5 + $0x22c] sm:$0xff]
    %v1099 = vld [vmem:[#allocation5 + $0x234] sm:$0xff]
    %v1100 = vld [vmem:[#allocation8 + $0x1] sm:$0x1]
    %v1101 = vlaneseq
    %v1102 = vshrl.u32 %v1101, 7
    %v1103 = vsub.s32 0, %v1102
    %v1104 = vrot.slane %v1100, %v1103
    %v1137 = vunpack.c.l.b16 %v1068
    %v1138 = vunpack.c.h.b16 %v1068
    %v1139 = vunpack.c.l.b16 %v1069
    %v1140 = vunpack.c.h.b16 %v1069
    %v1141 = vunpack.c.l.b16 %v1070
    %v1142 = vunpack.c.h.b16 %v1070
    %v1143 = vunpack.c.l.b16 %v1071
    %v1144 = vunpack.c.h.b16 %v1071
    %v1145 = vunpack.c.l.b16 %v1072
    %v1146 = vunpack.c.h.b16 %v1072
    %v1147 = vunpack.c.l.b16 %v1073
    %v1148 = vunpack.c.h.b16 %v1073
    %v1149 = vunpack.c.l.b16 %v1074
    %v1150 = vunpack.c.h.b16 %v1074
    %v1151 = vunpack.c.l.b16 %v1075
    %v1152 = vunpack.c.h.b16 %v1075
    %v1153 = vunpack.c.l.b16 %v1076
    %v1154 = vunpack.c.h.b16 %v1076
    %v1155 = vunpack.c.l.b16 %v1077
    %v1156 = vunpack.c.h.b16 %v1077
    %v1157 = vunpack.c.l.b16 %v1078
    %v1158 = vunpack.c.h.b16 %v1078
    %v1159 = vunpack.c.l.b16 %v1079
    %v1160 = vunpack.c.h.b16 %v1079
    %v1161 = vunpack.c.l.b16 %v1080
    %v1162 = vunpack.c.h.b16 %v1080
    %v1163 = vunpack.c.l.b16 %v1081
    %v1164 = vunpack.c.h.b16 %v1081
    %v1165 = vunpack.c.l.b16 %v1082
    %v1166 = vunpack.c.h.b16 %v1082
    %v1167 = vunpack.c.l.b16 %v1083
    %v1168 = vunpack.c.h.b16 %v1083
    %v1169 = vunpack.c.l.b16 %v1084
    %v1170 = vunpack.c.h.b16 %v1084
    %v1171 = vunpack.c.l.b16 %v1085
    %v1172 = vunpack.c.h.b16 %v1085
    %v1173 = vunpack.c.l.b16 %v1086
    %v1174 = vunpack.c.h.b16 %v1086
    %v1175 = vunpack.c.l.b16 %v1087
    %v1176 = vunpack.c.h.b16 %v1087
    %v1177 = vunpack.c.l.b16 %v1088
    %v1178 = vunpack.c.h.b16 %v1088
    %v1179 = vunpack.c.l.b16 %v1089
    %v1180 = vunpack.c.h.b16 %v1089
    %v1181 = vunpack.c.l.b16 %v1090
    %v1182 = vunpack.c.h.b16 %v1090
    %v1183 = vunpack.c.l.b16 %v1091
    %v1184 = vunpack.c.h.b16 %v1091
    %v1185 = vunpack.c.l.b16 %v1092
    %v1186 = vunpack.c.h.b16 %v1092
    %v1187 = vunpack.c.l.b16 %v1093
    %v1188 = vunpack.c.h.b16 %v1093
    %v1189 = vunpack.c.l.b16 %v1094
    %v1190 = vunpack.c.h.b16 %v1094
    %v1191 = vunpack.c.l.b16 %v1095
    %v1192 = vunpack.c.h.b16 %v1095
    %v1193 = vunpack.c.l.b16 %v1096
    %v1194 = vunpack.c.h.b16 %v1096
    %v1195 = vunpack.c.l.b16 %v1097
    %v1196 = vunpack.c.h.b16 %v1097
    %v1197 = vunpack.c.l.b16 %v1098
    %v1198 = vunpack.c.h.b16 %v1098
    %v1199 = vunpack.c.l.b16 %v1099
    %v1200 = vunpack.c.h.b16 %v1099
    %v1201 = vpack.c.b16 %v1153, %v1137
    %v1202 = vpack.c.b16 %v1154, %v1138
    %v1203 = vpack.c.b16 %v1155, %v1139
    %v1204 = vpack.c.b16 %v1156, %v1140
    %v1205 = vpack.c.b16 %v1157, %v1141
    %v1206 = vpack.c.b16 %v1158, %v1142
    %v1207 = vpack.c.b16 %v1159, %v1143
    %v1208 = vpack.c.b16 %v1160, %v1144
    %v1209 = vpack.c.b16 %v1161, %v1145
    %v1210 = vpack.c.b16 %v1162, %v1146
    %v1211 = vpack.c.b16 %v1163, %v1147
    %v1212 = vpack.c.b16 %v1164, %v1148
    %v1213 = vpack.c.b16 %v1165, %v1149
    %v1214 = vpack.c.b16 %v1166, %v1150
    %v1215 = vpack.c.b16 %v1167, %v1151
    %v1216 = vpack.c.b16 %v1168, %v1152
    %v1217 = vpack.c.b16 %v1185, %v1169
    %v1218 = vpack.c.b16 %v1186, %v1170
    %v1219 = vpack.c.b16 %v1187, %v1171
    %v1220 = vpack.c.b16 %v1188, %v1172
    %v1221 = vpack.c.b16 %v1189, %v1173
    %v1222 = vpack.c.b16 %v1190, %v1174
    %v1223 = vpack.c.b16 %v1191, %v1175
    %v1224 = vpack.c.b16 %v1192, %v1176
    %v1225 = vpack.c.b16 %v1193, %v1177
    %v1226 = vpack.c.b16 %v1194, %v1178
    %v1227 = vpack.c.b16 %v1195, %v1179
    %v1228 = vpack.c.b16 %v1196, %v1180
    %v1229 = vpack.c.b16 %v1197, %v1181
    %v1230 = vpack.c.b16 %v1198, %v1182
    %v1231 = vpack.c.b16 %v1199, %v1183
    %v1232 = vpack.c.b16 %v1200, %v1184
    %1265 = vmatprep.subr.bf16.mxu0 %v1202
    %1266 = vmatpush1.bf16.xpose.msra.mxu0 %v1201
    %1267 = vmatprep.subr.bf16.mxu0 %v1218
    %1268 = vmatpush1.bf16.xpose.msra.mxu0 %v1217
    %1269 = vmatprep.subr.bf16.mxu0 0
    %1270 = vmatpush1.bf16.xpose.msra.mxu0 0
    %1271 = vmatprep.subr.bf16.mxu0 0
    %1272 = vmatpush1.bf16.xpose.msra.mxu0 0
    %1273 = vmatprep.subr.bf16.mxu0 0
    %1274 = vmatpush1.bf16.xpose.msra.mxu0 0
    %1275 = vmatprep.subr.bf16.mxu0 0
    %1276 = vmatpush1.bf16.xpose.msra.mxu0 0
    %1277 = vmatprep.subr.bf16.mxu0 0
    %1278 = vmatpush1.bf16.xpose.msra.mxu0 0
    %1279 = vmatprep.subr.bf16.mxu0 0
    %1280 = vmatpush1.bf16.xpose.msra.mxu0 0
    %1281 = vmatprep.subr.bf16.mxu0 0
    %1282 = vmatpush1.bf16.xpose.msra.mxu0 0
    %1283 = vmatprep.subr.bf16.mxu0 0
    %1284 = vmatpush1.bf16.xpose.msra.mxu0 0
    %1285 = vmatprep.subr.bf16.mxu0 0
    %1286 = vmatpush1.bf16.xpose.msra.mxu0 0
    %1287 = vmatprep.subr.bf16.mxu0 0
    %1288 = vmatpush1.bf16.xpose.msra.mxu0 0
    %1289 = vmatprep.subr.bf16.mxu0 0
    %1290 = vmatpush1.bf16.xpose.msra.mxu0 0
    %1291 = vmatprep.subr.bf16.mxu0 0
    %1292 = vmatpush1.bf16.xpose.msra.mxu0 0
    %1293 = vmatprep.subr.bf16.mxu0 0
    %1294 = vmatpush1.bf16.xpose.msra.mxu0 0
    %1295 = vmatprep.subr.bf16.mxu0 0
    %1296 = vmatpush1.bf16.xpose.msra.mxu0 0
    %1297 = vmatprep.mubr.bf16.mxu0 %v1053
    %1298 = vmatmul.mubr.bf16.gmra.mrb[0].mxu0 %v1052
    %v1299 = vpop.f32.mrb[0].mxu0
    %v1300 = vadd.f32 %v1104, %v1299
    %v1301 = vpop.f32.mrb[0].mxu0
    %v1302 = vpop.f32.mrb[0].mxu0
    %v1303 = vpop.f32.mrb[0].mxu0
    %1304 = vdwg.mxu0
    %1305 = vmatprep.subr.bf16.mxu0 %v1204
    %1306 = vmatpush1.bf16.xpose.msra.mxu0 %v1203
    %1307 = vmatprep.subr.bf16.mxu0 %v1220
    %1308 = vmatpush1.bf16.xpose.msra.mxu0 %v1219
    %1309 = vmatprep.subr.bf16.mxu0 0
    %1310 = vmatpush1.bf16.xpose.msra.mxu0 0
    %1311 = vmatprep.subr.bf16.mxu0 0
    %1312 = vmatpush1.bf16.xpose.msra.mxu0 0
    %1313 = vmatprep.subr.bf16.mxu0 0
    %1314 = vmatpush1.bf16.xpose.msra.mxu0 0
    %1315 = vmatprep.subr.bf16.mxu0 0
    %1316 = vmatpush1.bf16.xpose.msra.mxu0 0
    %1317 = vmatprep.subr.bf16.mxu0 0
    %1318 = vmatpush1.bf16.xpose.msra.mxu0 0
    %1319 = vmatprep.subr.bf16.mxu0 0
    %1320 = vmatpush1.bf16.xpose.msra.mxu0 0
    %1321 = vmatprep.subr.bf16.mxu0 0
    %1322 = vmatpush1.bf16.xpose.msra.mxu0 0
    %1323 = vmatprep.subr.bf16.mxu0 0
    %1324 = vmatpush1.bf16.xpose.msra.mxu0 0
    %1325 = vmatprep.subr.bf16.mxu0 0
    %1326 = vmatpush1.bf16.xpose.msra.mxu0 0
    %1327 = vmatprep.subr.bf16.mxu0 0
    %1328 = vmatpush1.bf16.xpose.msra.mxu0 0
    %1329 = vmatprep.subr.bf16.mxu0 0
    %1330 = vmatpush1.bf16.xpose.msra.mxu0 0
    %1331 = vmatprep.subr.bf16.mxu0 0
    %1332 = vmatpush1.bf16.xpose.msra.mxu0 0
    %1333 = vmatprep.subr.bf16.mxu0 0
    %1334 = vmatpush1.bf16.xpose.msra.mxu0 0
    %1335 = vmatprep.subr.bf16.mxu0 0
    %1336 = vmatpush1.bf16.xpose.msra.mxu0 0
    %1337 = vmatprep.mubr.bf16.mxu0 %v1055
    %1338 = vmatmul.mubr.bf16.gmra.mrb[0].mxu0 %v1054
    %v1339 = vpop.f32.mrb[0].mxu0
    %v1340 = vadd.f32 %v1300, %v1339
    %v1341 = vpop.f32.mrb[0].mxu0
    %v1342 = vpop.f32.mrb[0].mxu0
    %v1343 = vpop.f32.mrb[0].mxu0
    %1344 = vdwg.mxu0
    %1345 = vmatprep.subr.bf16.mxu0 %v1206
    %1346 = vmatpush1.bf16.xpose.msra.mxu0 %v1205
    %1347 = vmatprep.subr.bf16.mxu0 %v1222
    %1348 = vmatpush1.bf16.xpose.msra.mxu0 %v1221
    %1349 = vmatprep.subr.bf16.mxu0 0
    %1350 = vmatpush1.bf16.xpose.msra.mxu0 0
    %1351 = vmatprep.subr.bf16.mxu0 0
    %1352 = vmatpush1.bf16.xpose.msra.mxu0 0
    %1353 = vmatprep.subr.bf16.mxu0 0
    %1354 = vmatpush1.bf16.xpose.msra.mxu0 0
    %1355 = vmatprep.subr.bf16.mxu0 0
    %1356 = vmatpush1.bf16.xpose.msra.mxu0 0
    %1357 = vmatprep.subr.bf16.mxu0 0
    %1358 = vmatpush1.bf16.xpose.msra.mxu0 0
    %1359 = vmatprep.subr.bf16.mxu0 0
    %1360 = vmatpush1.bf16.xpose.msra.mxu0 0
    %1361 = vmatprep.subr.bf16.mxu0 0
    %1362 = vmatpush1.bf16.xpose.msra.mxu0 0
    %1363 = vmatprep.subr.bf16.mxu0 0
    %1364 = vmatpush1.bf16.xpose.msra.mxu0 0
    %1365 = vmatprep.subr.bf16.mxu0 0
    %1366 = vmatpush1.bf16.xpose.msra.mxu0 0
    %1367 = vmatprep.subr.bf16.mxu0 0
    %1368 = vmatpush1.bf16.xpose.msra.mxu0 0
    %1369 = vmatprep.subr.bf16.mxu0 0
    %1370 = vmatpush1.bf16.xpose.msra.mxu0 0
    %1371 = vmatprep.subr.bf16.mxu0 0
    %1372 = vmatpush1.bf16.xpose.msra.mxu0 0
    %1373 = vmatprep.subr.bf16.mxu0 0
    %1374 = vmatpush1.bf16.xpose.msra.mxu0 0
    %1375 = vmatprep.subr.bf16.mxu0 0
    %1376 = vmatpush1.bf16.xpose.msra.mxu0 0
    %1377 = vmatprep.mubr.bf16.mxu0 %v1057
    %1378 = vmatmul.mubr.bf16.gmra.mrb[0].mxu0 %v1056
    %v1379 = vpop.f32.mrb[0].mxu0
    %v1380 = vadd.f32 %v1340, %v1379
    %v1381 = vpop.f32.mrb[0].mxu0
    %v1382 = vpop.f32.mrb[0].mxu0
    %v1383 = vpop.f32.mrb[0].mxu0
    %1384 = vdwg.mxu0
    %1385 = vmatprep.subr.bf16.mxu0 %v1208
    %1386 = vmatpush1.bf16.xpose.msra.mxu0 %v1207
    %1387 = vmatprep.subr.bf16.mxu0 %v1224
    %1388 = vmatpush1.bf16.xpose.msra.mxu0 %v1223
    %1389 = vmatprep.subr.bf16.mxu0 0
    %1390 = vmatpush1.bf16.xpose.msra.mxu0 0
    %1391 = vmatprep.subr.bf16.mxu0 0
    %1392 = vmatpush1.bf16.xpose.msra.mxu0 0
    %1393 = vmatprep.subr.bf16.mxu0 0
    %1394 = vmatpush1.bf16.xpose.msra.mxu0 0
    %1395 = vmatprep.subr.bf16.mxu0 0
    %1396 = vmatpush1.bf16.xpose.msra.mxu0 0
    %1397 = vmatprep.subr.bf16.mxu0 0
    %1398 = vmatpush1.bf16.xpose.msra.mxu0 0
    %1399 = vmatprep.subr.bf16.mxu0 0
    %1400 = vmatpush1.bf16.xpose.msra.mxu0 0
    %1401 = vmatprep.subr.bf16.mxu0 0
    %1402 = vmatpush1.bf16.xpose.msra.mxu0 0
    %1403 = vmatprep.subr.bf16.mxu0 0
    %1404 = vmatpush1.bf16.xpose.msra.mxu0 0
    %1405 = vmatprep.subr.bf16.mxu0 0
    %1406 = vmatpush1.bf16.xpose.msra.mxu0 0
    %1407 = vmatprep.subr.bf16.mxu0 0
    %1408 = vmatpush1.bf16.xpose.msra.mxu0 0
    %1409 = vmatprep.subr.bf16.mxu0 0
    %1410 = vmatpush1.bf16.xpose.msra.mxu0 0
    %1411 = vmatprep.subr.bf16.mxu0 0
    %1412 = vmatpush1.bf16.xpose.msra.mxu0 0
    %1413 = vmatprep.subr.bf16.mxu0 0
    %1414 = vmatpush1.bf16.xpose.msra.mxu0 0
    %1415 = vmatprep.subr.bf16.mxu0 0
    %1416 = vmatpush1.bf16.xpose.msra.mxu0 0
    %1417 = vmatprep.mubr.bf16.mxu0 %v1059
    %1418 = vmatmul.mubr.bf16.gmra.mrb[0].mxu0 %v1058
    %v1419 = vpop.f32.mrb[0].mxu0
    %v1420 = vadd.f32 %v1380, %v1419
    %v1421 = vpop.f32.mrb[0].mxu0
    %v1422 = vpop.f32.mrb[0].mxu0
    %v1423 = vpop.f32.mrb[0].mxu0
    %1424 = vdwg.mxu0
    %1425 = vmatprep.subr.bf16.mxu0 %v1210
    %1426 = vmatpush1.bf16.xpose.msra.mxu0 %v1209
    %1427 = vmatprep.subr.bf16.mxu0 %v1226
    %1428 = vmatpush1.bf16.xpose.msra.mxu0 %v1225
    %1429 = vmatprep.subr.bf16.mxu0 0
    %1430 = vmatpush1.bf16.xpose.msra.mxu0 0
    %1431 = vmatprep.subr.bf16.mxu0 0
    %1432 = vmatpush1.bf16.xpose.msra.mxu0 0
    %1433 = vmatprep.subr.bf16.mxu0 0
    %1434 = vmatpush1.bf16.xpose.msra.mxu0 0
    %1435 = vmatprep.subr.bf16.mxu0 0
    %1436 = vmatpush1.bf16.xpose.msra.mxu0 0
    %1437 = vmatprep.subr.bf16.mxu0 0
    %1438 = vmatpush1.bf16.xpose.msra.mxu0 0
    %1439 = vmatprep.subr.bf16.mxu0 0
    %1440 = vmatpush1.bf16.xpose.msra.mxu0 0
    %1441 = vmatprep.subr.bf16.mxu0 0
    %1442 = vmatpush1.bf16.xpose.msra.mxu0 0
    %1443 = vmatprep.subr.bf16.mxu0 0
    %1444 = vmatpush1.bf16.xpose.msra.mxu0 0
    %1445 = vmatprep.subr.bf16.mxu0 0
    %1446 = vmatpush1.bf16.xpose.msra.mxu0 0
    %1447 = vmatprep.subr.bf16.mxu0 0
    %1448 = vmatpush1.bf16.xpose.msra.mxu0 0
    %1449 = vmatprep.subr.bf16.mxu0 0
    %1450 = vmatpush1.bf16.xpose.msra.mxu0 0
    %1451 = vmatprep.subr.bf16.mxu0 0
    %1452 = vmatpush1.bf16.xpose.msra.mxu0 0
    %1453 = vmatprep.subr.bf16.mxu0 0
    %1454 = vmatpush1.bf16.xpose.msra.mxu0 0
    %1455 = vmatprep.subr.bf16.mxu0 0
    %1456 = vmatpush1.bf16.xpose.msra.mxu0 0
    %1457 = vmatprep.mubr.bf16.mxu0 %v1061
    %1458 = vmatmul.mubr.bf16.gmra.mrb[0].mxu0 %v1060
    %v1459 = vpop.f32.mrb[0].mxu0
    %v1460 = vadd.f32 %v1420, %v1459
    %v1461 = vpop.f32.mrb[0].mxu0
    %v1462 = vpop.f32.mrb[0].mxu0
    %v1463 = vpop.f32.mrb[0].mxu0
    %1464 = vdwg.mxu0
    %1465 = vmatprep.subr.bf16.mxu0 %v1212
    %1466 = vmatpush1.bf16.xpose.msra.mxu0 %v1211
    %1467 = vmatprep.subr.bf16.mxu0 %v1228
    %1468 = vmatpush1.bf16.xpose.msra.mxu0 %v1227
    %1469 = vmatprep.subr.bf16.mxu0 0
    %1470 = vmatpush1.bf16.xpose.msra.mxu0 0
    %1471 = vmatprep.subr.bf16.mxu0 0
    %1472 = vmatpush1.bf16.xpose.msra.mxu0 0
    %1473 = vmatprep.subr.bf16.mxu0 0
    %1474 = vmatpush1.bf16.xpose.msra.mxu0 0
    %1475 = vmatprep.subr.bf16.mxu0 0
    %1476 = vmatpush1.bf16.xpose.msra.mxu0 0
    %1477 = vmatprep.subr.bf16.mxu0 0
    %1478 = vmatpush1.bf16.xpose.msra.mxu0 0
    %1479 = vmatprep.subr.bf16.mxu0 0
    %1480 = vmatpush1.bf16.xpose.msra.mxu0 0
    %1481 = vmatprep.subr.bf16.mxu0 0
    %1482 = vmatpush1.bf16.xpose.msra.mxu0 0
    %1483 = vmatprep.subr.bf16.mxu0 0
    %1484 = vmatpush1.bf16.xpose.msra.mxu0 0
    %1485 = vmatprep.subr.bf16.mxu0 0
    %1486 = vmatpush1.bf16.xpose.msra.mxu0 0
    %1487 = vmatprep.subr.bf16.mxu0 0
    %1488 = vmatpush1.bf16.xpose.msra.mxu0 0
    %1489 = vmatprep.subr.bf16.mxu0 0
    %1490 = vmatpush1.bf16.xpose.msra.mxu0 0
    %1491 = vmatprep.subr.bf16.mxu0 0
    %1492 = vmatpush1.bf16.xpose.msra.mxu0 0
    %1493 = vmatprep.subr.bf16.mxu0 0
    %1494 = vmatpush1.bf16.xpose.msra.mxu0 0
    %1495 = vmatprep.subr.bf16.mxu0 0
    %1496 = vmatpush1.bf16.xpose.msra.mxu0 0
    %1497 = vmatprep.mubr.bf16.mxu0 %v1063
    %1498 = vmatmul.mubr.bf16.gmra.mrb[0].mxu0 %v1062
    %v1499 = vpop.f32.mrb[0].mxu0
    %v1500 = vadd.f32 %v1460, %v1499
    %v1501 = vpop.f32.mrb[0].mxu0
    %v1502 = vpop.f32.mrb[0].mxu0
    %v1503 = vpop.f32.mrb[0].mxu0
    %1504 = vdwg.mxu0
    %1505 = vmatprep.subr.bf16.mxu0 %v1214
    %1506 = vmatpush1.bf16.xpose.msra.mxu0 %v1213
    %1507 = vmatprep.subr.bf16.mxu0 %v1230
    %1508 = vmatpush1.bf16.xpose.msra.mxu0 %v1229
    %1509 = vmatprep.subr.bf16.mxu0 0
    %1510 = vmatpush1.bf16.xpose.msra.mxu0 0
    %1511 = vmatprep.subr.bf16.mxu0 0
    %1512 = vmatpush1.bf16.xpose.msra.mxu0 0
    %1513 = vmatprep.subr.bf16.mxu0 0
    %1514 = vmatpush1.bf16.xpose.msra.mxu0 0
    %1515 = vmatprep.subr.bf16.mxu0 0
    %1516 = vmatpush1.bf16.xpose.msra.mxu0 0
    %1517 = vmatprep.subr.bf16.mxu0 0
    %1518 = vmatpush1.bf16.xpose.msra.mxu0 0
    %1519 = vmatprep.subr.bf16.mxu0 0
    %1520 = vmatpush1.bf16.xpose.msra.mxu0 0
    %1521 = vmatprep.subr.bf16.mxu0 0
    %1522 = vmatpush1.bf16.xpose.msra.mxu0 0
    %1523 = vmatprep.subr.bf16.mxu0 0
    %1524 = vmatpush1.bf16.xpose.msra.mxu0 0
    %1525 = vmatprep.subr.bf16.mxu0 0
    %1526 = vmatpush1.bf16.xpose.msra.mxu0 0
    %1527 = vmatprep.subr.bf16.mxu0 0
    %1528 = vmatpush1.bf16.xpose.msra.mxu0 0
    %1529 = vmatprep.subr.bf16.mxu0 0
    %1530 = vmatpush1.bf16.xpose.msra.mxu0 0
    %1531 = vmatprep.subr.bf16.mxu0 0
    %1532 = vmatpush1.bf16.xpose.msra.mxu0 0
    %1533 = vmatprep.subr.bf16.mxu0 0
    %1534 = vmatpush1.bf16.xpose.msra.mxu0 0
    %1535 = vmatprep.subr.bf16.mxu0 0
    %1536 = vmatpush1.bf16.xpose.msra.mxu0 0
    %1537 = vmatprep.mubr.bf16.mxu0 %v1065
    %1538 = vmatmul.mubr.bf16.gmra.mrb[0].mxu0 %v1064
    %v1539 = vpop.f32.mrb[0].mxu0
    %v1540 = vadd.f32 %v1500, %v1539
    %v1541 = vpop.f32.mrb[0].mxu0
    %v1542 = vpop.f32.mrb[0].mxu0
    %v1543 = vpop.f32.mrb[0].mxu0
    %1544 = vdwg.mxu0
    %1545 = vmatprep.subr.bf16.mxu0 %v1216
    %1546 = vmatpush1.bf16.xpose.msra.mxu0 %v1215
    %1547 = vmatprep.subr.bf16.mxu0 %v1232
    %1548 = vmatpush1.bf16.xpose.msra.mxu0 %v1231
    %1549 = vmatprep.subr.bf16.mxu0 0
    %1550 = vmatpush1.bf16.xpose.msra.mxu0 0
    %1551 = vmatprep.subr.bf16.mxu0 0
    %1552 = vmatpush1.bf16.xpose.msra.mxu0 0
    %1553 = vmatprep.subr.bf16.mxu0 0
    %1554 = vmatpush1.bf16.xpose.msra.mxu0 0
    %1555 = vmatprep.subr.bf16.mxu0 0
    %1556 = vmatpush1.bf16.xpose.msra.mxu0 0
    %1557 = vmatprep.subr.bf16.mxu0 0
    %1558 = vmatpush1.bf16.xpose.msra.mxu0 0
    %1559 = vmatprep.subr.bf16.mxu0 0
    %1560 = vmatpush1.bf16.xpose.msra.mxu0 0
    %1561 = vmatprep.subr.bf16.mxu0 0
    %1562 = vmatpush1.bf16.xpose.msra.mxu0 0
    %1563 = vmatprep.subr.bf16.mxu0 0
    %1564 = vmatpush1.bf16.xpose.msra.mxu0 0
    %1565 = vmatprep.subr.bf16.mxu0 0
    %1566 = vmatpush1.bf16.xpose.msra.mxu0 0
    %1567 = vmatprep.subr.bf16.mxu0 0
    %1568 = vmatpush1.bf16.xpose.msra.mxu0 0
    %1569 = vmatprep.subr.bf16.mxu0 0
    %1570 = vmatpush1.bf16.xpose.msra.mxu0 0
    %1571 = vmatprep.subr.bf16.mxu0 0
    %1572 = vmatpush1.bf16.xpose.msra.mxu0 0
    %1573 = vmatprep.subr.bf16.mxu0 0
    %1574 = vmatpush1.bf16.xpose.msra.mxu0 0
    %1575 = vmatprep.subr.bf16.mxu0 0
    %1576 = vmatpush1.bf16.xpose.msra.mxu0 0
    %1577 = vmatprep.mubr.bf16.mxu0 %v1067
    %1578 = vmatmul.mubr.bf16.gmra.mrb[0].mxu0 %v1066
    %v1579 = vpop.f32.mrb[0].mxu0
    %v1580 = vadd.f32 %v1540, %v1579
    %v1581 = vpop.f32.mrb[0].mxu0
    %v1582 = vpop.f32.mrb[0].mxu0
    %v1583 = vpop.f32.mrb[0].mxu0
    %1584 = vdwg.mxu0
    %v1585 = vadd.f32 %v427, %v1580
    %v1586 = vld [vmem:[#allocation8 + $0x4] sm:$0x1]
    %v1587 = vld [vmem:[#allocation8 + $0x5] sm:$0x1]
    %v1588 = vsel %vm150, %v1585, 0.0
    %1589 = vadd.xlane.f32.xlu0 %v1588
    %v1590 = vpop.xlane.xlu0 %1589
    %v1591 = vmul.f32 %v1590, %v407
    %v1592 = vsub.f32 %v1585, %v1591
    %v1593 = vmul.f32 %v1592, %v1592
    %v1594 = vsel %vm150, %v1593, 0.0
    %1595 = vadd.xlane.f32.xlu0 %v1594
    %v1596 = vpop.xlane.xlu0 %1595
    %v1597 = vmul.f32 %v1596, %v407
    %v1598 = vadd.f32 %v1597, 1e-05
    %v1599 = vrsqrt.pop %v1598
    %v1600 = vmul.f32 %v1592, %v1599
    %v1601 = vlaneseq
    %v1602 = vshrl.u32 %v1601, 7
    %v1603 = vsub.s32 0, %v1602
    %v1604 = vrot.slane %v1586, %v1603
    %v1605 = vmul.f32 %v1600, %v1604
    %v1606 = vlaneseq
    %v1607 = vshrl.u32 %v1606, 7
    %v1608 = vsub.s32 0, %v1607
    %v1609 = vrot.slane %v1587, %v1608
    %v1610 = vadd.f32 %v1605, %v1609
    %v1611 = vpack.c.bf16 %v1610, %v1610
    %s1612 = scalar_lea.vmem [#allocation5], 576
    %v1613 = vld [vmem:[%s1612] sm:$0xff]
    %v1614 = vld [vmem:[%s1612 + $0x8] sm:$0xf]
    %v1615 = vld [vmem:[%s1612 + $0x90] sm:$0xff]
    %v1616 = vld [vmem:[%s1612 + $0x98] sm:$0xf]
    %v1617 = vld [vmem:[%s1612 + $0x120] sm:$0xff]
    %v1618 = vld [vmem:[%s1612 + $0x128] sm:$0xf]
    %v1619 = vld [vmem:[%s1612 + $0x1b0] sm:$0xff]
    %v1620 = vld [vmem:[%s1612 + $0x1b8] sm:$0xf]
    %s1621 = scalar_lea.vmem [#allocation7], 19
    %v1622 = vld [vmem:[%s1621] sm:$0x7]
    %v1624 = vlaneseq
    %v1625 = vshrl.u32 %v1624, 7
    %v1626 = vsub.s32 0, %v1625
    %v1627 = vrot.slane %v1622, %v1626
    %v1628 = vlaneseq
    %v1629 = vshrl.u32 %v1628, 7
    %v1630 = vsub.s32 1, %v1629
    %v1631 = vrot.slane %v1622, %v1630
    %v1632 = vlaneseq
    %v1633 = vshrl.u32 %v1632, 7
    %v1634 = vsub.s32 2, %v1633
    %v1635 = vrot.slane %v1622, %v1634
    %v1647 = vunpack.c.l.b16 %v1613
    %v1648 = vunpack.c.h.b16 %v1613
    %v1649 = vunpack.c.l.b16 %v1614
    %v1650 = vunpack.c.l.b16 %v1615
    %v1651 = vunpack.c.h.b16 %v1615
    %v1652 = vunpack.c.l.b16 %v1616
    %v1653 = vunpack.c.l.b16 %v1617
    %v1654 = vunpack.c.h.b16 %v1617
    %v1655 = vunpack.c.l.b16 %v1618
    %v1656 = vunpack.c.l.b16 %v1619
    %v1657 = vunpack.c.h.b16 %v1619
    %v1658 = vunpack.c.l.b16 %v1620
    %v1659 = vpack.c.b16 %v1650, %v1647
    %v1660 = vpack.c.b16 %v1651, %v1648
    %v1661 = vpack.c.b16 %v1652, %v1649
    %v1662 = vpack.c.b16 %v1656, %v1653
    %v1663 = vpack.c.b16 %v1657, %v1654
    %v1664 = vpack.c.b16 %v1658, %v1655
    %v1672 = vsel %vm150, %v1611, 0
    %1674 = vmatprep.subr.bf16.mxu0 %v1660
    %1675 = vmatpush1.bf16.msra.mxu0 %v1659
    %1676 = vmatprep.subr.bf16.mxu0 %v1663
    %1677 = vmatpush1.bf16.msra.mxu0 %v1662
    %1678 = vmatprep.subr.bf16.mxu0 0
    %1679 = vmatpush1.bf16.msra.mxu0 0
    %1680 = vmatprep.subr.bf16.mxu0 0
    %1681 = vmatpush1.bf16.msra.mxu0 0
    %1682 = vmatprep.subr.bf16.mxu0 0
    %1683 = vmatpush1.bf16.msra.mxu0 0
    %1684 = vmatprep.subr.bf16.mxu0 0
    %1685 = vmatpush1.bf16.msra.mxu0 0
    %1686 = vmatprep.subr.bf16.mxu0 0
    %1687 = vmatpush1.bf16.msra.mxu0 0
    %1688 = vmatprep.subr.bf16.mxu0 0
    %1689 = vmatpush1.bf16.msra.mxu0 0
    %1690 = vmatprep.subr.bf16.mxu0 0
    %1691 = vmatpush1.bf16.msra.mxu0 0
    %1692 = vmatprep.subr.bf16.mxu0 0
    %1693 = vmatpush1.bf16.msra.mxu0 0
    %1694 = vmatprep.subr.bf16.mxu0 0
    %1695 = vmatpush1.bf16.msra.mxu0 0
    %1696 = vmatprep.subr.bf16.mxu0 0
    %1697 = vmatpush1.bf16.msra.mxu0 0
    %1698 = vmatprep.subr.bf16.mxu0 0
    %1699 = vmatpush1.bf16.msra.mxu0 0
    %1700 = vmatprep.subr.bf16.mxu0 0
    %1701 = vmatpush1.bf16.msra.mxu0 0
    %1702 = vmatprep.subr.bf16.mxu0 0
    %1703 = vmatpush1.bf16.msra.mxu0 0
    %1704 = vmatprep.subr.bf16.mxu0 0
    %1705 = vmatpush1.bf16.msra.mxu0 0
    %1706 = vmatprep.mubr.bf16.mxu0 0
    %1707 = vmatmul.mubr.bf16.gmra.mrb[0].mxu0 %v1672
    %v1708 = vpop.f32.mrb[0].mxu0
    %v1709 = vadd.f32 %v1627, %v1708
    %v1710 = vpop.f32.mrb[0].mxu0
    %v1711 = vadd.f32 %v1631, %v1710
    %v1712 = vpop.f32.mrb[0].mxu0
    %v1713 = vpop.f32.mrb[0].mxu0
    %1714 = vdwg.mxu0
    %1715 = vmatprep.subr.bf16.mxu0 0
    %1716 = vmatpush1.bf16.msra.mxu0 %v1661
    %1717 = vmatprep.subr.bf16.mxu0 0
    %1718 = vmatpush1.bf16.msra.mxu0 %v1664
    %1719 = vmatprep.subr.bf16.mxu0 0
    %1720 = vmatpush1.bf16.msra.mxu0 0
    %1721 = vmatprep.subr.bf16.mxu0 0
    %1722 = vmatpush1.bf16.msra.mxu0 0
    %1723 = vmatprep.subr.bf16.mxu0 0
    %1724 = vmatpush1.bf16.msra.mxu0 0
    %1725 = vmatprep.subr.bf16.mxu0 0
    %1726 = vmatpush1.bf16.msra.mxu0 0
    %1727 = vmatprep.subr.bf16.mxu0 0
    %1728 = vmatpush1.bf16.msra.mxu0 0
    %1729 = vmatprep.subr.bf16.mxu0 0
    %1730 = vmatpush1.bf16.msra.mxu0 0
    %1731 = vmatprep.subr.bf16.mxu0 0
    %1732 = vmatpush1.bf16.msra.mxu0 0
    %1733 = vmatprep.subr.bf16.mxu0 0
    %1734 = vmatpush1.bf16.msra.mxu0 0
    %1735 = vmatprep.subr.bf16.mxu0 0
    %1736 = vmatpush1.bf16.msra.mxu0 0
    %1737 = vmatprep.subr.bf16.mxu0 0
    %1738 = vmatpush1.bf16.msra.mxu0 0
    %1739 = vmatprep.subr.bf16.mxu0 0
    %1740 = vmatpush1.bf16.msra.mxu0 0
    %1741 = vmatprep.subr.bf16.mxu0 0
    %1742 = vmatpush1.bf16.msra.mxu0 0
    %1743 = vmatprep.subr.bf16.mxu0 0
    %1744 = vmatpush1.bf16.msra.mxu0 0
    %1745 = vmatprep.subr.bf16.mxu0 0
    %1746 = vmatpush1.bf16.msra.mxu0 0
    %1747 = vmatprep.mubr.bf16.mxu0 0
    %1748 = vmatmul.mubr.bf16.gmra.mrb[0].mxu0 %v1672
    %v1749 = vpop.f32.mrb[0].mxu0
    %v1750 = vadd.f32 %v1635, %v1749
    %v1751 = vpop.f32.mrb[0].mxu0
    %v1752 = vpop.f32.mrb[0].mxu0
    %v1753 = vpop.f32.mrb[0].mxu0
    %1754 = vdwg.mxu0
    %v1755 = vpack.c.bf16 %v1709, %v1709
    %v1756 = vpack.c.bf16 %v1711, %v1711
    %v1757 = vpack.c.bf16 %v1750, %v1750
    %1758 = vmatprep.subr.bf16.mxu0 0
    %1759 = vmatpush1.bf16.xpose.msra.mxu0 %v1756
    %1760 = vmatprep.subr.bf16.mxu0 0
    %1761 = vmatpush1.bf16.xpose.msra.mxu0 0
    %1762 = vmatprep.subr.bf16.mxu0 0
    %1763 = vmatpush1.bf16.xpose.msra.mxu0 0
    %1764 = vmatprep.subr.bf16.mxu0 0
    %1765 = vmatpush1.bf16.xpose.msra.mxu0 0
    %1766 = vmatprep.subr.bf16.mxu0 0
    %1767 = vmatpush1.bf16.xpose.msra.mxu0 0
    %1768 = vmatprep.subr.bf16.mxu0 0
    %1769 = vmatpush1.bf16.xpose.msra.mxu0 0
    %1770 = vmatprep.subr.bf16.mxu0 0
    %1771 = vmatpush1.bf16.xpose.msra.mxu0 0
    %1772 = vmatprep.subr.bf16.mxu0 0
    %1773 = vmatpush1.bf16.xpose.msra.mxu0 0
    %1774 = vmatprep.subr.bf16.mxu0 0
    %1775 = vmatpush1.bf16.xpose.msra.mxu0 0
    %1776 = vmatprep.subr.bf16.mxu0 0
    %1777 = vmatpush1.bf16.xpose.msra.mxu0 0
    %1778 = vmatprep.subr.bf16.mxu0 0
    %1779 = vmatpush1.bf16.xpose.msra.mxu0 0
    %1780 = vmatprep.subr.bf16.mxu0 0
    %1781 = vmatpush1.bf16.xpose.msra.mxu0 0
    %1782 = vmatprep.subr.bf16.mxu0 0
    %1783 = vmatpush1.bf16.xpose.msra.mxu0 0
    %1784 = vmatprep.subr.bf16.mxu0 0
    %1785 = vmatpush1.bf16.xpose.msra.mxu0 0
    %1786 = vmatprep.subr.bf16.mxu0 0
    %1787 = vmatpush1.bf16.xpose.msra.mxu0 0
    %1788 = vmatprep.subr.bf16.mxu0 0
    %1789 = vmatpush1.bf16.xpose.msra.mxu0 0
    %1790 = vmatprep.mubr.bf16.mxu0 0
    %1791 = vmatmul.mubr.bf16.gmra.mrb[0].mxu0 %v1755
    %v1792 = vpop.f32.mrb[0].mxu0
    %v1793 = vadd.f32 0.0, %v1792
    %v1794 = vpop.f32.mrb[0].mxu0
    %v1795 = vpop.f32.mrb[0].mxu0
    %v1796 = vpop.f32.mrb[0].mxu0
    %1797 = vdwg.mxu0
    %v1798 = vmul.f32 %v1793, 0.17677669
    %v1799 = vsel %vm279, %v1798, -inf
    %1800 = vmax.xlane.f32.xlu0 %v1799
    %v1801 = vpop.xlane.xlu0 %1800
    %v1802 = vsub.f32 %v1798, %v1801
    %v1803 = vmul.f32 %v1802, 1.442695
    %v1804 = vpow.pop %v1803
    %v1805 = vsel %vm279, %v1804, 0.0
    %1806 = vadd.xlane.f32.xlu0 %v1805
    %v1807 = vpop.xlane.xlu0 %1806
    %v1808 = vrcp.pop %v1807
    %v1809 = vmul.f32 %v1804, %v1808
    %v1810 = vpack.c.bf16 %v1809, %v1809
    %v1812 = vsel %vm279, %v1810, 0
    %v1815 = vsel %vm295, %v1757, 0
    %1817 = vmatprep.subr.bf16.mxu0 0
    %1818 = vmatpush1.bf16.msra.mxu0 %v1815
    %1819 = vmatprep.subr.bf16.mxu0 0
    %1820 = vmatpush1.bf16.msra.mxu0 0
    %1821 = vmatprep.subr.bf16.mxu0 0
    %1822 = vmatpush1.bf16.msra.mxu0 0
    %1823 = vmatprep.subr.bf16.mxu0 0
    %1824 = vmatpush1.bf16.msra.mxu0 0
    %1825 = vmatprep.subr.bf16.mxu0 0
    %1826 = vmatpush1.bf16.msra.mxu0 0
    %1827 = vmatprep.subr.bf16.mxu0 0
    %1828 = vmatpush1.bf16.msra.mxu0 0
    %1829 = vmatprep.subr.bf16.mxu0 0
    %1830 = vmatpush1.bf16.msra.mxu0 0
    %1831 = vmatprep.subr.bf16.mxu0 0
    %1832 = vmatpush1.bf16.msra.mxu0 0
    %1833 = vmatprep.subr.bf16.mxu0 0
    %1834 = vmatpush1.bf16.msra.mxu0 0
    %1835 = vmatprep.subr.bf16.mxu0 0
    %1836 = vmatpush1.bf16.msra.mxu0 0
    %1837 = vmatprep.subr.bf16.mxu0 0
    %1838 = vmatpush1.bf16.msra.mxu0 0
    %1839 = vmatprep.subr.bf16.mxu0 0
    %1840 = vmatpush1.bf16.msra.mxu0 0
    %1841 = vmatprep.subr.bf16.mxu0 0
    %1842 = vmatpush1.bf16.msra.mxu0 0
    %1843 = vmatprep.subr.bf16.mxu0 0
    %1844 = vmatpush1.bf16.msra.mxu0 0
    %1845 = vmatprep.subr.bf16.mxu0 0
    %1846 = vmatpush1.bf16.msra.mxu0 0
    %1847 = vmatprep.subr.bf16.mxu0 0
    %1848 = vmatpush1.bf16.msra.mxu0 0
    %1849 = vmatprep.mubr.bf16.mxu0 0
    %1850 = vmatmul.mubr.bf16.gmra.mrb[0].mxu0 %v1812
    %v1851 = vpop.f32.mrb[0].mxu0
    %v1852 = vadd.f32 0.0, %v1851
    %v1853 = vpop.f32.mrb[0].mxu0
    %v1854 = vpop.f32.mrb[0].mxu0
    %v1855 = vpop.f32.mrb[0].mxu0
    %1856 = vdwg.mxu0
    %v1857 = vpack.c.bf16 %v1852, %v1852
    %v1858 = vld [vmem:[%s1612 + $0x8c] sm:$0xf]
    %v1859 = vld [vmem:[%s1612 + $0x11c] sm:$0xf]
    %v1860 = vld [vmem:[%s1612 + $0x1ac] sm:$0xf]
    %v1861 = vld [vmem:[%s1612 + $0x23c] sm:$0xf]
    %s1862 = scalar_lea.vmem [#allocation8], 8
    %v1863 = vld [vmem:[%s1862] sm:$0x1]
    %v1864 = vlaneseq
    %v1865 = vshrl.u32 %v1864, 7
    %v1866 = vsub.s32 0, %v1865
    %v1867 = vrot.slane %v1863, %v1866
    %v1872 = vunpack.c.l.b16 %v1858
    %v1873 = vunpack.c.l.b16 %v1859
    %v1874 = vunpack.c.l.b16 %v1860
    %v1875 = vunpack.c.l.b16 %v1861
    %v1876 = vpack.c.b16 %v1873, %v1872
    %v1877 = vpack.c.b16 %v1875, %v1874
    %1880 = vmatprep.subr.bf16.mxu0 0
    %1881 = vmatpush1.bf16.xpose.msra.mxu0 %v1876
    %1882 = vmatprep.subr.bf16.mxu0 0
    %1883 = vmatpush1.bf16.xpose.msra.mxu0 %v1877
    %1884 = vmatprep.subr.bf16.mxu0 0
    %1885 = vmatpush1.bf16.xpose.msra.mxu0 0
    %1886 = vmatprep.subr.bf16.mxu0 0
    %1887 = vmatpush1.bf16.xpose.msra.mxu0 0
    %1888 = vmatprep.subr.bf16.mxu0 0
    %1889 = vmatpush1.bf16.xpose.msra.mxu0 0
    %1890 = vmatprep.subr.bf16.mxu0 0
    %1891 = vmatpush1.bf16.xpose.msra.mxu0 0
    %1892 = vmatprep.subr.bf16.mxu0 0
    %1893 = vmatpush1.bf16.xpose.msra.mxu0 0
    %1894 = vmatprep.subr.bf16.mxu0 0
    %1895 = vmatpush1.bf16.xpose.msra.mxu0 0
    %1896 = vmatprep.subr.bf16.mxu0 0
    %1897 = vmatpush1.bf16.xpose.msra.mxu0 0
    %1898 = vmatprep.subr.bf16.mxu0 0
    %1899 = vmatpush1.bf16.xpose.msra.mxu0 0
    %1900 = vmatprep.subr.bf16.mxu0 0
    %1901 = vmatpush1.bf16.xpose.msra.mxu0 0
    %1902 = vmatprep.subr.bf16.mxu0 0
    %1903 = vmatpush1.bf16.xpose.msra.mxu0 0
    %1904 = vmatprep.subr.bf16.mxu0 0
    %1905 = vmatpush1.bf16.xpose.msra.mxu0 0
    %1906 = vmatprep.subr.bf16.mxu0 0
    %1907 = vmatpush1.bf16.xpose.msra.mxu0 0
    %1908 = vmatprep.subr.bf16.mxu0 0
    %1909 = vmatpush1.bf16.xpose.msra.mxu0 0
    %1910 = vmatprep.subr.bf16.mxu0 0
    %1911 = vmatpush1.bf16.xpose.msra.mxu0 0
    %1912 = vmatprep.mubr.bf16.mxu0 0
    %1913 = vmatmul.mubr.bf16.gmra.mrb[0].mxu0 %v1857
    %v1914 = vpop.f32.mrb[0].mxu0
    %v1915 = vadd.f32 %v1867, %v1914
    %v1916 = vpop.f32.mrb[0].mxu0
    %v1917 = vpop.f32.mrb[0].mxu0
    %v1918 = vpop.f32.mrb[0].mxu0
    %1919 = vdwg.mxu0
    %v1920 = vadd.f32 %v1610, %v1915
    %v1921 = vld [vmem:[%s1862 + $0x2] sm:$0x1]
    %v1922 = vld [vmem:[%s1862 + $0x3] sm:$0x1]
    %v1923 = vsel %vm150, %v1920, 0.0
    %1924 = vadd.xlane.f32.xlu0 %v1923
    %v1925 = vpop.xlane.xlu0 %1924
    %v1926 = vmul.f32 %v1925, %v407
    %v1927 = vsub.f32 %v1920, %v1926
    %v1928 = vmul.f32 %v1927, %v1927
    %v1929 = vsel %vm150, %v1928, 0.0
    %1930 = vadd.xlane.f32.xlu0 %v1929
    %v1931 = vpop.xlane.xlu0 %1930
    %v1932 = vmul.f32 %v1931, %v407
    %v1933 = vadd.f32 %v1932, 1e-05
    %v1934 = vrsqrt.pop %v1933
    %v1935 = vmul.f32 %v1927, %v1934
    %v1936 = vlaneseq
    %v1937 = vshrl.u32 %v1936, 7
    %v1938 = vsub.s32 0, %v1937
    %v1939 = vrot.slane %v1921, %v1938
    %v1940 = vmul.f32 %v1935, %v1939
    %v1941 = vlaneseq
    %v1942 = vshrl.u32 %v1941, 7
    %v1943 = vsub.s32 0, %v1942
    %v1944 = vrot.slane %v1922, %v1943
    %v1945 = vadd.f32 %v1940, %v1944
    %v1946 = vpack.c.bf16 %v1945, %v1945
    %v1947 = vld [vmem:[%s1612 + $0xc] sm:$0xff]
    %v1948 = vld [vmem:[%s1612 + $0x14] sm:$0xff]
    %v1949 = vld [vmem:[%s1612 + $0x1c] sm:$0xff]
    %v1950 = vld [vmem:[%s1612 + $0x24] sm:$0xff]
    %v1951 = vld [vmem:[%s1612 + $0x2c] sm:$0xff]
    %v1952 = vld [vmem:[%s1612 + $0x34] sm:$0xff]
    %v1953 = vld [vmem:[%s1612 + $0x3c] sm:$0xff]
    %v1954 = vld [vmem:[%s1612 + $0x44] sm:$0xff]
    %v1955 = vld [vmem:[%s1612 + $0x9c] sm:$0xff]
    %v1956 = vld [vmem:[%s1612 + $0xa4] sm:$0xff]
    %v1957 = vld [vmem:[%s1612 + $0xac] sm:$0xff]
    %v1958 = vld [vmem:[%s1612 + $0xb4] sm:$0xff]
    %v1959 = vld [vmem:[%s1612 + $0xbc] sm:$0xff]
    %v1960 = vld [vmem:[%s1612 + $0xc4] sm:$0xff]
    %v1961 = vld [vmem:[%s1612 + $0xcc] sm:$0xff]
    %v1962 = vld [vmem:[%s1612 + $0xd4] sm:$0xff]
    %v1963 = vld [vmem:[%s1612 + $0x12c] sm:$0xff]
    %v1964 = vld [vmem:[%s1612 + $0x134] sm:$0xff]
    %v1965 = vld [vmem:[%s1612 + $0x13c] sm:$0xff]
    %v1966 = vld [vmem:[%s1612 + $0x144] sm:$0xff]
    %v1967 = vld [vmem:[%s1612 + $0x14c] sm:$0xff]
    %v1968 = vld [vmem:[%s1612 + $0x154] sm:$0xff]
    %v1969 = vld [vmem:[%s1612 + $0x15c] sm:$0xff]
    %v1970 = vld [vmem:[%s1612 + $0x164] sm:$0xff]
    %v1971 = vld [vmem:[%s1612 + $0x1bc] sm:$0xff]
    %v1972 = vld [vmem:[%s1612 + $0x1c4] sm:$0xff]
    %v1973 = vld [vmem:[%s1612 + $0x1cc] sm:$0xff]
    %v1974 = vld [vmem:[%s1612 + $0x1d4] sm:$0xff]
    %v1975 = vld [vmem:[%s1612 + $0x1dc] sm:$0xff]
    %v1976 = vld [vmem:[%s1612 + $0x1e4] sm:$0xff]
    %v1977 = vld [vmem:[%s1612 + $0x1ec] sm:$0xff]
    %v1978 = vld [vmem:[%s1612 + $0x1f4] sm:$0xff]
    %v1979 = vld [vmem:[%s1621 + $0x3] sm:$0xff]
    %v1980 = vld [vmem:[%s1621 + $0xb] sm:$0xff]
    %v1983 = vlaneseq
    %v1984 = vshrl.u32 %v1983, 7
    %v1985 = vsub.s32 0, %v1984
    %v1986 = vrot.slane %v1979, %v1985
    %v1987 = vlaneseq
    %v1988 = vshrl.u32 %v1987, 7
    %v1989 = vsub.s32 1, %v1988
    %v1990 = vrot.slane %v1979, %v1989
    %v1991 = vlaneseq
    %v1992 = vshrl.u32 %v1991, 7
    %v1993 = vsub.s32 2, %v1992
    %v1994 = vrot.slane %v1979, %v1993
    %v1995 = vlaneseq
    %v1996 = vshrl.u32 %v1995, 7
    %v1997 = vsub.s32 3, %v1996
    %v1998 = vrot.slane %v1979, %v1997
    %v1999 = vlaneseq
    %v2000 = vshrl.u32 %v1999, 7
    %v2001 = vsub.s32 4, %v2000
    %v2002 = vrot.slane %v1979, %v2001
    %v2003 = vlaneseq
    %v2004 = vshrl.u32 %v2003, 7
    %v2005 = vsub.s32 5, %v2004
    %v2006 = vrot.slane %v1979, %v2005
    %v2007 = vlaneseq
    %v2008 = vshrl.u32 %v2007, 7
    %v2009 = vsub.s32 6, %v2008
    %v2010 = vrot.slane %v1979, %v2009
    %v2011 = vlaneseq
    %v2012 = vshrl.u32 %v2011, 7
    %v2013 = vsub.s32 7, %v2012
    %v2014 = vrot.slane %v1979, %v2013
    %v2015 = vlaneseq
    %v2016 = vshrl.u32 %v2015, 7
    %v2017 = vsub.s32 0, %v2016
    %v2018 = vrot.slane %v1980, %v2017
    %v2019 = vlaneseq
    %v2020 = vshrl.u32 %v2019, 7
    %v2021 = vsub.s32 1, %v2020
    %v2022 = vrot.slane %v1980, %v2021
    %v2023 = vlaneseq
    %v2024 = vshrl.u32 %v2023, 7
    %v2025 = vsub.s32 2, %v2024
    %v2026 = vrot.slane %v1980, %v2025
    %v2027 = vlaneseq
    %v2028 = vshrl.u32 %v2027, 7
    %v2029 = vsub.s32 3, %v2028
    %v2030 = vrot.slane %v1980, %v2029
    %v2031 = vlaneseq
    %v2032 = vshrl.u32 %v2031, 7
    %v2033 = vsub.s32 4, %v2032
    %v2034 = vrot.slane %v1980, %v2033
    %v2035 = vlaneseq
    %v2036 = vshrl.u32 %v2035, 7
    %v2037 = vsub.s32 5, %v2036
    %v2038 = vrot.slane %v1980, %v2037
    %v2039 = vlaneseq
    %v2040 = vshrl.u32 %v2039, 7
    %v2041 = vsub.s32 6, %v2040
    %v2042 = vrot.slane %v1980, %v2041
    %v2043 = vlaneseq
    %v2044 = vshrl.u32 %v2043, 7
    %v2045 = vsub.s32 7, %v2044
    %v2046 = vrot.slane %v1980, %v2045
    %v2095 = vunpack.c.l.b16 %v1947
    %v2096 = vunpack.c.h.b16 %v1947
    %v2097 = vunpack.c.l.b16 %v1948
    %v2098 = vunpack.c.h.b16 %v1948
    %v2099 = vunpack.c.l.b16 %v1949
    %v2100 = vunpack.c.h.b16 %v1949
    %v2101 = vunpack.c.l.b16 %v1950
    %v2102 = vunpack.c.h.b16 %v1950
    %v2103 = vunpack.c.l.b16 %v1951
    %v2104 = vunpack.c.h.b16 %v1951
    %v2105 = vunpack.c.l.b16 %v1952
    %v2106 = vunpack.c.h.b16 %v1952
    %v2107 = vunpack.c.l.b16 %v1953
    %v2108 = vunpack.c.h.b16 %v1953
    %v2109 = vunpack.c.l.b16 %v1954
    %v2110 = vunpack.c.h.b16 %v1954
    %v2111 = vunpack.c.l.b16 %v1955
    %v2112 = vunpack.c.h.b16 %v1955
    %v2113 = vunpack.c.l.b16 %v1956
    %v2114 = vunpack.c.h.b16 %v1956
    %v2115 = vunpack.c.l.b16 %v1957
    %v2116 = vunpack.c.h.b16 %v1957
    %v2117 = vunpack.c.l.b16 %v1958
    %v2118 = vunpack.c.h.b16 %v1958
    %v2119 = vunpack.c.l.b16 %v1959
    %v2120 = vunpack.c.h.b16 %v1959
    %v2121 = vunpack.c.l.b16 %v1960
    %v2122 = vunpack.c.h.b16 %v1960
    %v2123 = vunpack.c.l.b16 %v1961
    %v2124 = vunpack.c.h.b16 %v1961
    %v2125 = vunpack.c.l.b16 %v1962
    %v2126 = vunpack.c.h.b16 %v1962
    %v2127 = vunpack.c.l.b16 %v1963
    %v2128 = vunpack.c.h.b16 %v1963
    %v2129 = vunpack.c.l.b16 %v1964
    %v2130 = vunpack.c.h.b16 %v1964
    %v2131 = vunpack.c.l.b16 %v1965
    %v2132 = vunpack.c.h.b16 %v1965
    %v2133 = vunpack.c.l.b16 %v1966
    %v2134 = vunpack.c.h.b16 %v1966
    %v2135 = vunpack.c.l.b16 %v1967
    %v2136 = vunpack.c.h.b16 %v1967
    %v2137 = vunpack.c.l.b16 %v1968
    %v2138 = vunpack.c.h.b16 %v1968
    %v2139 = vunpack.c.l.b16 %v1969
    %v2140 = vunpack.c.h.b16 %v1969
    %v2141 = vunpack.c.l.b16 %v1970
    %v2142 = vunpack.c.h.b16 %v1970
    %v2143 = vunpack.c.l.b16 %v1971
    %v2144 = vunpack.c.h.b16 %v1971
    %v2145 = vunpack.c.l.b16 %v1972
    %v2146 = vunpack.c.h.b16 %v1972
    %v2147 = vunpack.c.l.b16 %v1973
    %v2148 = vunpack.c.h.b16 %v1973
    %v2149 = vunpack.c.l.b16 %v1974
    %v2150 = vunpack.c.h.b16 %v1974
    %v2151 = vunpack.c.l.b16 %v1975
    %v2152 = vunpack.c.h.b16 %v1975
    %v2153 = vunpack.c.l.b16 %v1976
    %v2154 = vunpack.c.h.b16 %v1976
    %v2155 = vunpack.c.l.b16 %v1977
    %v2156 = vunpack.c.h.b16 %v1977
    %v2157 = vunpack.c.l.b16 %v1978
    %v2158 = vunpack.c.h.b16 %v1978
    %v2159 = vpack.c.b16 %v2111, %v2095
    %v2160 = vpack.c.b16 %v2112, %v2096
    %v2161 = vpack.c.b16 %v2113, %v2097
    %v2162 = vpack.c.b16 %v2114, %v2098
    %v2163 = vpack.c.b16 %v2115, %v2099
    %v2164 = vpack.c.b16 %v2116, %v2100
    %v2165 = vpack.c.b16 %v2117, %v2101
    %v2166 = vpack.c.b16 %v2118, %v2102
    %v2167 = vpack.c.b16 %v2119, %v2103
    %v2168 = vpack.c.b16 %v2120, %v2104
    %v2169 = vpack.c.b16 %v2121, %v2105
    %v2170 = vpack.c.b16 %v2122, %v2106
    %v2171 = vpack.c.b16 %v2123, %v2107
    %v2172 = vpack.c.b16 %v2124, %v2108
    %v2173 = vpack.c.b16 %v2125, %v2109
    %v2174 = vpack.c.b16 %v2126, %v2110
    %v2175 = vpack.c.b16 %v2143, %v2127
    %v2176 = vpack.c.b16 %v2144, %v2128
    %v2177 = vpack.c.b16 %v2145, %v2129
    %v2178 = vpack.c.b16 %v2146, %v2130
    %v2179 = vpack.c.b16 %v2147, %v2131
    %v2180 = vpack.c.b16 %v2148, %v2132
    %v2181 = vpack.c.b16 %v2149, %v2133
    %v2182 = vpack.c.b16 %v2150, %v2134
    %v2183 = vpack.c.b16 %v2151, %v2135
    %v2184 = vpack.c.b16 %v2152, %v2136
    %v2185 = vpack.c.b16 %v2153, %v2137
    %v2186 = vpack.c.b16 %v2154, %v2138
    %v2187 = vpack.c.b16 %v2155, %v2139
    %v2188 = vpack.c.b16 %v2156, %v2140
    %v2189 = vpack.c.b16 %v2157, %v2141
    %v2190 = vpack.c.b16 %v2158, %v2142
    %v2224 = vsel %vm150, %v1946, 0
    %2226 = vmatprep.subr.bf16.mxu0 %v2160
    %2227 = vmatpush1.bf16.msra.mxu0 %v2159
    %2228 = vmatprep.subr.bf16.mxu0 %v2176
    %2229 = vmatpush1.bf16.msra.mxu0 %v2175
    %2230 = vmatprep.subr.bf16.mxu0 0
    %2231 = vmatpush1.bf16.msra.mxu0 0
    %2232 = vmatprep.subr.bf16.mxu0 0
    %2233 = vmatpush1.bf16.msra.mxu0 0
    %2234 = vmatprep.subr.bf16.mxu0 0
    %2235 = vmatpush1.bf16.msra.mxu0 0
    %2236 = vmatprep.subr.bf16.mxu0 0
    %2237 = vmatpush1.bf16.msra.mxu0 0
    %2238 = vmatprep.subr.bf16.mxu0 0
    %2239 = vmatpush1.bf16.msra.mxu0 0
    %2240 = vmatprep.subr.bf16.mxu0 0
    %2241 = vmatpush1.bf16.msra.mxu0 0
    %2242 = vmatprep.subr.bf16.mxu0 0
    %2243 = vmatpush1.bf16.msra.mxu0 0
    %2244 = vmatprep.subr.bf16.mxu0 0
    %2245 = vmatpush1.bf16.msra.mxu0 0
    %2246 = vmatprep.subr.bf16.mxu0 0
    %2247 = vmatpush1.bf16.msra.mxu0 0
    %2248 = vmatprep.subr.bf16.mxu0 0
    %2249 = vmatpush1.bf16.msra.mxu0 0
    %2250 = vmatprep.subr.bf16.mxu0 0
    %2251 = vmatpush1.bf16.msra.mxu0 0
    %2252 = vmatprep.subr.bf16.mxu0 0
    %2253 = vmatpush1.bf16.msra.mxu0 0
    %2254 = vmatprep.subr.bf16.mxu0 0
    %2255 = vmatpush1.bf16.msra.mxu0 0
    %2256 = vmatprep.subr.bf16.mxu0 0
    %2257 = vmatpush1.bf16.msra.mxu0 0
    %2258 = vmatprep.mubr.bf16.mxu0 0
    %2259 = vmatmul.mubr.bf16.gmra.mrb[0].mxu0 %v2224
    %v2260 = vpop.f32.mrb[0].mxu0
    %v2261 = vadd.f32 %v1986, %v2260
    %v2262 = vpop.f32.mrb[0].mxu0
    %v2263 = vadd.f32 %v1990, %v2262
    %v2264 = vpop.f32.mrb[0].mxu0
    %v2265 = vpop.f32.mrb[0].mxu0
    %2266 = vdwg.mxu0
    %2267 = vmatprep.subr.bf16.mxu0 %v2162
    %2268 = vmatpush1.bf16.msra.mxu0 %v2161
    %2269 = vmatprep.subr.bf16.mxu0 %v2178
    %2270 = vmatpush1.bf16.msra.mxu0 %v2177
    %2271 = vmatprep.subr.bf16.mxu0 0
    %2272 = vmatpush1.bf16.msra.mxu0 0
    %2273 = vmatprep.subr.bf16.mxu0 0
    %2274 = vmatpush1.bf16.msra.mxu0 0
    %2275 = vmatprep.subr.bf16.mxu0 0
    %2276 = vmatpush1.bf16.msra.mxu0 0
    %2277 = vmatprep.subr.bf16.mxu0 0
    %2278 = vmatpush1.bf16.msra.mxu0 0
    %2279 = vmatprep.subr.bf16.mxu0 0
    %2280 = vmatpush1.bf16.msra.mxu0 0
    %2281 = vmatprep.subr.bf16.mxu0 0
    %2282 = vmatpush1.bf16.msra.mxu0 0
    %2283 = vmatprep.subr.bf16.mxu0 0
    %2284 = vmatpush1.bf16.msra.mxu0 0
    %2285 = vmatprep.subr.bf16.mxu0 0
    %2286 = vmatpush1.bf16.msra.mxu0 0
    %2287 = vmatprep.subr.bf16.mxu0 0
    %2288 = vmatpush1.bf16.msra.mxu0 0
    %2289 = vmatprep.subr.bf16.mxu0 0
    %2290 = vmatpush1.bf16.msra.mxu0 0
    %2291 = vmatprep.subr.bf16.mxu0 0
    %2292 = vmatpush1.bf16.msra.mxu0 0
    %2293 = vmatprep.subr.bf16.mxu0 0
    %2294 = vmatpush1.bf16.msra.mxu0 0
    %2295 = vmatprep.subr.bf16.mxu0 0
    %2296 = vmatpush1.bf16.msra.mxu0 0
    %2297 = vmatprep.subr.bf16.mxu0 0
    %2298 = vmatpush1.bf16.msra.mxu0 0
    %2299 = vmatprep.mubr.bf16.mxu0 0
    %2300 = vmatmul.mubr.bf16.gmra.mrb[0].mxu0 %v2224
    %v2301 = vpop.f32.mrb[0].mxu0
    %v2302 = vadd.f32 %v1994, %v2301
    %v2303 = vpop.f32.mrb[0].mxu0
    %v2304 = vadd.f32 %v1998, %v2303
    %v2305 = vpop.f32.mrb[0].mxu0
    %v2306 = vpop.f32.mrb[0].mxu0
    %2307 = vdwg.mxu0
    %2308 = vmatprep.subr.bf16.mxu0 %v2164
    %2309 = vmatpush1.bf16.msra.mxu0 %v2163
    %2310 = vmatprep.subr.bf16.mxu0 %v2180
    %2311 = vmatpush1.bf16.msra.mxu0 %v2179
    %2312 = vmatprep.subr.bf16.mxu0 0
    %2313 = vmatpush1.bf16.msra.mxu0 0
    %2314 = vmatprep.subr.bf16.mxu0 0
    %2315 = vmatpush1.bf16.msra.mxu0 0
    %2316 = vmatprep.subr.bf16.mxu0 0
    %2317 = vmatpush1.bf16.msra.mxu0 0
    %2318 = vmatprep.subr.bf16.mxu0 0
    %2319 = vmatpush1.bf16.msra.mxu0 0
    %2320 = vmatprep.subr.bf16.mxu0 0
    %2321 = vmatpush1.bf16.msra.mxu0 0
    %2322 = vmatprep.subr.bf16.mxu0 0
    %2323 = vmatpush1.bf16.msra.mxu0 0
    %2324 = vmatprep.subr.bf16.mxu0 0
    %2325 = vmatpush1.bf16.msra.mxu0 0
    %2326 = vmatprep.subr.bf16.mxu0 0
    %2327 = vmatpush1.bf16.msra.mxu0 0
    %2328 = vmatprep.subr.bf16.mxu0 0
    %2329 = vmatpush1.bf16.msra.mxu0 0
    %2330 = vmatprep.subr.bf16.mxu0 0
    %2331 = vmatpush1.bf16.msra.mxu0 0
    %2332 = vmatprep.subr.bf16.mxu0 0
    %2333 = vmatpush1.bf16.msra.mxu0 0
    %2334 = vmatprep.subr.bf16.mxu0 0
    %2335 = vmatpush1.bf16.msra.mxu0 0
    %2336 = vmatprep.subr.bf16.mxu0 0
    %2337 = vmatpush1.bf16.msra.mxu0 0
    %2338 = vmatprep.subr.bf16.mxu0 0
    %2339 = vmatpush1.bf16.msra.mxu0 0
    %2340 = vmatprep.mubr.bf16.mxu0 0
    %2341 = vmatmul.mubr.bf16.gmra.mrb[0].mxu0 %v2224
    %v2342 = vpop.f32.mrb[0].mxu0
    %v2343 = vadd.f32 %v2002, %v2342
    %v2344 = vpop.f32.mrb[0].mxu0
    %v2345 = vadd.f32 %v2006, %v2344
    %v2346 = vpop.f32.mrb[0].mxu0
    %v2347 = vpop.f32.mrb[0].mxu0
    %2348 = vdwg.mxu0
    %2349 = vmatprep.subr.bf16.mxu0 %v2166
    %2350 = vmatpush1.bf16.msra.mxu0 %v2165
    %2351 = vmatprep.subr.bf16.mxu0 %v2182
    %2352 = vmatpush1.bf16.msra.mxu0 %v2181
    %2353 = vmatprep.subr.bf16.mxu0 0
    %2354 = vmatpush1.bf16.msra.mxu0 0
    %2355 = vmatprep.subr.bf16.mxu0 0
    %2356 = vmatpush1.bf16.msra.mxu0 0
    %2357 = vmatprep.subr.bf16.mxu0 0
    %2358 = vmatpush1.bf16.msra.mxu0 0
    %2359 = vmatprep.subr.bf16.mxu0 0
    %2360 = vmatpush1.bf16.msra.mxu0 0
    %2361 = vmatprep.subr.bf16.mxu0 0
    %2362 = vmatpush1.bf16.msra.mxu0 0
    %2363 = vmatprep.subr.bf16.mxu0 0
    %2364 = vmatpush1.bf16.msra.mxu0 0
    %2365 = vmatprep.subr.bf16.mxu0 0
    %2366 = vmatpush1.bf16.msra.mxu0 0
    %2367 = vmatprep.subr.bf16.mxu0 0
    %2368 = vmatpush1.bf16.msra.mxu0 0
    %2369 = vmatprep.subr.bf16.mxu0 0
    %2370 = vmatpush1.bf16.msra.mxu0 0
    %2371 = vmatprep.subr.bf16.mxu0 0
    %2372 = vmatpush1.bf16.msra.mxu0 0
    %2373 = vmatprep.subr.bf16.mxu0 0
    %2374 = vmatpush1.bf16.msra.mxu0 0
    %2375 = vmatprep.subr.bf16.mxu0 0
    %2376 = vmatpush1.bf16.msra.mxu0 0
    %2377 = vmatprep.subr.bf16.mxu0 0
    %2378 = vmatpush1.bf16.msra.mxu0 0
    %2379 = vmatprep.subr.bf16.mxu0 0
    %2380 = vmatpush1.bf16.msra.mxu0 0
    %2381 = vmatprep.mubr.bf16.mxu0 0
    %2382 = vmatmul.mubr.bf16.gmra.mrb[0].mxu0 %v2224
    %v2383 = vpop.f32.mrb[0].mxu0
    %v2384 = vadd.f32 %v2010, %v2383
    %v2385 = vpop.f32.mrb[0].mxu0
    %v2386 = vadd.f32 %v2014, %v2385
    %v2387 = vpop.f32.mrb[0].mxu0
    %v2388 = vpop.f32.mrb[0].mxu0
    %2389 = vdwg.mxu0
    %2390 = vmatprep.subr.bf16.mxu0 %v2168
    %2391 = vmatpush1.bf16.msra.mxu0 %v2167
    %2392 = vmatprep.subr.bf16.mxu0 %v2184
    %2393 = vmatpush1.bf16.msra.mxu0 %v2183
    %2394 = vmatprep.subr.bf16.mxu0 0
    %2395 = vmatpush1.bf16.msra.mxu0 0
    %2396 = vmatprep.subr.bf16.mxu0 0
    %2397 = vmatpush1.bf16.msra.mxu0 0
    %2398 = vmatprep.subr.bf16.mxu0 0
    %2399 = vmatpush1.bf16.msra.mxu0 0
    %2400 = vmatprep.subr.bf16.mxu0 0
    %2401 = vmatpush1.bf16.msra.mxu0 0
    %2402 = vmatprep.subr.bf16.mxu0 0
    %2403 = vmatpush1.bf16.msra.mxu0 0
    %2404 = vmatprep.subr.bf16.mxu0 0
    %2405 = vmatpush1.bf16.msra.mxu0 0
    %2406 = vmatprep.subr.bf16.mxu0 0
    %2407 = vmatpush1.bf16.msra.mxu0 0
    %2408 = vmatprep.subr.bf16.mxu0 0
    %2409 = vmatpush1.bf16.msra.mxu0 0
    %2410 = vmatprep.subr.bf16.mxu0 0
    %2411 = vmatpush1.bf16.msra.mxu0 0
    %2412 = vmatprep.subr.bf16.mxu0 0
    %2413 = vmatpush1.bf16.msra.mxu0 0
    %2414 = vmatprep.subr.bf16.mxu0 0
    %2415 = vmatpush1.bf16.msra.mxu0 0
    %2416 = vmatprep.subr.bf16.mxu0 0
    %2417 = vmatpush1.bf16.msra.mxu0 0
    %2418 = vmatprep.subr.bf16.mxu0 0
    %2419 = vmatpush1.bf16.msra.mxu0 0
    %2420 = vmatprep.subr.bf16.mxu0 0
    %2421 = vmatpush1.bf16.msra.mxu0 0
    %2422 = vmatprep.mubr.bf16.mxu0 0
    %2423 = vmatmul.mubr.bf16.gmra.mrb[0].mxu0 %v2224
    %v2424 = vpop.f32.mrb[0].mxu0
    %v2425 = vadd.f32 %v2018, %v2424
    %v2426 = vpop.f32.mrb[0].mxu0
    %v2427 = vadd.f32 %v2022, %v2426
    %v2428 = vpop.f32.mrb[0].mxu0
    %v2429 = vpop.f32.mrb[0].mxu0
    %2430 = vdwg.mxu0
    %2431 = vmatprep.subr.bf16.mxu0 %v2170
    %2432 = vmatpush1.bf16.msra.mxu0 %v2169
    %2433 = vmatprep.subr.bf16.mxu0 %v2186
    %2434 = vmatpush1.bf16.msra.mxu0 %v2185
    %2435 = vmatprep.subr.bf16.mxu0 0
    %2436 = vmatpush1.bf16.msra.mxu0 0
    %2437 = vmatprep.subr.bf16.mxu0 0
    %2438 = vmatpush1.bf16.msra.mxu0 0
    %2439 = vmatprep.subr.bf16.mxu0 0
    %2440 = vmatpush1.bf16.msra.mxu0 0
    %2441 = vmatprep.subr.bf16.mxu0 0
    %2442 = vmatpush1.bf16.msra.mxu0 0
    %2443 = vmatprep.subr.bf16.mxu0 0
    %2444 = vmatpush1.bf16.msra.mxu0 0
    %2445 = vmatprep.subr.bf16.mxu0 0
    %2446 = vmatpush1.bf16.msra.mxu0 0
    %2447 = vmatprep.subr.bf16.mxu0 0
    %2448 = vmatpush1.bf16.msra.mxu0 0
    %2449 = vmatprep.subr.bf16.mxu0 0
    %2450 = vmatpush1.bf16.msra.mxu0 0
    %2451 = vmatprep.subr.bf16.mxu0 0
    %2452 = vmatpush1.bf16.msra.mxu0 0
    %2453 = vmatprep.subr.bf16.mxu0 0
    %2454 = vmatpush1.bf16.msra.mxu0 0
    %2455 = vmatprep.subr.bf16.mxu0 0
    %2456 = vmatpush1.bf16.msra.mxu0 0
    %2457 = vmatprep.subr.bf16.mxu0 0
    %2458 = vmatpush1.bf16.msra.mxu0 0
    %2459 = vmatprep.subr.bf16.mxu0 0
    %2460 = vmatpush1.bf16.msra.mxu0 0
    %2461 = vmatprep.subr.bf16.mxu0 0
    %2462 = vmatpush1.bf16.msra.mxu0 0
    %2463 = vmatprep.mubr.bf16.mxu0 0
    %2464 = vmatmul.mubr.bf16.gmra.mrb[0].mxu0 %v2224
    %v2465 = vpop.f32.mrb[0].mxu0
    %v2466 = vadd.f32 %v2026, %v2465
    %v2467 = vpop.f32.mrb[0].mxu0
    %v2468 = vadd.f32 %v2030, %v2467
    %v2469 = vpop.f32.mrb[0].mxu0
    %v2470 = vpop.f32.mrb[0].mxu0
    %2471 = vdwg.mxu0
    %2472 = vmatprep.subr.bf16.mxu0 %v2172
    %2473 = vmatpush1.bf16.msra.mxu0 %v2171
    %2474 = vmatprep.subr.bf16.mxu0 %v2188
    %2475 = vmatpush1.bf16.msra.mxu0 %v2187
    %2476 = vmatprep.subr.bf16.mxu0 0
    %2477 = vmatpush1.bf16.msra.mxu0 0
    %2478 = vmatprep.subr.bf16.mxu0 0
    %2479 = vmatpush1.bf16.msra.mxu0 0
    %2480 = vmatprep.subr.bf16.mxu0 0
    %2481 = vmatpush1.bf16.msra.mxu0 0
    %2482 = vmatprep.subr.bf16.mxu0 0
    %2483 = vmatpush1.bf16.msra.mxu0 0
    %2484 = vmatprep.subr.bf16.mxu0 0
    %2485 = vmatpush1.bf16.msra.mxu0 0
    %2486 = vmatprep.subr.bf16.mxu0 0
    %2487 = vmatpush1.bf16.msra.mxu0 0
    %2488 = vmatprep.subr.bf16.mxu0 0
    %2489 = vmatpush1.bf16.msra.mxu0 0
    %2490 = vmatprep.subr.bf16.mxu0 0
    %2491 = vmatpush1.bf16.msra.mxu0 0
    %2492 = vmatprep.subr.bf16.mxu0 0
    %2493 = vmatpush1.bf16.msra.mxu0 0
    %2494 = vmatprep.subr.bf16.mxu0 0
    %2495 = vmatpush1.bf16.msra.mxu0 0
    %2496 = vmatprep.subr.bf16.mxu0 0
    %2497 = vmatpush1.bf16.msra.mxu0 0
    %2498 = vmatprep.subr.bf16.mxu0 0
    %2499 = vmatpush1.bf16.msra.mxu0 0
    %2500 = vmatprep.subr.bf16.mxu0 0
    %2501 = vmatpush1.bf16.msra.mxu0 0
    %2502 = vmatprep.subr.bf16.mxu0 0
    %2503 = vmatpush1.bf16.msra.mxu0 0
    %2504 = vmatprep.mubr.bf16.mxu0 0
    %2505 = vmatmul.mubr.bf16.gmra.mrb[0].mxu0 %v2224
    %v2506 = vpop.f32.mrb[0].mxu0
    %v2507 = vadd.f32 %v2034, %v2506
    %v2508 = vpop.f32.mrb[0].mxu0
    %v2509 = vadd.f32 %v2038, %v2508
    %v2510 = vpop.f32.mrb[0].mxu0
    %v2511 = vpop.f32.mrb[0].mxu0
    %2512 = vdwg.mxu0
    %2513 = vmatprep.subr.bf16.mxu0 %v2174
    %2514 = vmatpush1.bf16.msra.mxu0 %v2173
    %2515 = vmatprep.subr.bf16.mxu0 %v2190
    %2516 = vmatpush1.bf16.msra.mxu0 %v2189
    %2517 = vmatprep.subr.bf16.mxu0 0
    %2518 = vmatpush1.bf16.msra.mxu0 0
    %2519 = vmatprep.subr.bf16.mxu0 0
    %2520 = vmatpush1.bf16.msra.mxu0 0
    %2521 = vmatprep.subr.bf16.mxu0 0
    %2522 = vmatpush1.bf16.msra.mxu0 0
    %2523 = vmatprep.subr.bf16.mxu0 0
    %2524 = vmatpush1.bf16.msra.mxu0 0
    %2525 = vmatprep.subr.bf16.mxu0 0
    %2526 = vmatpush1.bf16.msra.mxu0 0
    %2527 = vmatprep.subr.bf16.mxu0 0
    %2528 = vmatpush1.bf16.msra.mxu0 0
    %2529 = vmatprep.subr.bf16.mxu0 0
    %2530 = vmatpush1.bf16.msra.mxu0 0
    %2531 = vmatprep.subr.bf16.mxu0 0
    %2532 = vmatpush1.bf16.msra.mxu0 0
    %2533 = vmatprep.subr.bf16.mxu0 0
    %2534 = vmatpush1.bf16.msra.mxu0 0
    %2535 = vmatprep.subr.bf16.mxu0 0
    %2536 = vmatpush1.bf16.msra.mxu0 0
    %2537 = vmatprep.subr.bf16.mxu0 0
    %2538 = vmatpush1.bf16.msra.mxu0 0
    %2539 = vmatprep.subr.bf16.mxu0 0
    %2540 = vmatpush1.bf16.msra.mxu0 0
    %2541 = vmatprep.subr.bf16.mxu0 0
    %2542 = vmatpush1.bf16.msra.mxu0 0
    %2543 = vmatprep.subr.bf16.mxu0 0
    %2544 = vmatpush1.bf16.msra.mxu0 0
    %2545 = vmatprep.mubr.bf16.mxu0 0
    %2546 = vmatmul.mubr.bf16.gmra.mrb[0].mxu0 %v2224
    %v2547 = vpop.f32.mrb[0].mxu0
    %v2548 = vadd.f32 %v2042, %v2547
    %v2549 = vpop.f32.mrb[0].mxu0
    %v2550 = vadd.f32 %v2046, %v2549
    %v2551 = vpop.f32.mrb[0].mxu0
    %v2552 = vpop.f32.mrb[0].mxu0
    %2553 = vdwg.mxu0
    %v2554 = vmax.f32 %v2261, 0.0
    %v2555 = vmax.f32 %v2263, 0.0
    %v2556 = vmax.f32 %v2302, 0.0
    %v2557 = vmax.f32 %v2304, 0.0
    %v2558 = vmax.f32 %v2343, 0.0
    %v2559 = vmax.f32 %v2345, 0.0
    %v2560 = vmax.f32 %v2384, 0.0
    %v2561 = vmax.f32 %v2386, 0.0
    %v2562 = vmax.f32 %v2425, 0.0
    %v2563 = vmax.f32 %v2427, 0.0
    %v2564 = vmax.f32 %v2466, 0.0
    %v2565 = vmax.f32 %v2468, 0.0
    %v2566 = vmax.f32 %v2507, 0.0
    %v2567 = vmax.f32 %v2509, 0.0
    %v2568 = vmax.f32 %v2548, 0.0
    %v2569 = vmax.f32 %v2550, 0.0
    %v2570 = vpack.c.bf16 %v2554, %v2554
    %v2571 = vpack.c.bf16 %v2555, %v2555
    %v2572 = vpack.c.bf16 %v2556, %v2556
    %v2573 = vpack.c.bf16 %v2557, %v2557
    %v2574 = vpack.c.bf16 %v2558, %v2558
    %v2575 = vpack.c.bf16 %v2559, %v2559
    %v2576 = vpack.c.bf16 %v2560, %v2560
    %v2577 = vpack.c.bf16 %v2561, %v2561
    %v2578 = vpack.c.bf16 %v2562, %v2562
    %v2579 = vpack.c.bf16 %v2563, %v2563
    %v2580 = vpack.c.bf16 %v2564, %v2564
    %v2581 = vpack.c.bf16 %v2565, %v2565
    %v2582 = vpack.c.bf16 %v2566, %v2566
    %v2583 = vpack.c.bf16 %v2567, %v2567
    %v2584 = vpack.c.bf16 %v2568, %v2568
    %v2585 = vpack.c.bf16 %v2569, %v2569
    %v2586 = vld [vmem:[%s1612 + $0x4c] sm:$0xff]
    %v2587 = vld [vmem:[%s1612 + $0x54] sm:$0xff]
    %v2588 = vld [vmem:[%s1612 + $0x5c] sm:$0xff]
    %v2589 = vld [vmem:[%s1612 + $0x64] sm:$0xff]
    %v2590 = vld [vmem:[%s1612 + $0x6c] sm:$0xff]
    %v2591 = vld [vmem:[%s1612 + $0x74] sm:$0xff]
    %v2592 = vld [vmem:[%s1612 + $0x7c] sm:$0xff]
    %v2593 = vld [vmem:[%s1612 + $0x84] sm:$0xff]
    %v2594 = vld [vmem:[%s1612 + $0xdc] sm:$0xff]
    %v2595 = vld [vmem:[%s1612 + $0xe4] sm:$0xff]
    %v2596 = vld [vmem:[%s1612 + $0xec] sm:$0xff]
    %v2597 = vld [vmem:[%s1612 + $0xf4] sm:$0xff]
    %v2598 = vld [vmem:[%s1612 + $0xfc] sm:$0xff]
    %v2599 = vld [vmem:[%s1612 + $0x104] sm:$0xff]
    %v2600 = vld [vmem:[%s1612 + $0x10c] sm:$0xff]
    %v2601 = vld [vmem:[%s1612 + $0x114] sm:$0xff]
    %v2602 = vld [vmem:[%s1612 + $0x16c] sm:$0xff]
    %v2603 = vld [vmem:[%s1612 + $0x174] sm:$0xff]
    %v2604 = vld [vmem:[%s1612 + $0x17c] sm:$0xff]
    %v2605 = vld [vmem:[%s1612 + $0x184] sm:$0xff]
    %v2606 = vld [vmem:[%s1612 + $0x18c] sm:$0xff]
    %v2607 = vld [vmem:[%s1612 + $0x194] sm:$0xff]
    %v2608 = vld [vmem:[%s1612 + $0x19c] sm:$0xff]
    %v2609 = vld [vmem:[%s1612 + $0x1a4] sm:$0xff]
    %v2610 = vld [vmem:[%s1612 + $0x1fc] sm:$0xff]
    %v2611 = vld [vmem:[%s1612 + $0x204] sm:$0xff]
    %v2612 = vld [vmem:[%s1612 + $0x20c] sm:$0xff]
    %v2613 = vld [vmem:[%s1612 + $0x214] sm:$0xff]
    %v2614 = vld [vmem:[%s1612 + $0x21c] sm:$0xff]
    %v2615 = vld [vmem:[%s1612 + $0x224] sm:$0xff]
    %v2616 = vld [vmem:[%s1612 + $0x22c] sm:$0xff]
    %v2617 = vld [vmem:[%s1612 + $0x234] sm:$0xff]
    %v2618 = vld [vmem:[%s1862 + $0x1] sm:$0x1]
    %v2619 = vlaneseq
    %v2620 = vshrl.u32 %v2619, 7
    %v2621 = vsub.s32 0, %v2620
    %v2622 = vrot.slane %v2618, %v2621
    %v2655 = vunpack.c.l.b16 %v2586
    %v2656 = vunpack.c.h.b16 %v2586
    %v2657 = vunpack.c.l.b16 %v2587
    %v2658 = vunpack.c.h.b16 %v2587
    %v2659 = vunpack.c.l.b16 %v2588
    %v2660 = vunpack.c.h.b16 %v2588
    %v2661 = vunpack.c.l.b16 %v2589
    %v2662 = vunpack.c.h.b16 %v2589
    %v2663 = vunpack.c.l.b16 %v2590
    %v2664 = vunpack.c.h.b16 %v2590
    %v2665 = vunpack.c.l.b16 %v2591
    %v2666 = vunpack.c.h.b16 %v2591
    %v2667 = vunpack.c.l.b16 %v2592
    %v2668 = vunpack.c.h.b16 %v2592
    %v2669 = vunpack.c.l.b16 %v2593
    %v2670 = vunpack.c.h.b16 %v2593
    %v2671 = vunpack.c.l.b16 %v2594
    %v2672 = vunpack.c.h.b16 %v2594
    %v2673 = vunpack.c.l.b16 %v2595
    %v2674 = vunpack.c.h.b16 %v2595
    %v2675 = vunpack.c.l.b16 %v2596
    %v2676 = vunpack.c.h.b16 %v2596
    %v2677 = vunpack.c.l.b16 %v2597
    %v2678 = vunpack.c.h.b16 %v2597
    %v2679 = vunpack.c.l.b16 %v2598
    %v2680 = vunpack.c.h.b16 %v2598
    %v2681 = vunpack.c.l.b16 %v2599
    %v2682 = vunpack.c.h.b16 %v2599
    %v2683 = vunpack.c.l.b16 %v2600
    %v2684 = vunpack.c.h.b16 %v2600
    %v2685 = vunpack.c.l.b16 %v2601
    %v2686 = vunpack.c.h.b16 %v2601
    %v2687 = vunpack.c.l.b16 %v2602
    %v2688 = vunpack.c.h.b16 %v2602
    %v2689 = vunpack.c.l.b16 %v2603
    %v2690 = vunpack.c.h.b16 %v2603
    %v2691 = vunpack.c.l.b16 %v2604
    %v2692 = vunpack.c.h.b16 %v2604
    %v2693 = vunpack.c.l.b16 %v2605
    %v2694 = vunpack.c.h.b16 %v2605
    %v2695 = vunpack.c.l.b16 %v2606
    %v2696 = vunpack.c.h.b16 %v2606
    %v2697 = vunpack.c.l.b16 %v2607
    %v2698 = vunpack.c.h.b16 %v2607
    %v2699 = vunpack.c.l.b16 %v2608
    %v2700 = vunpack.c.h.b16 %v2608
    %v2701 = vunpack.c.l.b16 %v2609
    %v2702 = vunpack.c.h.b16 %v2609
    %v2703 = vunpack.c.l.b16 %v2610
    %v2704 = vunpack.c.h.b16 %v2610
    %v2705 = vunpack.c.l.b16 %v2611
    %v2706 = vunpack.c.h.b16 %v2611
    %v2707 = vunpack.c.l.b16 %v2612
    %v2708 = vunpack.c.h.b16 %v2612
    %v2709 = vunpack.c.l.b16 %v2613
    %v2710 = vunpack.c.h.b16 %v2613
    %v2711 = vunpack.c.l.b16 %v2614
    %v2712 = vunpack.c.h.b16 %v2614
    %v2713 = vunpack.c.l.b16 %v2615
    %v2714 = vunpack.c.h.b16 %v2615
    %v2715 = vunpack.c.l.b16 %v2616
    %v2716 = vunpack.c.h.b16 %v2616
    %v2717 = vunpack.c.l.b16 %v2617
    %v2718 = vunpack.c.h.b16 %v2617
    %v2719 = vpack.c.b16 %v2671, %v2655
    %v2720 = vpack.c.b16 %v2672, %v2656
    %v2721 = vpack.c.b16 %v2673, %v2657
    %v2722 = vpack.c.b16 %v2674, %v2658
    %v2723 = vpack.c.b16 %v2675, %v2659
    %v2724 = vpack.c.b16 %v2676, %v2660
    %v2725 = vpack.c.b16 %v2677, %v2661
    %v2726 = vpack.c.b16 %v2678, %v2662
    %v2727 = vpack.c.b16 %v2679, %v2663
    %v2728 = vpack.c.b16 %v2680, %v2664
    %v2729 = vpack.c.b16 %v2681, %v2665
    %v2730 = vpack.c.b16 %v2682, %v2666
    %v2731 = vpack.c.b16 %v2683, %v2667
    %v2732 = vpack.c.b16 %v2684, %v2668
    %v2733 = vpack.c.b16 %v2685, %v2669
    %v2734 = vpack.c.b16 %v2686, %v2670
    %v2735 = vpack.c.b16 %v2703, %v2687
    %v2736 = vpack.c.b16 %v2704, %v2688
    %v2737 = vpack.c.b16 %v2705, %v2689
    %v2738 = vpack.c.b16 %v2706, %v2690
    %v2739 = vpack.c.b16 %v2707, %v2691
    %v2740 = vpack.c.b16 %v2708, %v2692
    %v2741 = vpack.c.b16 %v2709, %v2693
    %v2742 = vpack.c.b16 %v2710, %v2694
    %v2743 = vpack.c.b16 %v2711, %v2695
    %v2744 = vpack.c.b16 %v2712, %v2696
    %v2745 = vpack.c.b16 %v2713, %v2697
    %v2746 = vpack.c.b16 %v2714, %v2698
    %v2747 = vpack.c.b16 %v2715, %v2699
    %v2748 = vpack.c.b16 %v2716, %v2700
    %v2749 = vpack.c.b16 %v2717, %v2701
    %v2750 = vpack.c.b16 %v2718, %v2702
    %2783 = vmatprep.subr.bf16.mxu0 %v2720
    %2784 = vmatpush1.bf16.xpose.msra.mxu0 %v2719
    %2785 = vmatprep.subr.bf16.mxu0 %v2736
    %2786 = vmatpush1.bf16.xpose.msra.mxu0 %v2735
    %2787 = vmatprep.subr.bf16.mxu0 0
    %2788 = vmatpush1.bf16.xpose.msra.mxu0 0
    %2789 = vmatprep.subr.bf16.mxu0 0
    %2790 = vmatpush1.bf16.xpose.msra.mxu0 0
    %2791 = vmatprep.subr.bf16.mxu0 0
    %2792 = vmatpush1.bf16.xpose.msra.mxu0 0
    %2793 = vmatprep.subr.bf16.mxu0 0
    %2794 = vmatpush1.bf16.xpose.msra.mxu0 0
    %2795 = vmatprep.subr.bf16.mxu0 0
    %2796 = vmatpush1.bf16.xpose.msra.mxu0 0
    %2797 = vmatprep.subr.bf16.mxu0 0
    %2798 = vmatpush1.bf16.xpose.msra.mxu0 0
    %2799 = vmatprep.subr.bf16.mxu0 0
    %2800 = vmatpush1.bf16.xpose.msra.mxu0 0
    %2801 = vmatprep.subr.bf16.mxu0 0
    %2802 = vmatpush1.bf16.xpose.msra.mxu0 0
    %2803 = vmatprep.subr.bf16.mxu0 0
    %2804 = vmatpush1.bf16.xpose.msra.mxu0 0
    %2805 = vmatprep.subr.bf16.mxu0 0
    %2806 = vmatpush1.bf16.xpose.msra.mxu0 0
    %2807 = vmatprep.subr.bf16.mxu0 0
    %2808 = vmatpush1.bf16.xpose.msra.mxu0 0
    %2809 = vmatprep.subr.bf16.mxu0 0
    %2810 = vmatpush1.bf16.xpose.msra.mxu0 0
    %2811 = vmatprep.subr.bf16.mxu0 0
    %2812 = vmatpush1.bf16.xpose.msra.mxu0 0
    %2813 = vmatprep.subr.bf16.mxu0 0
    %2814 = vmatpush1.bf16.xpose.msra.mxu0 0
    %2815 = vmatprep.mubr.bf16.mxu0 %v2571
    %2816 = vmatmul.mubr.bf16.gmra.mrb[0].mxu0 %v2570
    %v2817 = vpop.f32.mrb[0].mxu0
    %v2818 = vadd.f32 %v2622, %v2817
    %v2819 = vpop.f32.mrb[0].mxu0
    %v2820 = vpop.f32.mrb[0].mxu0
    %v2821 = vpop.f32.mrb[0].mxu0
    %2822 = vdwg.mxu0
    %2823 = vmatprep.subr.bf16.mxu0 %v2722
    %2824 = vmatpush1.bf16.xpose.msra.mxu0 %v2721
    %2825 = vmatprep.subr.bf16.mxu0 %v2738
    %2826 = vmatpush1.bf16.xpose.msra.mxu0 %v2737
    %2827 = vmatprep.subr.bf16.mxu0 0
    %2828 = vmatpush1.bf16.xpose.msra.mxu0 0
    %2829 = vmatprep.subr.bf16.mxu0 0
    %2830 = vmatpush1.bf16.xpose.msra.mxu0 0
    %2831 = vmatprep.subr.bf16.mxu0 0
    %2832 = vmatpush1.bf16.xpose.msra.mxu0 0
    %2833 = vmatprep.subr.bf16.mxu0 0
    %2834 = vmatpush1.bf16.xpose.msra.mxu0 0
    %2835 = vmatprep.subr.bf16.mxu0 0
    %2836 = vmatpush1.bf16.xpose.msra.mxu0 0
    %2837 = vmatprep.subr.bf16.mxu0 0
    %2838 = vmatpush1.bf16.xpose.msra.mxu0 0
    %2839 = vmatprep.subr.bf16.mxu0 0
    %2840 = vmatpush1.bf16.xpose.msra.mxu0 0
    %2841 = vmatprep.subr.bf16.mxu0 0
    %2842 = vmatpush1.bf16.xpose.msra.mxu0 0
    %2843 = vmatprep.subr.bf16.mxu0 0
    %2844 = vmatpush1.bf16.xpose.msra.mxu0 0
    %2845 = vmatprep.subr.bf16.mxu0 0
    %2846 = vmatpush1.bf16.xpose.msra.mxu0 0
    %2847 = vmatprep.subr.bf16.mxu0 0
    %2848 = vmatpush1.bf16.xpose.msra.mxu0 0
    %2849 = vmatprep.subr.bf16.mxu0 0
    %2850 = vmatpush1.bf16.xpose.msra.mxu0 0
    %2851 = vmatprep.subr.bf16.mxu0 0
    %2852 = vmatpush1.bf16.xpose.msra.mxu0 0
    %2853 = vmatprep.subr.bf16.mxu0 0
    %2854 = vmatpush1.bf16.xpose.msra.mxu0 0
    %2855 = vmatprep.mubr.bf16.mxu0 %v2573
    %2856 = vmatmul.mubr.bf16.gmra.mrb[0].mxu0 %v2572
    %v2857 = vpop.f32.mrb[0].mxu0
    %v2858 = vadd.f32 %v2818, %v2857
    %v2859 = vpop.f32.mrb[0].mxu0
    %v2860 = vpop.f32.mrb[0].mxu0
    %v2861 = vpop.f32.mrb[0].mxu0
    %2862 = vdwg.mxu0
    %2863 = vmatprep.subr.bf16.mxu0 %v2724
    %2864 = vmatpush1.bf16.xpose.msra.mxu0 %v2723
    %2865 = vmatprep.subr.bf16.mxu0 %v2740
    %2866 = vmatpush1.bf16.xpose.msra.mxu0 %v2739
    %2867 = vmatprep.subr.bf16.mxu0 0
    %2868 = vmatpush1.bf16.xpose.msra.mxu0 0
    %2869 = vmatprep.subr.bf16.mxu0 0
    %2870 = vmatpush1.bf16.xpose.msra.mxu0 0
    %2871 = vmatprep.subr.bf16.mxu0 0
    %2872 = vmatpush1.bf16.xpose.msra.mxu0 0
    %2873 = vmatprep.subr.bf16.mxu0 0
    %2874 = vmatpush1.bf16.xpose.msra.mxu0 0
    %2875 = vmatprep.subr.bf16.mxu0 0
    %2876 = vmatpush1.bf16.xpose.msra.mxu0 0
    %2877 = vmatprep.subr.bf16.mxu0 0
    %2878 = vmatpush1.bf16.xpose.msra.mxu0 0
    %2879 = vmatprep.subr.bf16.mxu0 0
    %2880 = vmatpush1.bf16.xpose.msra.mxu0 0
    %2881 = vmatprep.subr.bf16.mxu0 0
    %2882 = vmatpush1.bf16.xpose.msra.mxu0 0
    %2883 = vmatprep.subr.bf16.mxu0 0
    %2884 = vmatpush1.bf16.xpose.msra.mxu0 0
    %2885 = vmatprep.subr.bf16.mxu0 0
    %2886 = vmatpush1.bf16.xpose.msra.mxu0 0
    %2887 = vmatprep.subr.bf16.mxu0 0
    %2888 = vmatpush1.bf16.xpose.msra.mxu0 0
    %2889 = vmatprep.subr.bf16.mxu0 0
    %2890 = vmatpush1.bf16.xpose.msra.mxu0 0
    %2891 = vmatprep.subr.bf16.mxu0 0
    %2892 = vmatpush1.bf16.xpose.msra.mxu0 0
    %2893 = vmatprep.subr.bf16.mxu0 0
    %2894 = vmatpush1.bf16.xpose.msra.mxu0 0
    %2895 = vmatprep.mubr.bf16.mxu0 %v2575
    %2896 = vmatmul.mubr.bf16.gmra.mrb[0].mxu0 %v2574
    %v2897 = vpop.f32.mrb[0].mxu0
    %v2898 = vadd.f32 %v2858, %v2897
    %v2899 = vpop.f32.mrb[0].mxu0
    %v2900 = vpop.f32.mrb[0].mxu0
    %v2901 = vpop.f32.mrb[0].mxu0
    %2902 = vdwg.mxu0
    %2903 = vmatprep.subr.bf16.mxu0 %v2726
    %2904 = vmatpush1.bf16.xpose.msra.mxu0 %v2725
    %2905 = vmatprep.subr.bf16.mxu0 %v2742
    %2906 = vmatpush1.bf16.xpose.msra.mxu0 %v2741
    %2907 = vmatprep.subr.bf16.mxu0 0
    %2908 = vmatpush1.bf16.xpose.msra.mxu0 0
    %2909 = vmatprep.subr.bf16.mxu0 0
    %2910 = vmatpush1.bf16.xpose.msra.mxu0 0
    %2911 = vmatprep.subr.bf16.mxu0 0
    %2912 = vmatpush1.bf16.xpose.msra.mxu0 0
    %2913 = vmatprep.subr.bf16.mxu0 0
    %2914 = vmatpush1.bf16.xpose.msra.mxu0 0
    %2915 = vmatprep.subr.bf16.mxu0 0
    %2916 = vmatpush1.bf16.xpose.msra.mxu0 0
    %2917 = vmatprep.subr.bf16.mxu0 0
    %2918 = vmatpush1.bf16.xpose.msra.mxu0 0
    %2919 = vmatprep.subr.bf16.mxu0 0
    %2920 = vmatpush1.bf16.xpose.msra.mxu0 0
    %2921 = vmatprep.subr.bf16.mxu0 0
    %2922 = vmatpush1.bf16.xpose.msra.mxu0 0
    %2923 = vmatprep.subr.bf16.mxu0 0
    %2924 = vmatpush1.bf16.xpose.msra.mxu0 0
    %2925 = vmatprep.subr.bf16.mxu0 0
    %2926 = vmatpush1.bf16.xpose.msra.mxu0 0
    %2927 = vmatprep.subr.bf16.mxu0 0
    %2928 = vmatpush1.bf16.xpose.msra.mxu0 0
    %2929 = vmatprep.subr.bf16.mxu0 0
    %2930 = vmatpush1.bf16.xpose.msra.mxu0 0
    %2931 = vmatprep.subr.bf16.mxu0 0
    %2932 = vmatpush1.bf16.xpose.msra.mxu0 0
    %2933 = vmatprep.subr.bf16.mxu0 0
    %2934 = vmatpush1.bf16.xpose.msra.mxu0 0
    %2935 = vmatprep.mubr.bf16.mxu0 %v2577
    %2936 = vmatmul.mubr.bf16.gmra.mrb[0].mxu0 %v2576
    %v2937 = vpop.f32.mrb[0].mxu0
    %v2938 = vadd.f32 %v2898, %v2937
    %v2939 = vpop.f32.mrb[0].mxu0
    %v2940 = vpop.f32.mrb[0].mxu0
    %v2941 = vpop.f32.mrb[0].mxu0
    %2942 = vdwg.mxu0
    %2943 = vmatprep.subr.bf16.mxu0 %v2728
    %2944 = vmatpush1.bf16.xpose.msra.mxu0 %v2727
    %2945 = vmatprep.subr.bf16.mxu0 %v2744
    %2946 = vmatpush1.bf16.xpose.msra.mxu0 %v2743
    %2947 = vmatprep.subr.bf16.mxu0 0
    %2948 = vmatpush1.bf16.xpose.msra.mxu0 0
    %2949 = vmatprep.subr.bf16.mxu0 0
    %2950 = vmatpush1.bf16.xpose.msra.mxu0 0
    %2951 = vmatprep.subr.bf16.mxu0 0
    %2952 = vmatpush1.bf16.xpose.msra.mxu0 0
    %2953 = vmatprep.subr.bf16.mxu0 0
    %2954 = vmatpush1.bf16.xpose.msra.mxu0 0
    %2955 = vmatprep.subr.bf16.mxu0 0
    %2956 = vmatpush1.bf16.xpose.msra.mxu0 0
    %2957 = vmatprep.subr.bf16.mxu0 0
    %2958 = vmatpush1.bf16.xpose.msra.mxu0 0
    %2959 = vmatprep.subr.bf16.mxu0 0
    %2960 = vmatpush1.bf16.xpose.msra.mxu0 0
    %2961 = vmatprep.subr.bf16.mxu0 0
    %2962 = vmatpush1.bf16.xpose.msra.mxu0 0
    %2963 = vmatprep.subr.bf16.mxu0 0
    %2964 = vmatpush1.bf16.xpose.msra.mxu0 0
    %2965 = vmatprep.subr.bf16.mxu0 0
    %2966 = vmatpush1.bf16.xpose.msra.mxu0 0
    %2967 = vmatprep.subr.bf16.mxu0 0
    %2968 = vmatpush1.bf16.xpose.msra.mxu0 0
    %2969 = vmatprep.subr.bf16.mxu0 0
    %2970 = vmatpush1.bf16.xpose.msra.mxu0 0
    %2971 = vmatprep.subr.bf16.mxu0 0
    %2972 = vmatpush1.bf16.xpose.msra.mxu0 0
    %2973 = vmatprep.subr.bf16.mxu0 0
    %2974 = vmatpush1.bf16.xpose.msra.mxu0 0
    %2975 = vmatprep.mubr.bf16.mxu0 %v2579
    %2976 = vmatmul.mubr.bf16.gmra.mrb[0].mxu0 %v2578
    %v2977 = vpop.f32.mrb[0].mxu0
    %v2978 = vadd.f32 %v2938, %v2977
    %v2979 = vpop.f32.mrb[0].mxu0
    %v2980 = vpop.f32.mrb[0].mxu0
    %v2981 = vpop.f32.mrb[0].mxu0
    %2982 = vdwg.mxu0
    %2983 = vmatprep.subr.bf16.mxu0 %v2730
    %2984 = vmatpush1.bf16.xpose.msra.mxu0 %v2729
    %2985 = vmatprep.subr.bf16.mxu0 %v2746
    %2986 = vmatpush1.bf16.xpose.msra.mxu0 %v2745
    %2987 = vmatprep.subr.bf16.mxu0 0
    %2988 = vmatpush1.bf16.xpose.msra.mxu0 0
    %2989 = vmatprep.subr.bf16.mxu0 0
    %2990 = vmatpush1.bf16.xpose.msra.mxu0 0
    %2991 = vmatprep.subr.bf16.mxu0 0
    %2992 = vmatpush1.bf16.xpose.msra.mxu0 0
    %2993 = vmatprep.subr.bf16.mxu0 0
    %2994 = vmatpush1.bf16.xpose.msra.mxu0 0
    %2995 = vmatprep.subr.bf16.mxu0 0
    %2996 = vmatpush1.bf16.xpose.msra.mxu0 0
    %2997 = vmatprep.subr.bf16.mxu0 0
    %2998 = vmatpush1.bf16.xpose.msra.mxu0 0
    %2999 = vmatprep.subr.bf16.mxu0 0
    %3000 = vmatpush1.bf16.xpose.msra.mxu0 0
    %3001 = vmatprep.subr.bf16.mxu0 0
    %3002 = vmatpush1.bf16.xpose.msra.mxu0 0
    %3003 = vmatprep.subr.bf16.mxu0 0
    %3004 = vmatpush1.bf16.xpose.msra.mxu0 0
    %3005 = vmatprep.subr.bf16.mxu0 0
    %3006 = vmatpush1.bf16.xpose.msra.mxu0 0
    %3007 = vmatprep.subr.bf16.mxu0 0
    %3008 = vmatpush1.bf16.xpose.msra.mxu0 0
    %3009 = vmatprep.subr.bf16.mxu0 0
    %3010 = vmatpush1.bf16.xpose.msra.mxu0 0
    %3011 = vmatprep.subr.bf16.mxu0 0
    %3012 = vmatpush1.bf16.xpose.msra.mxu0 0
    %3013 = vmatprep.subr.bf16.mxu0 0
    %3014 = vmatpush1.bf16.xpose.msra.mxu0 0
    %3015 = vmatprep.mubr.bf16.mxu0 %v2581
    %3016 = vmatmul.mubr.bf16.gmra.mrb[0].mxu0 %v2580
    %v3017 = vpop.f32.mrb[0].mxu0
    %v3018 = vadd.f32 %v2978, %v3017
    %v3019 = vpop.f32.mrb[0].mxu0
    %v3020 = vpop.f32.mrb[0].mxu0
    %v3021 = vpop.f32.mrb[0].mxu0
    %3022 = vdwg.mxu0
    %3023 = vmatprep.subr.bf16.mxu0 %v2732
    %3024 = vmatpush1.bf16.xpose.msra.mxu0 %v2731
    %3025 = vmatprep.subr.bf16.mxu0 %v2748
    %3026 = vmatpush1.bf16.xpose.msra.mxu0 %v2747
    %3027 = vmatprep.subr.bf16.mxu0 0
    %3028 = vmatpush1.bf16.xpose.msra.mxu0 0
    %3029 = vmatprep.subr.bf16.mxu0 0
    %3030 = vmatpush1.bf16.xpose.msra.mxu0 0
    %3031 = vmatprep.subr.bf16.mxu0 0
    %3032 = vmatpush1.bf16.xpose.msra.mxu0 0
    %3033 = vmatprep.subr.bf16.mxu0 0
    %3034 = vmatpush1.bf16.xpose.msra.mxu0 0
    %3035 = vmatprep.subr.bf16.mxu0 0
    %3036 = vmatpush1.bf16.xpose.msra.mxu0 0
    %3037 = vmatprep.subr.bf16.mxu0 0
    %3038 = vmatpush1.bf16.xpose.msra.mxu0 0
    %3039 = vmatprep.subr.bf16.mxu0 0
    %3040 = vmatpush1.bf16.xpose.msra.mxu0 0
    %3041 = vmatprep.subr.bf16.mxu0 0
    %3042 = vmatpush1.bf16.xpose.msra.mxu0 0
    %3043 = vmatprep.subr.bf16.mxu0 0
    %3044 = vmatpush1.bf16.xpose.msra.mxu0 0
    %3045 = vmatprep.subr.bf16.mxu0 0
    %3046 = vmatpush1.bf16.xpose.msra.mxu0 0
    %3047 = vmatprep.subr.bf16.mxu0 0
    %3048 = vmatpush1.bf16.xpose.msra.mxu0 0
    %3049 = vmatprep.subr.bf16.mxu0 0
    %3050 = vmatpush1.bf16.xpose.msra.mxu0 0
    %3051 = vmatprep.subr.bf16.mxu0 0
    %3052 = vmatpush1.bf16.xpose.msra.mxu0 0
    %3053 = vmatprep.subr.bf16.mxu0 0
    %3054 = vmatpush1.bf16.xpose.msra.mxu0 0
    %3055 = vmatprep.mubr.bf16.mxu0 %v2583
    %3056 = vmatmul.mubr.bf16.gmra.mrb[0].mxu0 %v2582
    %v3057 = vpop.f32.mrb[0].mxu0
    %v3058 = vadd.f32 %v3018, %v3057
    %v3059 = vpop.f32.mrb[0].mxu0
    %v3060 = vpop.f32.mrb[0].mxu0
    %v3061 = vpop.f32.mrb[0].mxu0
    %3062 = vdwg.mxu0
    %3063 = vmatprep.subr.bf16.mxu0 %v2734
    %3064 = vmatpush1.bf16.xpose.msra.mxu0 %v2733
    %3065 = vmatprep.subr.bf16.mxu0 %v2750
    %3066 = vmatpush1.bf16.xpose.msra.mxu0 %v2749
    %3067 = vmatprep.subr.bf16.mxu0 0
    %3068 = vmatpush1.bf16.xpose.msra.mxu0 0
    %3069 = vmatprep.subr.bf16.mxu0 0
    %3070 = vmatpush1.bf16.xpose.msra.mxu0 0
    %3071 = vmatprep.subr.bf16.mxu0 0
    %3072 = vmatpush1.bf16.xpose.msra.mxu0 0
    %3073 = vmatprep.subr.bf16.mxu0 0
    %3074 = vmatpush1.bf16.xpose.msra.mxu0 0
    %3075 = vmatprep.subr.bf16.mxu0 0
    %3076 = vmatpush1.bf16.xpose.msra.mxu0 0
    %3077 = vmatprep.subr.bf16.mxu0 0
    %3078 = vmatpush1.bf16.xpose.msra.mxu0 0
    %3079 = vmatprep.subr.bf16.mxu0 0
    %3080 = vmatpush1.bf16.xpose.msra.mxu0 0
    %3081 = vmatprep.subr.bf16.mxu0 0
    %3082 = vmatpush1.bf16.xpose.msra.mxu0 0
    %3083 = vmatprep.subr.bf16.mxu0 0
    %3084 = vmatpush1.bf16.xpose.msra.mxu0 0
    %3085 = vmatprep.subr.bf16.mxu0 0
    %3086 = vmatpush1.bf16.xpose.msra.mxu0 0
    %3087 = vmatprep.subr.bf16.mxu0 0
    %3088 = vmatpush1.bf16.xpose.msra.mxu0 0
    %3089 = vmatprep.subr.bf16.mxu0 0
    %3090 = vmatpush1.bf16.xpose.msra.mxu0 0
    %3091 = vmatprep.subr.bf16.mxu0 0
    %3092 = vmatpush1.bf16.xpose.msra.mxu0 0
    %3093 = vmatprep.subr.bf16.mxu0 0
    %3094 = vmatpush1.bf16.xpose.msra.mxu0 0
    %3095 = vmatprep.mubr.bf16.mxu0 %v2585
    %3096 = vmatmul.mubr.bf16.gmra.mrb[0].mxu0 %v2584
    %v3097 = vpop.f32.mrb[0].mxu0
    %v3098 = vadd.f32 %v3058, %v3097
    %v3099 = vpop.f32.mrb[0].mxu0
    %v3100 = vpop.f32.mrb[0].mxu0
    %v3101 = vpop.f32.mrb[0].mxu0
    %3102 = vdwg.mxu0
    %v3103 = vadd.f32 %v1945, %v3098
    %v3104 = vld [vmem:[%s1862 + $0x4] sm:$0x1]
    %v3105 = vld [vmem:[%s1862 + $0x5] sm:$0x1]
    %v3106 = vsel %vm150, %v3103, 0.0
    %3107 = vadd.xlane.f32.xlu0 %v3106
    %v3108 = vpop.xlane.xlu0 %3107
    %v3109 = vmul.f32 %v3108, %v407
    %v3110 = vsub.f32 %v3103, %v3109
    %v3111 = vmul.f32 %v3110, %v3110
    %v3112 = vsel %vm150, %v3111, 0.0
    %3113 = vadd.xlane.f32.xlu0 %v3112
    %v3114 = vpop.xlane.xlu0 %3113
    %v3115 = vmul.f32 %v3114, %v407
    %v3116 = vadd.f32 %v3115, 1e-05
    %v3117 = vrsqrt.pop %v3116
    %v3118 = vmul.f32 %v3110, %v3117
    %v3119 = vlaneseq
    %v3120 = vshrl.u32 %v3119, 7
    %v3121 = vsub.s32 0, %v3120
    %v3122 = vrot.slane %v3104, %v3121
    %v3123 = vmul.f32 %v3118, %v3122
    %v3124 = vlaneseq
    %v3125 = vshrl.u32 %v3124, 7
    %v3126 = vsub.s32 0, %v3125
    %v3127 = vrot.slane %v3105, %v3126
    %v3128 = vadd.f32 %v3123, %v3127
    %v3129 = vpack.c.bf16 %v3128, %v3128
    %v3130 = vld [vmem:[#allocation10] sm:$0xf]
    %v3131 = vld [vmem:[#allocation10 + $0x4] sm:$0xf]
    %v3132 = vld [vmem:[#allocation10 + $0x8] sm:$0xf]
    %v3133 = vld [vmem:[#allocation10 + $0xc] sm:$0xf]
    %v3134 = vld [vmem:[%s5] sm:$0x1]
    %v3136 = vlaneseq
    %v3137 = vshrl.u32 %v3136, 7
    %v3138 = vsub.s32 0, %v3137
    %v3139 = vrot.slane %v3134, %v3138
    %v3145 = vunpack.c.l.b16 %v3130
    %v3146 = vunpack.c.l.b16 %v3131
    %v3147 = vunpack.c.l.b16 %v3132
    %v3148 = vunpack.c.l.b16 %v3133
    %v3149 = vpack.c.b16 %v3146, %v3145
    %v3150 = vpack.c.b16 %v3148, %v3147
    %v3154 = vsel %vm150, %v3129, 0
    %3156 = vmatprep.subr.bf16.mxu0 0
    %3157 = vmatpush1.bf16.msra.mxu0 %v3149
    %3158 = vmatprep.subr.bf16.mxu0 0
    %3159 = vmatpush1.bf16.msra.mxu0 %v3150
    %3160 = vmatprep.subr.bf16.mxu0 0
    %3161 = vmatpush1.bf16.msra.mxu0 0
    %3162 = vmatprep.subr.bf16.mxu0 0
    %3163 = vmatpush1.bf16.msra.mxu0 0
    %3164 = vmatprep.subr.bf16.mxu0 0
    %3165 = vmatpush1.bf16.msra.mxu0 0
    %3166 = vmatprep.subr.bf16.mxu0 0
    %3167 = vmatpush1.bf16.msra.mxu0 0
    %3168 = vmatprep.subr.bf16.mxu0 0
    %3169 = vmatpush1.bf16.msra.mxu0 0
    %3170 = vmatprep.subr.bf16.mxu0 0
    %3171 = vmatpush1.bf16.msra.mxu0 0
    %3172 = vmatprep.subr.bf16.mxu0 0
    %3173 = vmatpush1.bf16.msra.mxu0 0
    %3174 = vmatprep.subr.bf16.mxu0 0
    %3175 = vmatpush1.bf16.msra.mxu0 0
    %3176 = vmatprep.subr.bf16.mxu0 0
    %3177 = vmatpush1.bf16.msra.mxu0 0
    %3178 = vmatprep.subr.bf16.mxu0 0
    %3179 = vmatpush1.bf16.msra.mxu0 0
    %3180 = vmatprep.subr.bf16.mxu0 0
    %3181 = vmatpush1.bf16.msra.mxu0 0
    %3182 = vmatprep.subr.bf16.mxu0 0
    %3183 = vmatpush1.bf16.msra.mxu0 0
    %3184 = vmatprep.subr.bf16.mxu0 0
    %3185 = vmatpush1.bf16.msra.mxu0 0
    %3186 = vmatprep.subr.bf16.mxu0 0
    %3187 = vmatpush1.bf16.msra.mxu0 0
    %3188 = vmatprep.mubr.bf16.mxu0 0
    %3189 = vmatmul.mubr.bf16.gmra.mrb[0].mxu0 %v3154
    %v3190 = vpop.f32.mrb[0].mxu0
    %v3191 = vadd.f32 %v3139, %v3190
    %v3192 = vpop.f32.mrb[0].mxu0
    %v3193 = vpop.f32.mrb[0].mxu0
    %v3194 = vpop.f32.mrb[0].mxu0
    %3195 = vdwg.mxu0
    %3196 = vst [vmem:[#allocation11] sm:$0xff] %v3191
    // Predicated region
    $region46: #{tpu_custom_call.1} parent=1 // pred_check
      _
    $region47: #{tpu_custom_call.1} parent=1 // pred_check_branch
      %3198 = sbr.rel (0) target = $region49
    $region48: #{tpu_custom_call.1} parent=1 // pred_region
      %s3200 = ssub.s32 128, 128
      %3201 = vsyncadd [#allocation4], %s3200
      %s3203 = sshll.u32 [#allocation11], 4
      %s3204 = int_to_ptr.vmem [resolvable:$true] %s3203
      %3206 = dma.vmem_to_hbm [thread:$0]  %s3204, 128, %s6, [#allocation4]
    $region49: #{tpu_custom_call.1} parent=1 // pred_fallthru
      _
    // Predicated region
    $region50: #{tpu_custom_call.1} parent=1 // pred_check
      _
    $region51: #{tpu_custom_call.1} parent=1 // pred_check_branch
      %3208 = sbr.rel (0) target = $region53
    $region52: #{tpu_custom_call.1} parent=1 // pred_region
      %3209 = dma.done [#allocation4], 128
    $region53: #{tpu_custom_call.1} parent=1 // pred_fallthru
      _
    %3210 = vsyncpa [#allocation3], 1
    %3211 = vsyncpa [#allocation6], 1
    %3212 = vsyncpa [#allocation9], 1
    %3213 = vsyncpa [#allocation4], 1

</llo_original>
